<compile_context>
chip_gen: v7x
topology: tpu7x:2x2x1
jax: 0.10.0
libtpu: 0.0.40
codegen_flags: <defaults>
</compile_context>

<pallas_src>
import functools

import numpy as np
import jax
import jax.numpy as jnp
from jax.experimental import pallas as pl
from jax.experimental.pallas import tpu as pltpu


# ----------------------------------------------------------------------------
# Bilinear interpolation matrices (align_corners=True), built on host.
# ----------------------------------------------------------------------------
def _interp_matrix(out_size, in_size):
    m = np.zeros((out_size, in_size), np.float32)
    if in_size == 1:
        m[:, 0] = 1.0
        return m
    for i in range(out_size):
        src = i * (in_size - 1) / (out_size - 1)
        lo = int(np.floor(src))
        hi = min(lo + 1, in_size - 1)
        frac = src - lo
        m[i, lo] += 1.0 - frac
        m[i, hi] += frac
    return m


# ----------------------------------------------------------------------------
# In-register helpers used inside the kernel
# ----------------------------------------------------------------------------
def _zero_pad_hw(x, top, bottom, left, right):
    """Zero-pad the (H, W) dims of a (C, H, W) register value via concat."""
    c, h, _ = x.shape
    dt = x.dtype
    parts = []
    if left:
        parts.append(jnp.zeros((c, h, left), dt))
    parts.append(x)
    if right:
        parts.append(jnp.zeros((c, h, right), dt))
    if len(parts) > 1:
        x = jnp.concatenate(parts, axis=2)
    w = x.shape[2]
    parts = []
    if top:
        parts.append(jnp.zeros((c, top, w), dt))
    parts.append(x)
    if bottom:
        parts.append(jnp.zeros((c, bottom, w), dt))
    if len(parts) > 1:
        x = jnp.concatenate(parts, axis=1)
    return x


def _conv3x3(xp, w, cin, H, W):
    """3x3 'same' conv as matmul(s).

    xp: (cin, H+2, W+2) bf16, zero-padded input.
    w : (Cout, 9*cin) bf16, tap-major / input-channel-minor.
    Returns (Cout, H*W) f32.
    """
    HW = H * W
    taps = [xp[:, ky:ky + H, kx:kx + W].reshape(cin, HW)
            for ky in range(3) for kx in range(3)]
    # Small im2col buffer -> single big-K matmul; otherwise accumulate 9 dots
    # so we never materialize a 9x-image buffer in VMEM (v7x: 64 MiB).
    if 9 * cin * HW * 2 <= (4 << 20):
        col = jnp.concatenate(taps, axis=0)                     # (9*cin, HW)
        return jnp.dot(w, col, preferred_element_type=jnp.float32)
    acc = jnp.dot(w[:, :cin], taps[0], preferred_element_type=jnp.float32)
    for t in range(1, 9):
        acc = acc + jnp.dot(w[:, t * cin:(t + 1) * cin], taps[t],
                            preferred_element_type=jnp.float32)
    return acc


# ----------------------------------------------------------------------------
# Fused kernel: upsample + pad + concat + double_conv + residual (per image)
# ----------------------------------------------------------------------------
def _up_fused_kernel(x1_ref, x2_ref, wy_ref, wxt_ref, w1_ref, w2_ref, wr_ref,
                     bn_ref, o_ref, *, H, W, H1, C1, C2, Cout, H2u, W2u,
                     padT, padB, padL, padR):
    f32, bf16 = jnp.float32, jnp.bfloat16
    HW = H * W
    Cin = C1 + C2

    # ---- bilinear upsample of x1 (align_corners=True), channel-major -------
    # width first: (C1*H1, W1) @ (W1, W2u) -> (C1*H1, W2u)
    a = jnp.dot(x1_ref[0], wxt_ref[...], preferred_element_type=f32)
    a = a.reshape(C1, H1, W2u).astype(bf16)
    # height: C1-batched (H2u, H1) @ (H1, W2u) -> (C1, H2u, W2u)
    wy_b = jnp.broadcast_to(wy_ref[...], (C1, H2u, H1))
    up = jnp.einsum("cih,chj->cij", wy_b, a,
                    preferred_element_type=f32).astype(bf16)

    # ---- pad to x2 spatial size, concat along channels (x2 first) ----------
    up_hw = _zero_pad_hw(up, padT, padB, padL, padR)            # (C1, H, W)
    x2 = x2_ref[0].reshape(C2, H, W)                            # bf16
    xcat = jnp.concatenate([x2, up_hw], axis=0)                 # (Cin, H, W)

    s1 = bn_ref[:, 0:1]; t1 = bn_ref[:, 1:2]
    s2 = bn_ref[:, 2:3]; t2 = bn_ref[:, 3:4]
    sr = bn_ref[:, 4:5]; tr = bn_ref[:, 5:6]

    # ---- conv1 (3x3 same) + BN + ReLU ---------------------------------------
    xp = _zero_pad_hw(xcat, 1, 1, 1, 1)                         # (Cin, H+2, W+2)
    h1 = jnp.maximum(_conv3x3(xp, w1_ref[...], Cin, H, W) * s1 + t1, 0.0)

    # ---- conv2 (3x3 same) + BN + ReLU ---------------------------------------
    h1p = _zero_pad_hw(h1.astype(bf16).reshape(Cout, H, W), 1, 1, 1, 1)
    h2 = jnp.maximum(_conv3x3(h1p, w2_ref[...], Cout, H, W) * s2 + t2, 0.0)

    # ---- residual: 1x1 conv (+ folded BN) on the concatenated input --------
    xflat = xcat.reshape(Cin, HW)
    res = jnp.dot(wr_ref[...], xflat, preferred_element_type=f32) * sr + tr

    # Single lane-dense interior store (no pad ring ever leaves the kernel).
    o_ref[0] = (h2 + res).astype(o_ref.dtype)


# ----------------------------------------------------------------------------
# Host-side parameter packing (matmul layouts, bf16, bias folded into BN)
# ----------------------------------------------------------------------------
def _pack_params(p):
    cout = p["w1"].shape[-1]

    def conv_mat(w_hwio):
        # (3,3,Ci,Co) -> (Co, 9*Ci): tap-major, input-channel-minor.
        return jnp.transpose(w_hwio, (3, 0, 1, 2)).reshape(cout, -1)

    w1m = conv_mat(p["w1"])
    w2m = conv_mat(p["w2"])
    wrm = p["wr"].T                                  # (Cout, Cin)
    t1b = p["t1"] + p["b1"] * p["s1"]                # fold conv bias into BN
    t2b = p["t2"] + p["b2"] * p["s2"]
    bn = jnp.stack([p["s1"], t1b, p["s2"], t2b, p["sr"], p["tr"]], axis=1)
    return (w1m.astype(jnp.bfloat16), w2m.astype(jnp.bfloat16),
            wrm.astype(jnp.bfloat16), bn.astype(jnp.float32))


# ----------------------------------------------------------------------------
# Full `up` forward (NCHW in, NCHW out)
# ----------------------------------------------------------------------------
def up_forward(x1_nchw, x2_nchw, params):
    N, C1, H1, W1 = x1_nchw.shape
    N2, C2, H, W = x2_nchw.shape
    assert N2 == N
    H2u, W2u = 2 * H1, 2 * W1
    diffY, diffX = H - H2u, W - W2u
    assert diffY >= 0 and diffX >= 0, "negative padding unsupported"
    padT, padB = diffY // 2, diffY - diffY // 2
    padL, padR = diffX // 2, diffX - diffX // 2
    HW = H * W

    Cout = params["w1"].shape[-1]
    Cin = C1 + C2

    w1m, w2m, wrm, bn = _pack_params(params)
    wy = jnp.asarray(_interp_matrix(H2u, H1), jnp.bfloat16)       # (H2u, H1)
    wxt = jnp.asarray(_interp_matrix(W2u, W1).T, jnp.bfloat16)    # (W1, W2u)

    # bf16 inputs; both layouts are pure contiguous reshapes of NCHW.
    x1_r = x1_nchw.reshape(N, C1 * H1, W1).astype(jnp.bfloat16)
    x2_r = x2_nchw.reshape(N, C2 * H, W).astype(jnp.bfloat16)

    kernel = functools.partial(
        _up_fused_kernel, H=H, W=W, H1=H1, C1=C1, C2=C2, Cout=Cout,
        H2u=H2u, W2u=W2u, padT=padT, padB=padB, padL=padL, padR=padR)

    def full(shape):
        return pl.BlockSpec(shape, lambda n: (0,) * len(shape))

    # VMEM budget: double-buffered blocks + weights + headroom for padded /
    # im2col intermediates; capped to stay portable to v7x (64 MiB physical).
    est = (2 * (C1 * H1 * W1 + C2 * HW) * 2
           + 2 * Cout * HW * 4
           + (H2u * H1 + W1 * W2u + Cout * 9 * Cin + Cout * 9 * Cout
              + Cout * Cin) * 2 + Cout * 6 * 4
           + 16 * (Cin + Cout) * (H + 2) * (W + 2) * 4)
    vmem_limit = int(min(max(4 * est, 32 << 20), 48 << 20))

    out = pl.pallas_call(
        kernel,
        out_shape=jax.ShapeDtypeStruct((N, Cout, HW), jnp.float32),
        grid=(N,),
        in_specs=[
            pl.BlockSpec((1, C1 * H1, W1), lambda n: (n, 0, 0)),  # x1 rows
            pl.BlockSpec((1, C2 * H, W), lambda n: (n, 0, 0)),    # x2 rows
            full((H2u, H1)),          # Wy
            full((W1, W2u)),          # Wx^T
            full((Cout, 9 * Cin)),    # conv1 weights (tap-major)
            full((Cout, 9 * Cout)),   # conv2 weights (tap-major)
            full((Cout, Cin)),        # residual 1x1 weights
            full((Cout, 6)),          # packed BN scale/shift (bias folded)
        ],
        out_specs=pl.BlockSpec((1, Cout, HW), lambda n: (n, 0, 0)),
        compiler_params=pltpu.CompilerParams(
            dimension_semantics=("parallel",),   # no cross-step state
            vmem_limit_bytes=vmem_limit),
    )(x1_r, x2_r, wy, wxt, w1m, w2m, wrm, bn)

    # Free reshape back to NCHW (output is already the interior, lane-dense).
    return out.reshape(N, Cout, H, W)


# ----------------------------------------------------------------------------
# Deterministic parameter init (eval-mode BN folded into scale/shift)
# ----------------------------------------------------------------------------
def init_params(key, in_ch, out_ch):
    ks = jax.random.split(key, 8)
    eps = 1e-5

    def bn_fold(k, c):
        kk = jax.random.split(k, 4)
        gamma = 1.0 + 0.1 * jax.random.normal(kk[0], (c,), jnp.float32)
        beta = 0.1 * jax.random.normal(kk[1], (c,), jnp.float32)
        mean = 0.1 * jax.random.normal(kk[2], (c,), jnp.float32)
        var = 1.0 + 0.1 * jax.random.uniform(kk[3], (c,), jnp.float32)
        s = gamma / jnp.sqrt(var + eps)
        t = beta - mean * s
        return s, t

    w1 = 0.1 * jax.random.normal(ks[0], (3, 3, in_ch, out_ch), jnp.float32)  # HWIO
    b1 = 0.1 * jax.random.normal(ks[1], (out_ch,), jnp.float32)
    s1, t1 = bn_fold(ks[2], out_ch)
    w2 = 0.1 * jax.random.normal(ks[3], (3, 3, out_ch, out_ch), jnp.float32)
    b2 = 0.1 * jax.random.normal(ks[4], (out_ch,), jnp.float32)
    s2, t2 = bn_fold(ks[5], out_ch)
    if in_ch != out_ch:
        wr = 0.1 * jax.random.normal(ks[6], (in_ch, out_ch), jnp.float32)
        sr, tr = bn_fold(ks[7], out_ch)
    else:  # residual is identity (no channel_conv)
        wr = jnp.eye(in_ch, dtype=jnp.float32)
        sr = jnp.ones((out_ch,), jnp.float32)
        tr = jnp.zeros((out_ch,), jnp.float32)
    return dict(w1=w1, b1=b1, s1=s1, t1=t1, w2=w2, b2=b2, s2=s2, t2=t2,
                wr=wr, sr=sr, tr=tr)


# ----------------------------------------------------------------------------
# Pure-JAX reference for validation (f32)
# ----------------------------------------------------------------------------
def up_reference(x1_nchw, x2_nchw, p, in_ch, out_ch):
    N, C1, H1, W1 = x1_nchw.shape
    H2u, W2u = 2 * H1, 2 * W1
    wy = jnp.asarray(_interp_matrix(H2u, H1))
    wx = jnp.asarray(_interp_matrix(W2u, W1))
    x1 = jnp.transpose(x1_nchw, (0, 2, 3, 1)).astype(jnp.float32)
    up = jnp.einsum("ih,nhwc->niwc", wy, x1)
    up = jnp.einsum("jw,niwc->nijc", wx, up)
    x2 = jnp.transpose(x2_nchw, (0, 2, 3, 1)).astype(jnp.float32)
    diffY = x2.shape[1] - up.shape[1]
    diffX = x2.shape[2] - up.shape[2]
    up = jnp.pad(up, ((0, 0), (diffY // 2, diffY - diffY // 2),
                      (diffX // 2, diffX - diffX // 2), (0, 0)))
    x = jnp.concatenate([x2, up], axis=-1)

    def conv3(z, w, b):
        y = jax.lax.conv_general_dilated(
            z, w, (1, 1), ((1, 1), (1, 1)),
            dimension_numbers=("NHWC", "HWIO", "NHWC"))
        return y + b.reshape(1, 1, 1, -1)

    def bn(z, s, t):
        return z * s.reshape(1, 1, 1, -1) + t.reshape(1, 1, 1, -1)

    h = jnp.maximum(bn(conv3(x, p["w1"], p["b1"]), p["s1"], p["t1"]), 0.0)
    h = jnp.maximum(bn(conv3(h, p["w2"], p["b2"]), p["s2"], p["t2"]), 0.0)
    if in_ch != out_ch:
        res = bn(jnp.einsum("nhwc,cd->nhwd", x, p["wr"]), p["sr"], p["tr"])
    else:
        res = x
    return jnp.transpose(h + res, (0, 3, 1, 2))


if __name__ == "__main__":
    key = jax.random.PRNGKey(0)
    kx1, kx2, kp = jax.random.split(key, 3)

    N, C1, H1, W1 = 2, 4, 8, 8        # x1: low-res feature map
    C2 = 4                            # x2: skip connection at 2x resolution
    in_ch, out_ch = C1 + C2, 4        # up(in_ch=8, out_ch=4)

    x1 = jax.random.normal(kx1, (N, C1, H1, W1), jnp.float32)
    x2 = jax.random.normal(kx2, (N, C2, 2 * H1, 2 * W1), jnp.float32)
    params = init_params(kp, in_ch, out_ch)

    out = jax.block_until_ready(up_forward(x1, x2, params))
    ref = up_reference(x1, x2, params, in_ch, out_ch)

    assert out.shape == (N, out_ch, 2 * H1, 2 * W1), out.shape
    max_err = float(jnp.max(jnp.abs(out - ref)))
    if not bool(jnp.allclose(out, ref, rtol=5e-2, atol=5e-2)):
        raise SystemExit(f"mismatch: max abs err = {max_err}")
    print("KERNEL_OK")
</pallas_src>

<mosaic_0001>
module attributes {stable_mosaic.version = 11 : i64} {
  func.func @_up_fused_kernel(%arg0: i32, %arg1: memref<1x32x8xbf16, #tpu.memory_space<vmem>>, %arg2: memref<1x64x16xbf16, #tpu.memory_space<vmem>>, %arg3: memref<16x8xbf16, #tpu.memory_space<vmem>>, %arg4: memref<8x16xbf16, #tpu.memory_space<vmem>>, %arg5: memref<4x72xbf16, #tpu.memory_space<vmem>>, %arg6: memref<4x36xbf16, #tpu.memory_space<vmem>>, %arg7: memref<4x8xbf16, #tpu.memory_space<vmem>>, %arg8: memref<4x6xf32, #tpu.memory_space<vmem>>, %arg9: memref<1x4x256xf32, #tpu.memory_space<vmem>>) attributes {dimension_semantics = [#tpu.dimension_semantics<parallel>], iteration_bounds = array<i64: 2>, scalar_prefetch = 0 : i64, scratch_operands = 0 : i64, tpu.core_type = #tpu.core_type<tc>, window_params = [{transform_indices = @transform_0, window_bounds = array<i64: 1, 32, 8>}, {transform_indices = @transform_1, window_bounds = array<i64: 1, 64, 16>}, {pipeline_mode = #tpu.pipeline_mode<synchronous>, transform_indices = @transform_2, window_bounds = array<i64: 16, 8>}, {pipeline_mode = #tpu.pipeline_mode<synchronous>, transform_indices = @transform_3, window_bounds = array<i64: 8, 16>}, {pipeline_mode = #tpu.pipeline_mode<synchronous>, transform_indices = @transform_4, window_bounds = array<i64: 4, 72>}, {pipeline_mode = #tpu.pipeline_mode<synchronous>, transform_indices = @transform_5, window_bounds = array<i64: 4, 36>}, {pipeline_mode = #tpu.pipeline_mode<synchronous>, transform_indices = @transform_6, window_bounds = array<i64: 4, 8>}, {pipeline_mode = #tpu.pipeline_mode<synchronous>, transform_indices = @transform_7, window_bounds = array<i64: 4, 6>}, {transform_indices = @transform_8, window_bounds = array<i64: 1, 4, 256>}]} {
    %c0 = arith.constant 0 : index
    %c0_0 = arith.constant 0 : index
    %c0_1 = arith.constant 0 : index
    %0 = vector.load %arg1[%c0, %c0_0, %c0_1] : memref<1x32x8xbf16, #tpu.memory_space<vmem>>, vector<1x32x8xbf16>
    %1 = vector.shape_cast %0 : vector<1x32x8xbf16> to vector<32x8xbf16>
    %c0_2 = arith.constant 0 : index
    %c0_3 = arith.constant 0 : index
    %2 = vector.load %arg4[%c0_2, %c0_3] : memref<8x16xbf16, #tpu.memory_space<vmem>>, vector<8x16xbf16>
    %cst = arith.constant dense<0.000000e+00> : vector<32x16xf32>
    %3 = tpu.matmul %1, %2, %cst {dimension_numbers = #tpu.dot_dimension_numbers<[1], [0], [0], [1], [0, 0, 1, 1], [], []>} : vector<32x8xbf16>, vector<8x16xbf16>, vector<32x16xf32> -> vector<32x16xf32>
    %4 = vector.shape_cast %3 : vector<32x16xf32> to vector<4x8x16xf32>
    %5 = arith.truncf %4 : vector<4x8x16xf32> to vector<4x8x16xbf16>
    %c0_4 = arith.constant 0 : index
    %c0_5 = arith.constant 0 : index
    %6 = vector.load %arg3[%c0_4, %c0_5] : memref<16x8xbf16, #tpu.memory_space<vmem>>, vector<16x8xbf16>
    %7 = vector.shape_cast %6 : vector<16x8xbf16> to vector<1x16x8xbf16>
    %8 = vector.broadcast %7 : vector<1x16x8xbf16> to vector<4x16x8xbf16>
    "tpu.trace_start"() <{level = 10 : i32, message = "cih,chj->cij"}> : () -> ()
    %cst_6 = arith.constant dense<0.000000e+00> : vector<4x16x16xf32>
    %9 = tpu.matmul %8, %5, %cst_6 {dimension_numbers = #tpu.dot_dimension_numbers<[2], [1], [1], [2], [0, 0, 0, 1, 1, 2], [0], [0]>} : vector<4x16x8xbf16>, vector<4x8x16xbf16>, vector<4x16x16xf32> -> vector<4x16x16xf32>
    "tpu.trace_stop"() : () -> ()
    %10 = arith.truncf %9 : vector<4x16x16xf32> to vector<4x16x16xbf16>
    %c0_7 = arith.constant 0 : index
    %c0_8 = arith.constant 0 : index
    %c0_9 = arith.constant 0 : index
    %11 = vector.load %arg2[%c0_7, %c0_8, %c0_9] : memref<1x64x16xbf16, #tpu.memory_space<vmem>>, vector<1x64x16xbf16>
    %12 = vector.shape_cast %11 : vector<1x64x16xbf16> to vector<64x16xbf16>
    %13 = vector.shape_cast %12 : vector<64x16xbf16> to vector<4x16x16xbf16>
    %14 = tpu.concatenate %13, %10 in 0 : vector<4x16x16xbf16>, vector<4x16x16xbf16> -> vector<8x16x16xbf16>
    %c0_10 = arith.constant 0 : index
    %c0_11 = arith.constant 0 : index
    %15 = vector.load %arg8[%c0_10, %c0_11] : memref<4x6xf32, #tpu.memory_space<vmem>>, vector<4x1xf32>
    %c0_12 = arith.constant 0 : index
    %c1 = arith.constant 1 : index
    %16 = vector.load %arg8[%c0_12, %c1] : memref<4x6xf32, #tpu.memory_space<vmem>>, vector<4x1xf32>
    %c0_13 = arith.constant 0 : index
    %c2 = arith.constant 2 : index
    %17 = vector.load %arg8[%c0_13, %c2] : memref<4x6xf32, #tpu.memory_space<vmem>>, vector<4x1xf32>
    %c0_14 = arith.constant 0 : index
    %c3 = arith.constant 3 : index
    %18 = vector.load %arg8[%c0_14, %c3] : memref<4x6xf32, #tpu.memory_space<vmem>>, vector<4x1xf32>
    %c0_15 = arith.constant 0 : index
    %c4 = arith.constant 4 : index
    %19 = vector.load %arg8[%c0_15, %c4] : memref<4x6xf32, #tpu.memory_space<vmem>>, vector<4x1xf32>
    %c0_16 = arith.constant 0 : index
    %c5 = arith.constant 5 : index
    %20 = vector.load %arg8[%c0_16, %c5] : memref<4x6xf32, #tpu.memory_space<vmem>>, vector<4x1xf32>
    %cst_17 = arith.constant 0.000000e+00 : bf16
    %21 = vector.broadcast %cst_17 : bf16 to vector<8x16x1xbf16>
    %cst_18 = arith.constant 0.000000e+00 : bf16
    %22 = vector.broadcast %cst_18 : bf16 to vector<8x16x1xbf16>
    %23 = tpu.concatenate %21, %14, %22 in 2 : vector<8x16x1xbf16>, vector<8x16x16xbf16>, vector<8x16x1xbf16> -> vector<8x16x18xbf16>
    %cst_19 = arith.constant 0.000000e+00 : bf16
    %24 = vector.broadcast %cst_19 : bf16 to vector<8x1x18xbf16>
    %cst_20 = arith.constant 0.000000e+00 : bf16
    %25 = vector.broadcast %cst_20 : bf16 to vector<8x1x18xbf16>
    %26 = tpu.concatenate %24, %23, %25 in 1 : vector<8x1x18xbf16>, vector<8x16x18xbf16>, vector<8x1x18xbf16> -> vector<8x18x18xbf16>
    %c0_21 = arith.constant 0 : index
    %c0_22 = arith.constant 0 : index
    %27 = vector.load %arg5[%c0_21, %c0_22] : memref<4x72xbf16, #tpu.memory_space<vmem>>, vector<4x72xbf16>
    %28 = vector.extract_strided_slice %26 {offsets = [0, 0, 0], sizes = [8, 16, 16], strides = [1, 1, 1]} : vector<8x18x18xbf16> to vector<8x16x16xbf16>
    %29 = vector.shape_cast %28 : vector<8x16x16xbf16> to vector<8x256xbf16>
    %30 = vector.extract_strided_slice %26 {offsets = [0, 0, 1], sizes = [8, 16, 16], strides = [1, 1, 1]} : vector<8x18x18xbf16> to vector<8x16x16xbf16>
    %31 = vector.shape_cast %30 : vector<8x16x16xbf16> to vector<8x256xbf16>
    %32 = vector.extract_strided_slice %26 {offsets = [0, 0, 2], sizes = [8, 16, 16], strides = [1, 1, 1]} : vector<8x18x18xbf16> to vector<8x16x16xbf16>
    %33 = vector.shape_cast %32 : vector<8x16x16xbf16> to vector<8x256xbf16>
    %34 = vector.extract_strided_slice %26 {offsets = [0, 1, 0], sizes = [8, 16, 16], strides = [1, 1, 1]} : vector<8x18x18xbf16> to vector<8x16x16xbf16>
    %35 = vector.shape_cast %34 : vector<8x16x16xbf16> to vector<8x256xbf16>
    %36 = vector.extract_strided_slice %26 {offsets = [0, 1, 1], sizes = [8, 16, 16], strides = [1, 1, 1]} : vector<8x18x18xbf16> to vector<8x16x16xbf16>
    %37 = vector.shape_cast %36 : vector<8x16x16xbf16> to vector<8x256xbf16>
    %38 = vector.extract_strided_slice %26 {offsets = [0, 1, 2], sizes = [8, 16, 16], strides = [1, 1, 1]} : vector<8x18x18xbf16> to vector<8x16x16xbf16>
    %39 = vector.shape_cast %38 : vector<8x16x16xbf16> to vector<8x256xbf16>
    %40 = vector.extract_strided_slice %26 {offsets = [0, 2, 0], sizes = [8, 16, 16], strides = [1, 1, 1]} : vector<8x18x18xbf16> to vector<8x16x16xbf16>
    %41 = vector.shape_cast %40 : vector<8x16x16xbf16> to vector<8x256xbf16>
    %42 = vector.extract_strided_slice %26 {offsets = [0, 2, 1], sizes = [8, 16, 16], strides = [1, 1, 1]} : vector<8x18x18xbf16> to vector<8x16x16xbf16>
    %43 = vector.shape_cast %42 : vector<8x16x16xbf16> to vector<8x256xbf16>
    %44 = vector.extract_strided_slice %26 {offsets = [0, 2, 2], sizes = [8, 16, 16], strides = [1, 1, 1]} : vector<8x18x18xbf16> to vector<8x16x16xbf16>
    %45 = vector.shape_cast %44 : vector<8x16x16xbf16> to vector<8x256xbf16>
    %46 = tpu.concatenate %29, %31, %33, %35, %37, %39, %41, %43, %45 in 0 : vector<8x256xbf16>, vector<8x256xbf16>, vector<8x256xbf16>, vector<8x256xbf16>, vector<8x256xbf16>, vector<8x256xbf16>, vector<8x256xbf16>, vector<8x256xbf16>, vector<8x256xbf16> -> vector<72x256xbf16>
    %cst_23 = arith.constant dense<0.000000e+00> : vector<4x256xf32>
    %47 = tpu.matmul %27, %46, %cst_23 {dimension_numbers = #tpu.dot_dimension_numbers<[1], [0], [0], [1], [0, 0, 1, 1], [], []>} : vector<4x72xbf16>, vector<72x256xbf16>, vector<4x256xf32> -> vector<4x256xf32>
    %48 = vector.broadcast %15 : vector<4x1xf32> to vector<4x256xf32>
    %49 = arith.mulf %47, %48 : vector<4x256xf32>
    %50 = vector.broadcast %16 : vector<4x1xf32> to vector<4x256xf32>
    %51 = arith.addf %49, %50 : vector<4x256xf32>
    %cst_24 = arith.constant 0.000000e+00 : f32
    %52 = vector.broadcast %cst_24 : f32 to vector<4x256xf32>
    %53 = arith.maximumf %51, %52 : vector<4x256xf32>
    %54 = arith.truncf %53 : vector<4x256xf32> to vector<4x256xbf16>
    %55 = vector.shape_cast %54 : vector<4x256xbf16> to vector<4x16x16xbf16>
    %cst_25 = arith.constant 0.000000e+00 : bf16
    %56 = vector.broadcast %cst_25 : bf16 to vector<4x16x1xbf16>
    %cst_26 = arith.constant 0.000000e+00 : bf16
    %57 = vector.broadcast %cst_26 : bf16 to vector<4x16x1xbf16>
    %58 = tpu.concatenate %56, %55, %57 in 2 : vector<4x16x1xbf16>, vector<4x16x16xbf16>, vector<4x16x1xbf16> -> vector<4x16x18xbf16>
    %cst_27 = arith.constant 0.000000e+00 : bf16
    %59 = vector.broadcast %cst_27 : bf16 to vector<4x1x18xbf16>
    %cst_28 = arith.constant 0.000000e+00 : bf16
    %60 = vector.broadcast %cst_28 : bf16 to vector<4x1x18xbf16>
    %61 = tpu.concatenate %59, %58, %60 in 1 : vector<4x1x18xbf16>, vector<4x16x18xbf16>, vector<4x1x18xbf16> -> vector<4x18x18xbf16>
    %c0_29 = arith.constant 0 : index
    %c0_30 = arith.constant 0 : index
    %62 = vector.load %arg6[%c0_29, %c0_30] : memref<4x36xbf16, #tpu.memory_space<vmem>>, vector<4x36xbf16>
    %63 = vector.extract_strided_slice %61 {offsets = [0, 0, 0], sizes = [4, 16, 16], strides = [1, 1, 1]} : vector<4x18x18xbf16> to vector<4x16x16xbf16>
    %64 = vector.shape_cast %63 : vector<4x16x16xbf16> to vector<4x256xbf16>
    %65 = vector.extract_strided_slice %61 {offsets = [0, 0, 1], sizes = [4, 16, 16], strides = [1, 1, 1]} : vector<4x18x18xbf16> to vector<4x16x16xbf16>
    %66 = vector.shape_cast %65 : vector<4x16x16xbf16> to vector<4x256xbf16>
    %67 = vector.extract_strided_slice %61 {offsets = [0, 0, 2], sizes = [4, 16, 16], strides = [1, 1, 1]} : vector<4x18x18xbf16> to vector<4x16x16xbf16>
    %68 = vector.shape_cast %67 : vector<4x16x16xbf16> to vector<4x256xbf16>
    %69 = vector.extract_strided_slice %61 {offsets = [0, 1, 0], sizes = [4, 16, 16], strides = [1, 1, 1]} : vector<4x18x18xbf16> to vector<4x16x16xbf16>
    %70 = vector.shape_cast %69 : vector<4x16x16xbf16> to vector<4x256xbf16>
    %71 = vector.extract_strided_slice %61 {offsets = [0, 1, 1], sizes = [4, 16, 16], strides = [1, 1, 1]} : vector<4x18x18xbf16> to vector<4x16x16xbf16>
    %72 = vector.shape_cast %71 : vector<4x16x16xbf16> to vector<4x256xbf16>
    %73 = vector.extract_strided_slice %61 {offsets = [0, 1, 2], sizes = [4, 16, 16], strides = [1, 1, 1]} : vector<4x18x18xbf16> to vector<4x16x16xbf16>
    %74 = vector.shape_cast %73 : vector<4x16x16xbf16> to vector<4x256xbf16>
    %75 = vector.extract_strided_slice %61 {offsets = [0, 2, 0], sizes = [4, 16, 16], strides = [1, 1, 1]} : vector<4x18x18xbf16> to vector<4x16x16xbf16>
    %76 = vector.shape_cast %75 : vector<4x16x16xbf16> to vector<4x256xbf16>
    %77 = vector.extract_strided_slice %61 {offsets = [0, 2, 1], sizes = [4, 16, 16], strides = [1, 1, 1]} : vector<4x18x18xbf16> to vector<4x16x16xbf16>
    %78 = vector.shape_cast %77 : vector<4x16x16xbf16> to vector<4x256xbf16>
    %79 = vector.extract_strided_slice %61 {offsets = [0, 2, 2], sizes = [4, 16, 16], strides = [1, 1, 1]} : vector<4x18x18xbf16> to vector<4x16x16xbf16>
    %80 = vector.shape_cast %79 : vector<4x16x16xbf16> to vector<4x256xbf16>
    %81 = tpu.concatenate %64, %66, %68, %70, %72, %74, %76, %78, %80 in 0 : vector<4x256xbf16>, vector<4x256xbf16>, vector<4x256xbf16>, vector<4x256xbf16>, vector<4x256xbf16>, vector<4x256xbf16>, vector<4x256xbf16>, vector<4x256xbf16>, vector<4x256xbf16> -> vector<36x256xbf16>
    %cst_31 = arith.constant dense<0.000000e+00> : vector<4x256xf32>
    %82 = tpu.matmul %62, %81, %cst_31 {dimension_numbers = #tpu.dot_dimension_numbers<[1], [0], [0], [1], [0, 0, 1, 1], [], []>} : vector<4x36xbf16>, vector<36x256xbf16>, vector<4x256xf32> -> vector<4x256xf32>
    %83 = vector.broadcast %17 : vector<4x1xf32> to vector<4x256xf32>
    %84 = arith.mulf %82, %83 : vector<4x256xf32>
    %85 = vector.broadcast %18 : vector<4x1xf32> to vector<4x256xf32>
    %86 = arith.addf %84, %85 : vector<4x256xf32>
    %cst_32 = arith.constant 0.000000e+00 : f32
    %87 = vector.broadcast %cst_32 : f32 to vector<4x256xf32>
    %88 = arith.maximumf %86, %87 : vector<4x256xf32>
    %89 = vector.shape_cast %14 : vector<8x16x16xbf16> to vector<8x256xbf16>
    %c0_33 = arith.constant 0 : index
    %c0_34 = arith.constant 0 : index
    %90 = vector.load %arg7[%c0_33, %c0_34] : memref<4x8xbf16, #tpu.memory_space<vmem>>, vector<4x8xbf16>
    %cst_35 = arith.constant dense<0.000000e+00> : vector<4x256xf32>
    %91 = tpu.matmul %90, %89, %cst_35 {dimension_numbers = #tpu.dot_dimension_numbers<[1], [0], [0], [1], [0, 0, 1, 1], [], []>} : vector<4x8xbf16>, vector<8x256xbf16>, vector<4x256xf32> -> vector<4x256xf32>
    %92 = vector.broadcast %19 : vector<4x1xf32> to vector<4x256xf32>
    %93 = arith.mulf %91, %92 : vector<4x256xf32>
    %94 = vector.broadcast %20 : vector<4x1xf32> to vector<4x256xf32>
    %95 = arith.addf %93, %94 : vector<4x256xf32>
    %96 = arith.addf %88, %95 : vector<4x256xf32>
    %c0_36 = arith.constant 0 : index
    %c0_37 = arith.constant 0 : index
    %c0_38 = arith.constant 0 : index
    %97 = vector.load %arg9[%c0_36, %c0_37, %c0_38] : memref<1x4x256xf32, #tpu.memory_space<vmem>>, vector<1x4x256xf32>
    %98 = vector.shape_cast %97 : vector<1x4x256xf32> to vector<4x256xf32>
    %99 = vector.shape_cast %96 : vector<4x256xf32> to vector<1x4x256xf32>
    tpu.vector_store %arg9[%c0_36, %c0_37, %c0_38], %99 {strides = array<i32>} : memref<1x4x256xf32, #tpu.memory_space<vmem>>, vector<1x4x256xf32>,
    return
  }
  func.func @transform_0(%arg0: i32) -> (i32, i32, i32) {
    %c0_i32 = arith.constant 0 : i32
    %c0_i32_0 = arith.constant 0 : i32
    %c0_i32_1 = arith.constant 0 : i32
    return %arg0, %c0_i32, %c0_i32_0 : i32, i32, i32
  }
  func.func @transform_1(%arg0: i32) -> (i32, i32, i32) {
    %c0_i32 = arith.constant 0 : i32
    %c0_i32_0 = arith.constant 0 : i32
    %c0_i32_1 = arith.constant 0 : i32
    return %arg0, %c0_i32, %c0_i32_0 : i32, i32, i32
  }
  func.func @transform_2(%arg0: i32) -> (i32, i32) {
    %c0_i32 = arith.constant 0 : i32
    %c0_i32_0 = arith.constant 0 : i32
    %c0_i32_1 = arith.constant 0 : i32
    return %c0_i32, %c0_i32_0 : i32, i32
  }
  func.func @transform_3(%arg0: i32) -> (i32, i32) {
    %c0_i32 = arith.constant 0 : i32
    %c0_i32_0 = arith.constant 0 : i32
    %c0_i32_1 = arith.constant 0 : i32
    return %c0_i32, %c0_i32_0 : i32, i32
  }
  func.func @transform_4(%arg0: i32) -> (i32, i32) {
    %c0_i32 = arith.constant 0 : i32
    %c0_i32_0 = arith.constant 0 : i32
    %c0_i32_1 = arith.constant 0 : i32
    return %c0_i32, %c0_i32_0 : i32, i32
  }
  func.func @transform_5(%arg0: i32) -> (i32, i32) {
    %c0_i32 = arith.constant 0 : i32
    %c0_i32_0 = arith.constant 0 : i32
    %c0_i32_1 = arith.constant 0 : i32
    return %c0_i32, %c0_i32_0 : i32, i32
  }
  func.func @transform_6(%arg0: i32) -> (i32, i32) {
    %c0_i32 = arith.constant 0 : i32
    %c0_i32_0 = arith.constant 0 : i32
    %c0_i32_1 = arith.constant 0 : i32
    return %c0_i32, %c0_i32_0 : i32, i32
  }
  func.func @transform_7(%arg0: i32) -> (i32, i32) {
    %c0_i32 = arith.constant 0 : i32
    %c0_i32_0 = arith.constant 0 : i32
    %c0_i32_1 = arith.constant 0 : i32
    return %c0_i32, %c0_i32_0 : i32, i32
  }
  func.func @transform_8(%arg0: i32) -> (i32, i32, i32) {
    %c0_i32 = arith.constant 0 : i32
    %c0_i32_0 = arith.constant 0 : i32
    %c0_i32_1 = arith.constant 0 : i32
    return %arg0, %c0_i32, %c0_i32_0 : i32, i32, i32
  }
}

</mosaic_0001>

<llo_original>
// kernel: tpu_custom_call.1
$region0: #{tpu_custom_call.1}
  #allocation0 [shape = 'u32[]', space=smem, size = 0x4, offset = 0x4, fixed_abs, tag = 'smem constant byte address 0x4 - core index']
  #allocation1 [shape = 'u32[144,128]{1,0:T(1,128)}', space=vmem, size = 0x12000, scoped, tag = 'internal scratch']
  %s0 = inlined_call_operand.vmem [shape: bf16[2,32,8], index: 0, kind: input, shape index: {}]
  %s1 = inlined_call_operand.vmem [shape: bf16[2,64,16], index: 1, kind: input, shape index: {}]
  %s2 = inlined_call_operand.vmem [shape: bf16[16,8], index: 2, kind: input, shape index: {}]
  %s3 = inlined_call_operand.vmem [shape: bf16[8,16], index: 3, kind: input, shape index: {}]
  %s4 = inlined_call_operand.vmem [shape: bf16[4,72], index: 4, kind: input, shape index: {}]
  %s5 = inlined_call_operand.vmem [shape: bf16[4,36], index: 5, kind: input, shape index: {}]
  %s6 = inlined_call_operand.vmem [shape: bf16[4,8], index: 6, kind: input, shape index: {}]
  %s7 = inlined_call_operand.vmem [shape: f32[4,6], index: 7, kind: input, shape index: {}]
  %s8 = inlined_call_operand.hbm [shape: f32[2,4,256], index: 8, kind: output, shape index: {}]
  %s9 = sld [smem:[#allocation0]]
  $region65: #{tpu_custom_call.1} parent=0
    _
  %s11 = ssub.s32 1, %s9
  %s12 = scalar_select 0, %s11, %s9
  $region1: #{tpu_custom_call.1} parent=0
    #allocation2 [shape = 'u8[8192]{0}', space=vmem, size = 0x2000, scoped, tag = 'output window, operand 0']
    #allocation3 [shape = 's32[2]{0}', space=sflag, size = 0x8, scoped, tag = 'scoped memory for tpu_custom_call.1']
    %13 = vsyncpa [#allocation3], 0
    %s14 = scalar_lea.sflag [#allocation3], 1
    %15 = vsyncpa %s14, 0
    loop: start=0, step=1, limit=4
    $region2: #{tpu_custom_call.1} parent=1 // loop_pre_header
      _
    $region3: #{tpu_custom_call.1} parent=1 // loop_header
      %s17 = sphi 0, %s21
      %p18 = scmp.ge.s32.totalorder %s17, 4
      %s27 = sphi 0, %s29
      %s30 = sphi 0, %s27
      %s31 = sphi 0, %s30
      %s47 = sphi 0, %s31
      %s53 = sphi 0, %s55
      %s56 = sphi 0, %s53
      %s57 = sphi 0, %s56
      %s73 = sphi 0, %s57
      %s77 = sphi 0, %s77
      %s79 = sphi 0, %s77
      %s80 = sphi 0, %s79
      %s94 = sphi 0, %s80
      %s98 = sphi 0, %s98
      %s100 = sphi 0, %s98
      %s101 = sphi 0, %s100
      %s115 = sphi 0, %s101
      %s119 = sphi 0, %s119
      %s121 = sphi 0, %s119
      %s122 = sphi 0, %s121
      %s136 = sphi 0, %s122
      %s140 = sphi 0, %s140
      %s142 = sphi 0, %s140
      %s143 = sphi 0, %s142
      %s157 = sphi 0, %s143
      %s161 = sphi 0, %s161
      %s163 = sphi 0, %s161
      %s164 = sphi 0, %s163
      %s178 = sphi 0, %s164
      %s182 = sphi 0, %s182
      %s184 = sphi 0, %s182
      %s185 = sphi 0, %s184
      %s199 = sphi 0, %s185
      %s205 = sphi 0, %s207
      %s208 = sphi 0, %s205
      %s209 = sphi 0, %s208
      %s225 = sphi 0, %s209
    $region4: #{tpu_custom_call.1} parent=1 // loop_header_branch
      %20 = sbr.rel (%p18) target = $region8
    $region5: #{tpu_custom_call.1} parent=1 // loop_body
      %s22 = ssub.s32 %s17, 1
      %s23 = ssub.s32 %s17, 2
      %s24 = sadd.s32 %s17, 1
      %s25 = ssub.s32 %s17, %s24
      %p26 = scmp.eq.s32.totalorder %s25, 0
      %s28 = sadd.s32 %s27, 1
      %s29 = scalar_select %p26, %s27, %s28
      %p32 = pneg %p26
      %p33 = scmp.eq.s32.totalorder %s17, 1
      %p34 = por %p32, %p33
      %p35 = scmp.ne.s32.totalorder %s27, %s30
      %p36 = scmp.eq.s32.totalorder %s17, 0
      %p37 = por %p35, %p36
      %p38 = scmp.ne.s32.totalorder %s27, %s30
      %p39 = scmp.eq.s32.totalorder %s22, 1
      %p40 = por %p38, %p39
      %p41 = scmp.ne.s32.totalorder %s30, %s31
      %p42 = scmp.eq.s32.totalorder %s22, 0
      %p43 = por %p41, %p42
      %p44 = scmp.ne.s32.totalorder %s30, %s31
      %p45 = scmp.eq.s32.totalorder %s23, 1
      %p46 = por %p44, %p45
      %p48 = scmp.ne.s32.totalorder %s31, %s47
      %p49 = scmp.eq.s32.totalorder %s23, 0
      %p50 = por %p48, %p49
      %s51 = ssub.s32 %s17, %s24
      %p52 = scmp.eq.s32.totalorder %s51, 0
      %s54 = sadd.s32 %s53, 1
      %s55 = scalar_select %p52, %s53, %s54
      %p58 = pneg %p52
      %p59 = scmp.eq.s32.totalorder %s17, 1
      %p60 = por %p58, %p59
      %p61 = scmp.ne.s32.totalorder %s53, %s56
      %p62 = scmp.eq.s32.totalorder %s17, 0
      %p63 = por %p61, %p62
      %p64 = scmp.ne.s32.totalorder %s53, %s56
      %p65 = scmp.eq.s32.totalorder %s22, 1
      %p66 = por %p64, %p65
      %p67 = scmp.ne.s32.totalorder %s56, %s57
      %p68 = scmp.eq.s32.totalorder %s22, 0
      %p69 = por %p67, %p68
      %p70 = scmp.ne.s32.totalorder %s56, %s57
      %p71 = scmp.eq.s32.totalorder %s23, 1
      %p72 = por %p70, %p71
      %p74 = scmp.ne.s32.totalorder %s57, %s73
      %p75 = scmp.eq.s32.totalorder %s23, 0
      %p76 = por %p74, %p75
      %s78 = sadd.s32 %s77, 1
      %p81 = scmp.eq.s32.totalorder %s17, 1
      %p82 = scmp.ne.s32.totalorder %s77, %s79
      %p83 = scmp.eq.s32.totalorder %s17, 0
      %p84 = por %p82, %p83
      %p85 = scmp.ne.s32.totalorder %s77, %s79
      %p86 = scmp.eq.s32.totalorder %s22, 1
      %p87 = por %p85, %p86
      %p88 = scmp.ne.s32.totalorder %s79, %s80
      %p89 = scmp.eq.s32.totalorder %s22, 0
      %p90 = por %p88, %p89
      %p91 = scmp.ne.s32.totalorder %s79, %s80
      %p92 = scmp.eq.s32.totalorder %s23, 1
      %p93 = por %p91, %p92
      %p95 = scmp.ne.s32.totalorder %s80, %s94
      %p96 = scmp.eq.s32.totalorder %s23, 0
      %p97 = por %p95, %p96
      %s99 = sadd.s32 %s98, 1
      %p102 = scmp.eq.s32.totalorder %s17, 1
      %p103 = scmp.ne.s32.totalorder %s98, %s100
      %p104 = scmp.eq.s32.totalorder %s17, 0
      %p105 = por %p103, %p104
      %p106 = scmp.ne.s32.totalorder %s98, %s100
      %p107 = scmp.eq.s32.totalorder %s22, 1
      %p108 = por %p106, %p107
      %p109 = scmp.ne.s32.totalorder %s100, %s101
      %p110 = scmp.eq.s32.totalorder %s22, 0
      %p111 = por %p109, %p110
      %p112 = scmp.ne.s32.totalorder %s100, %s101
      %p113 = scmp.eq.s32.totalorder %s23, 1
      %p114 = por %p112, %p113
      %p116 = scmp.ne.s32.totalorder %s101, %s115
      %p117 = scmp.eq.s32.totalorder %s23, 0
      %p118 = por %p116, %p117
      %s120 = sadd.s32 %s119, 1
      %p123 = scmp.eq.s32.totalorder %s17, 1
      %p124 = scmp.ne.s32.totalorder %s119, %s121
      %p125 = scmp.eq.s32.totalorder %s17, 0
      %p126 = por %p124, %p125
      %p127 = scmp.ne.s32.totalorder %s119, %s121
      %p128 = scmp.eq.s32.totalorder %s22, 1
      %p129 = por %p127, %p128
      %p130 = scmp.ne.s32.totalorder %s121, %s122
      %p131 = scmp.eq.s32.totalorder %s22, 0
      %p132 = por %p130, %p131
      %p133 = scmp.ne.s32.totalorder %s121, %s122
      %p134 = scmp.eq.s32.totalorder %s23, 1
      %p135 = por %p133, %p134
      %p137 = scmp.ne.s32.totalorder %s122, %s136
      %p138 = scmp.eq.s32.totalorder %s23, 0
      %p139 = por %p137, %p138
      %s141 = sadd.s32 %s140, 1
      %p144 = scmp.eq.s32.totalorder %s17, 1
      %p145 = scmp.ne.s32.totalorder %s140, %s142
      %p146 = scmp.eq.s32.totalorder %s17, 0
      %p147 = por %p145, %p146
      %p148 = scmp.ne.s32.totalorder %s140, %s142
      %p149 = scmp.eq.s32.totalorder %s22, 1
      %p150 = por %p148, %p149
      %p151 = scmp.ne.s32.totalorder %s142, %s143
      %p152 = scmp.eq.s32.totalorder %s22, 0
      %p153 = por %p151, %p152
      %p154 = scmp.ne.s32.totalorder %s142, %s143
      %p155 = scmp.eq.s32.totalorder %s23, 1
      %p156 = por %p154, %p155
      %p158 = scmp.ne.s32.totalorder %s143, %s157
      %p159 = scmp.eq.s32.totalorder %s23, 0
      %p160 = por %p158, %p159
      %s162 = sadd.s32 %s161, 1
      %p165 = scmp.eq.s32.totalorder %s17, 1
      %p166 = scmp.ne.s32.totalorder %s161, %s163
      %p167 = scmp.eq.s32.totalorder %s17, 0
      %p168 = por %p166, %p167
      %p169 = scmp.ne.s32.totalorder %s161, %s163
      %p170 = scmp.eq.s32.totalorder %s22, 1
      %p171 = por %p169, %p170
      %p172 = scmp.ne.s32.totalorder %s163, %s164
      %p173 = scmp.eq.s32.totalorder %s22, 0
      %p174 = por %p172, %p173
      %p175 = scmp.ne.s32.totalorder %s163, %s164
      %p176 = scmp.eq.s32.totalorder %s23, 1
      %p177 = por %p175, %p176
      %p179 = scmp.ne.s32.totalorder %s164, %s178
      %p180 = scmp.eq.s32.totalorder %s23, 0
      %p181 = por %p179, %p180
      %s183 = sadd.s32 %s182, 1
      %p186 = scmp.eq.s32.totalorder %s17, 1
      %p187 = scmp.ne.s32.totalorder %s182, %s184
      %p188 = scmp.eq.s32.totalorder %s17, 0
      %p189 = por %p187, %p188
      %p190 = scmp.ne.s32.totalorder %s182, %s184
      %p191 = scmp.eq.s32.totalorder %s22, 1
      %p192 = por %p190, %p191
      %p193 = scmp.ne.s32.totalorder %s184, %s185
      %p194 = scmp.eq.s32.totalorder %s22, 0
      %p195 = por %p193, %p194
      %p196 = scmp.ne.s32.totalorder %s184, %s185
      %p197 = scmp.eq.s32.totalorder %s23, 1
      %p198 = por %p196, %p197
      %p200 = scmp.ne.s32.totalorder %s185, %s199
      %p201 = scmp.eq.s32.totalorder %s23, 0
      %p202 = por %p200, %p201
      %s203 = ssub.s32 %s17, %s24
      %p204 = scmp.eq.s32.totalorder %s203, 0
      %s206 = sadd.s32 %s205, 1
      %s207 = scalar_select %p204, %s205, %s206
      %p210 = pneg %p204
      %p211 = scmp.eq.s32.totalorder %s17, 1
      %p212 = por %p210, %p211
      %p213 = scmp.ne.s32.totalorder %s205, %s208
      %p214 = scmp.eq.s32.totalorder %s17, 0
      %p215 = por %p213, %p214
      %p216 = scmp.ne.s32.totalorder %s205, %s208
      %p217 = scmp.eq.s32.totalorder %s22, 1
      %p218 = por %p216, %p217
      %p219 = scmp.ne.s32.totalorder %s208, %s209
      %p220 = scmp.eq.s32.totalorder %s22, 0
      %p221 = por %p219, %p220
      %p222 = scmp.ne.s32.totalorder %s208, %s209
      %p223 = scmp.eq.s32.totalorder %s23, 1
      %p224 = por %p222, %p223
      %p226 = scmp.ne.s32.totalorder %s209, %s225
      %p227 = scmp.eq.s32.totalorder %s23, 0
      %p228 = por %p226, %p227
      %p229 = scmp.le.s32.totalorder 1, %s17
      %p230 = scmp.lt.s32.totalorder %s17, 3
      %p231 = pnand %p229, %p230
      %p232 = pneg %p231
      // Predicated region
      $region9: #{tpu_custom_call.1} parent=5 // pred_check
        _
      $region10: #{tpu_custom_call.1} parent=5 // pred_check_branch
        %234 = sbr.rel (%p231) target = $region12
      $region11: #{tpu_custom_call.1} parent=5 // pred_region
        %s235 = ssub.s32 %s17, 1
        // Predicated region
        $region13: #{tpu_custom_call.1} parent=11 // pred_check
          %p236 = pneg %p90
        $region14: #{tpu_custom_call.1} parent=11 // pred_check_branch
          %238 = sbr.rel (%p236) target = $region16
        $region15: #{tpu_custom_call.1} parent=11 // pred_region
          _
        $region16: #{tpu_custom_call.1} parent=11 // pred_fallthru
          _
        // Predicated region
        $region17: #{tpu_custom_call.1} parent=11 // pred_check
          %p239 = pneg %p111
        $region18: #{tpu_custom_call.1} parent=11 // pred_check_branch
          %241 = sbr.rel (%p239) target = $region20
        $region19: #{tpu_custom_call.1} parent=11 // pred_region
          _
        $region20: #{tpu_custom_call.1} parent=11 // pred_fallthru
          _
        // Predicated region
        $region21: #{tpu_custom_call.1} parent=11 // pred_check
          %p242 = pneg %p132
        $region22: #{tpu_custom_call.1} parent=11 // pred_check_branch
          %244 = sbr.rel (%p242) target = $region24
        $region23: #{tpu_custom_call.1} parent=11 // pred_region
          _
        $region24: #{tpu_custom_call.1} parent=11 // pred_fallthru
          _
        // Predicated region
        $region25: #{tpu_custom_call.1} parent=11 // pred_check
          %p245 = pneg %p153
        $region26: #{tpu_custom_call.1} parent=11 // pred_check_branch
          %247 = sbr.rel (%p245) target = $region28
        $region27: #{tpu_custom_call.1} parent=11 // pred_region
          _
        $region28: #{tpu_custom_call.1} parent=11 // pred_fallthru
          _
        // Predicated region
        $region29: #{tpu_custom_call.1} parent=11 // pred_check
          %p248 = pneg %p174
        $region30: #{tpu_custom_call.1} parent=11 // pred_check_branch
          %250 = sbr.rel (%p248) target = $region32
        $region31: #{tpu_custom_call.1} parent=11 // pred_region
          _
        $region32: #{tpu_custom_call.1} parent=11 // pred_fallthru
          _
        // Predicated region
        $region33: #{tpu_custom_call.1} parent=11 // pred_check
          %p251 = pneg %p195
        $region34: #{tpu_custom_call.1} parent=11 // pred_check_branch
          %253 = sbr.rel (%p251) target = $region36
        $region35: #{tpu_custom_call.1} parent=11 // pred_region
          _
        $region36: #{tpu_custom_call.1} parent=11 // pred_fallthru
          _
      $region12: #{tpu_custom_call.1} parent=5 // pred_fallthru
        _
      %p254 = scmp.lt.s32.totalorder %s17, 2
      // Predicated region
      $region37: #{tpu_custom_call.1} parent=5 // pred_check
        %p255 = pneg %p254
      $region38: #{tpu_custom_call.1} parent=5 // pred_check_branch
        %257 = sbr.rel (%p255) target = $region40
      $region39: #{tpu_custom_call.1} parent=5 // pred_region
        // Predicated region
        $region41: #{tpu_custom_call.1} parent=39 // pred_check
          %p258 = pneg %p37
        $region42: #{tpu_custom_call.1} parent=39 // pred_check_branch
          %260 = sbr.rel (%p258) target = $region44
        $region43: #{tpu_custom_call.1} parent=39 // pred_region
          %p261 = scmp.lt.s32.totalorder %s17, 1
          %s262 = scalar_select %p261, %s17, 1
          %s263 = smul.addr %s262, 4
          %s264 = smul.addr %s263, 4
          %s265 = scalar_lea.vmem %s0, %s264
        $region44: #{tpu_custom_call.1} parent=39 // pred_fallthru
          _
        // Predicated region
        $region45: #{tpu_custom_call.1} parent=39 // pred_check
          %p266 = pneg %p63
        $region46: #{tpu_custom_call.1} parent=39 // pred_check_branch
          %268 = sbr.rel (%p266) target = $region48
        $region47: #{tpu_custom_call.1} parent=39 // pred_region
          %p269 = scmp.lt.s32.totalorder %s17, 1
          %s270 = scalar_select %p269, %s17, 1
          %s271 = smul.addr %s270, 8
          %s272 = smul.addr %s271, 4
          %s273 = scalar_lea.vmem %s1, %s272
        $region48: #{tpu_custom_call.1} parent=39 // pred_fallthru
          _
      $region40: #{tpu_custom_call.1} parent=5 // pred_fallthru
        _
      %p274 = scmp.le.s32.totalorder 1, %s17
      %p275 = scmp.lt.s32.totalorder %s17, 3
      %p276 = pnand %p274, %p275
      %p277 = pneg %p276
      // Predicated region
      $region49: #{tpu_custom_call.1} parent=5 // pred_check
        _
      $region50: #{tpu_custom_call.1} parent=5 // pred_check_branch
        %279 = sbr.rel (%p276) target = $region52
      $region51: #{tpu_custom_call.1} parent=5 // pred_region
        %s280 = ssub.s32 %s17, 1
        %p281 = scmp.lt.s32.totalorder %s22, 1
        %s282 = scalar_select %p281, %s22, 1
        %s283 = smul.addr %s282, 4
        %s284 = smul.addr %s283, 4
        %s285 = scalar_lea.vmem %s0, %s284
        %p286 = pneg %p43
        %p287 = pneg %p40
        %p288 = scmp.lt.s32.totalorder %s22, 1
        %s289 = scalar_select %p288, %s22, 1
        %s290 = smul.addr %s289, 8
        %s291 = smul.addr %s290, 4
        %s292 = scalar_lea.vmem %s1, %s291
        %p293 = pneg %p69
        %p294 = pneg %p66
        %p295 = pneg %p90
        %p296 = pneg %p87
        %p297 = pneg %p111
        %p298 = pneg %p108
        %p299 = pneg %p132
        %p300 = pneg %p129
        %p301 = pneg %p153
        %p302 = pneg %p150
        %p303 = pneg %p174
        %p304 = pneg %p171
        %p305 = pneg %p195
        %p306 = pneg %p192
        %p307 = pneg %p221
        %p308 = pneg %p218
        %s309 = sand.u32 %s208, 1
        %s310 = scalar_lea.sflag [#allocation3], %s309
        %s311 = sand.u32 %s208, 1
        %s312 = smul.addr %s311, 8
        %s313 = scalar_lea.vmem [#allocation2], %s312
        %p314 = scmp.lt.s32.totalorder %s22, 1
        %s315 = scalar_select %p314, %s22, 1
        %s316 = smul.addr %s315, 4
        %s317 = smul.addr %s316, 4
        %s318 = scalar_lea.vmem %s0, %s317
        %p319 = scmp.lt.s32.totalorder %s22, 1
        %s320 = scalar_select %p319, %s22, 1
        %s321 = smul.addr %s320, 8
        %s322 = smul.addr %s321, 4
        %s323 = scalar_lea.vmem %s1, %s322
        %v325 = vld [vmem:[%s318] sm:$0xf]
        %v326 = vld [vmem:[%s318 + $0x4] sm:$0xf]
        %v327 = vld [vmem:[%s318 + $0x8] sm:$0xf]
        %v328 = vld [vmem:[%s318 + $0xc] sm:$0xf]
        %v329 = vld [vmem:[%s3] sm:$0xf]
        %v334 = vunpack.c.l.b16 %v325
        %v335 = vunpack.c.l.b16 %v326
        %v336 = vunpack.c.l.b16 %v327
        %v337 = vunpack.c.l.b16 %v328
        %v338 = vpack.c.b16 %v335, %v334
        %v339 = vpack.c.b16 %v337, %v336
        %vm340 = vcmask 64512
        %v342 = vsel %vm340, %v338, 0
        %v345 = vsel %vm340, %v339, 0
        %vm347 = vcmask 1043456
        %v349 = vsel %vm347, %v329, 0
        %351 = vmatprep.subr.bf16.mxu0 0
        %352 = vmatpush1.bf16.msra.mxu0 %v349
        %353 = vmatprep.subr.bf16.mxu0 0
        %354 = vmatpush1.bf16.msra.mxu0 0
        %355 = vmatprep.subr.bf16.mxu0 0
        %356 = vmatpush1.bf16.msra.mxu0 0
        %357 = vmatprep.subr.bf16.mxu0 0
        %358 = vmatpush1.bf16.msra.mxu0 0
        %359 = vmatprep.subr.bf16.mxu0 0
        %360 = vmatpush1.bf16.msra.mxu0 0
        %361 = vmatprep.subr.bf16.mxu0 0
        %362 = vmatpush1.bf16.msra.mxu0 0
        %363 = vmatprep.subr.bf16.mxu0 0
        %364 = vmatpush1.bf16.msra.mxu0 0
        %365 = vmatprep.subr.bf16.mxu0 0
        %366 = vmatpush1.bf16.msra.mxu0 0
        %367 = vmatprep.subr.bf16.mxu0 0
        %368 = vmatpush1.bf16.msra.mxu0 0
        %369 = vmatprep.subr.bf16.mxu0 0
        %370 = vmatpush1.bf16.msra.mxu0 0
        %371 = vmatprep.subr.bf16.mxu0 0
        %372 = vmatpush1.bf16.msra.mxu0 0
        %373 = vmatprep.subr.bf16.mxu0 0
        %374 = vmatpush1.bf16.msra.mxu0 0
        %375 = vmatprep.subr.bf16.mxu0 0
        %376 = vmatpush1.bf16.msra.mxu0 0
        %377 = vmatprep.subr.bf16.mxu0 0
        %378 = vmatpush1.bf16.msra.mxu0 0
        %379 = vmatprep.subr.bf16.mxu0 0
        %380 = vmatpush1.bf16.msra.mxu0 0
        %381 = vmatprep.subr.bf16.mxu0 0
        %382 = vmatpush1.bf16.msra.mxu0 0
        %383 = vmatprep.mubr.bf16.mxu0 0
        %384 = vmatmul.mubr.bf16.gmra.mrb[0].mxu0 %v342
        %v385 = vpop.f32.mrb[0].mxu0
        %v386 = vadd.f32 0.0, %v385
        %v387 = vpop.f32.mrb[0].mxu0
        %v388 = vpop.f32.mrb[0].mxu0
        %v389 = vadd.f32 0.0, %v388
        %v390 = vpop.f32.mrb[0].mxu0
        %391 = vmatprep.mubr.bf16.mxu0 0
        %392 = vmatmul.mubr.bf16.gmra.mrb[0].mxu0 %v345
        %v393 = vpop.f32.mrb[0].mxu0
        %v394 = vadd.f32 0.0, %v393
        %v395 = vpop.f32.mrb[0].mxu0
        %v396 = vpop.f32.mrb[0].mxu0
        %v397 = vadd.f32 0.0, %v396
        %v398 = vpop.f32.mrb[0].mxu0
        %399 = vdwg.mxu0
        %v400 = vpack.c.bf16 %v386, %v386
        %v401 = vpack.c.bf16 %v389, %v389
        %v402 = vpack.c.bf16 %v394, %v394
        %v403 = vpack.c.bf16 %v397, %v397
        %v404 = vld [vmem:[%s2] sm:$0xf]
        %v405 = vld [vmem:[%s2 + $0x4] sm:$0xf]
        %v408 = vunpack.c.l.b16 %v404
        %v409 = vunpack.c.l.b16 %v405
        %v410 = vpack.c.b16 %v409, %v408
        %v412 = vsel %vm340, %v410, 0
        %v415 = vsel %vm347, %v400, 0
        %417 = vmatprep.subr.bf16.mxu0 0
        %418 = vmatpush1.bf16.msra.mxu0 %v415
        %419 = vmatprep.subr.bf16.mxu0 0
        %420 = vmatpush1.bf16.msra.mxu0 0
        %421 = vmatprep.subr.bf16.mxu0 0
        %422 = vmatpush1.bf16.msra.mxu0 0
        %423 = vmatprep.subr.bf16.mxu0 0
        %424 = vmatpush1.bf16.msra.mxu0 0
        %425 = vmatprep.subr.bf16.mxu0 0
        %426 = vmatpush1.bf16.msra.mxu0 0
        %427 = vmatprep.subr.bf16.mxu0 0
        %428 = vmatpush1.bf16.msra.mxu0 0
        %429 = vmatprep.subr.bf16.mxu0 0
        %430 = vmatpush1.bf16.msra.mxu0 0
        %431 = vmatprep.subr.bf16.mxu0 0
        %432 = vmatpush1.bf16.msra.mxu0 0
        %433 = vmatprep.subr.bf16.mxu0 0
        %434 = vmatpush1.bf16.msra.mxu0 0
        %435 = vmatprep.subr.bf16.mxu0 0
        %436 = vmatpush1.bf16.msra.mxu0 0
        %437 = vmatprep.subr.bf16.mxu0 0
        %438 = vmatpush1.bf16.msra.mxu0 0
        %439 = vmatprep.subr.bf16.mxu0 0
        %440 = vmatpush1.bf16.msra.mxu0 0
        %441 = vmatprep.subr.bf16.mxu0 0
        %442 = vmatpush1.bf16.msra.mxu0 0
        %443 = vmatprep.subr.bf16.mxu0 0
        %444 = vmatpush1.bf16.msra.mxu0 0
        %445 = vmatprep.subr.bf16.mxu0 0
        %446 = vmatpush1.bf16.msra.mxu0 0
        %447 = vmatprep.subr.bf16.mxu0 0
        %448 = vmatpush1.bf16.msra.mxu0 0
        %449 = vmatprep.mubr.bf16.mxu0 0
        %450 = vmatmul.mubr.bf16.gmra.mrb[0].mxu0 %v412
        %v451 = vpop.f32.mrb[0].mxu0
        %v452 = vadd.f32 0.0, %v451
        %v453 = vpop.f32.mrb[0].mxu0
        %v454 = vpop.f32.mrb[0].mxu0
        %v455 = vadd.f32 0.0, %v454
        %v456 = vpop.f32.mrb[0].mxu0
        %457 = vdwg.mxu0
        %v459 = vsel %vm347, %v401, 0
        %461 = vmatprep.subr.bf16.mxu0 0
        %462 = vmatpush1.bf16.msra.mxu0 %v459
        %463 = vmatprep.subr.bf16.mxu0 0
        %464 = vmatpush1.bf16.msra.mxu0 0
        %465 = vmatprep.subr.bf16.mxu0 0
        %466 = vmatpush1.bf16.msra.mxu0 0
        %467 = vmatprep.subr.bf16.mxu0 0
        %468 = vmatpush1.bf16.msra.mxu0 0
        %469 = vmatprep.subr.bf16.mxu0 0
        %470 = vmatpush1.bf16.msra.mxu0 0
        %471 = vmatprep.subr.bf16.mxu0 0
        %472 = vmatpush1.bf16.msra.mxu0 0
        %473 = vmatprep.subr.bf16.mxu0 0
        %474 = vmatpush1.bf16.msra.mxu0 0
        %475 = vmatprep.subr.bf16.mxu0 0
        %476 = vmatpush1.bf16.msra.mxu0 0
        %477 = vmatprep.subr.bf16.mxu0 0
        %478 = vmatpush1.bf16.msra.mxu0 0
        %479 = vmatprep.subr.bf16.mxu0 0
        %480 = vmatpush1.bf16.msra.mxu0 0
        %481 = vmatprep.subr.bf16.mxu0 0
        %482 = vmatpush1.bf16.msra.mxu0 0
        %483 = vmatprep.subr.bf16.mxu0 0
        %484 = vmatpush1.bf16.msra.mxu0 0
        %485 = vmatprep.subr.bf16.mxu0 0
        %486 = vmatpush1.bf16.msra.mxu0 0
        %487 = vmatprep.subr.bf16.mxu0 0
        %488 = vmatpush1.bf16.msra.mxu0 0
        %489 = vmatprep.subr.bf16.mxu0 0
        %490 = vmatpush1.bf16.msra.mxu0 0
        %491 = vmatprep.subr.bf16.mxu0 0
        %492 = vmatpush1.bf16.msra.mxu0 0
        %493 = vmatprep.mubr.bf16.mxu0 0
        %494 = vmatmul.mubr.bf16.gmra.mrb[0].mxu0 %v412
        %v495 = vpop.f32.mrb[0].mxu0
        %v496 = vadd.f32 0.0, %v495
        %v497 = vpop.f32.mrb[0].mxu0
        %v498 = vpop.f32.mrb[0].mxu0
        %v499 = vadd.f32 0.0, %v498
        %v500 = vpop.f32.mrb[0].mxu0
        %501 = vdwg.mxu0
        %v503 = vsel %vm347, %v402, 0
        %505 = vmatprep.subr.bf16.mxu0 0
        %506 = vmatpush1.bf16.msra.mxu0 %v503
        %507 = vmatprep.subr.bf16.mxu0 0
        %508 = vmatpush1.bf16.msra.mxu0 0
        %509 = vmatprep.subr.bf16.mxu0 0
        %510 = vmatpush1.bf16.msra.mxu0 0
        %511 = vmatprep.subr.bf16.mxu0 0
        %512 = vmatpush1.bf16.msra.mxu0 0
        %513 = vmatprep.subr.bf16.mxu0 0
        %514 = vmatpush1.bf16.msra.mxu0 0
        %515 = vmatprep.subr.bf16.mxu0 0
        %516 = vmatpush1.bf16.msra.mxu0 0
        %517 = vmatprep.subr.bf16.mxu0 0
        %518 = vmatpush1.bf16.msra.mxu0 0
        %519 = vmatprep.subr.bf16.mxu0 0
        %520 = vmatpush1.bf16.msra.mxu0 0
        %521 = vmatprep.subr.bf16.mxu0 0
        %522 = vmatpush1.bf16.msra.mxu0 0
        %523 = vmatprep.subr.bf16.mxu0 0
        %524 = vmatpush1.bf16.msra.mxu0 0
        %525 = vmatprep.subr.bf16.mxu0 0
        %526 = vmatpush1.bf16.msra.mxu0 0
        %527 = vmatprep.subr.bf16.mxu0 0
        %528 = vmatpush1.bf16.msra.mxu0 0
        %529 = vmatprep.subr.bf16.mxu0 0
        %530 = vmatpush1.bf16.msra.mxu0 0
        %531 = vmatprep.subr.bf16.mxu0 0
        %532 = vmatpush1.bf16.msra.mxu0 0
        %533 = vmatprep.subr.bf16.mxu0 0
        %534 = vmatpush1.bf16.msra.mxu0 0
        %535 = vmatprep.subr.bf16.mxu0 0
        %536 = vmatpush1.bf16.msra.mxu0 0
        %537 = vmatprep.mubr.bf16.mxu0 0
        %538 = vmatmul.mubr.bf16.gmra.mrb[0].mxu0 %v412
        %v539 = vpop.f32.mrb[0].mxu0
        %v540 = vadd.f32 0.0, %v539
        %v541 = vpop.f32.mrb[0].mxu0
        %v542 = vpop.f32.mrb[0].mxu0
        %v543 = vadd.f32 0.0, %v542
        %v544 = vpop.f32.mrb[0].mxu0
        %545 = vdwg.mxu0
        %v547 = vsel %vm347, %v403, 0
        %549 = vmatprep.subr.bf16.mxu0 0
        %550 = vmatpush1.bf16.msra.mxu0 %v547
        %551 = vmatprep.subr.bf16.mxu0 0
        %552 = vmatpush1.bf16.msra.mxu0 0
        %553 = vmatprep.subr.bf16.mxu0 0
        %554 = vmatpush1.bf16.msra.mxu0 0
        %555 = vmatprep.subr.bf16.mxu0 0
        %556 = vmatpush1.bf16.msra.mxu0 0
        %557 = vmatprep.subr.bf16.mxu0 0
        %558 = vmatpush1.bf16.msra.mxu0 0
        %559 = vmatprep.subr.bf16.mxu0 0
        %560 = vmatpush1.bf16.msra.mxu0 0
        %561 = vmatprep.subr.bf16.mxu0 0
        %562 = vmatpush1.bf16.msra.mxu0 0
        %563 = vmatprep.subr.bf16.mxu0 0
        %564 = vmatpush1.bf16.msra.mxu0 0
        %565 = vmatprep.subr.bf16.mxu0 0
        %566 = vmatpush1.bf16.msra.mxu0 0
        %567 = vmatprep.subr.bf16.mxu0 0
        %568 = vmatpush1.bf16.msra.mxu0 0
        %569 = vmatprep.subr.bf16.mxu0 0
        %570 = vmatpush1.bf16.msra.mxu0 0
        %571 = vmatprep.subr.bf16.mxu0 0
        %572 = vmatpush1.bf16.msra.mxu0 0
        %573 = vmatprep.subr.bf16.mxu0 0
        %574 = vmatpush1.bf16.msra.mxu0 0
        %575 = vmatprep.subr.bf16.mxu0 0
        %576 = vmatpush1.bf16.msra.mxu0 0
        %577 = vmatprep.subr.bf16.mxu0 0
        %578 = vmatpush1.bf16.msra.mxu0 0
        %579 = vmatprep.subr.bf16.mxu0 0
        %580 = vmatpush1.bf16.msra.mxu0 0
        %581 = vmatprep.mubr.bf16.mxu0 0
        %582 = vmatmul.mubr.bf16.gmra.mrb[0].mxu0 %v412
        %v583 = vpop.f32.mrb[0].mxu0
        %v584 = vadd.f32 0.0, %v583
        %v585 = vpop.f32.mrb[0].mxu0
        %v586 = vpop.f32.mrb[0].mxu0
        %v587 = vadd.f32 0.0, %v586
        %v588 = vpop.f32.mrb[0].mxu0
        %589 = vdwg.mxu0
        %v590 = vpack.c.bf16 %v455, %v452
        %v591 = vpack.c.bf16 %v499, %v496
        %v592 = vpack.c.bf16 %v543, %v540
        %v593 = vpack.c.bf16 %v587, %v584
        %v594 = vld [vmem:[%s323] sm:$0xf]
        %v595 = vld [vmem:[%s323 + $0x4] sm:$0xf]
        %v596 = vld [vmem:[%s323 + $0x8] sm:$0xf]
        %v597 = vld [vmem:[%s323 + $0xc] sm:$0xf]
        %v598 = vld [vmem:[%s323 + $0x10] sm:$0xf]
        %v599 = vld [vmem:[%s323 + $0x14] sm:$0xf]
        %v600 = vld [vmem:[%s323 + $0x18] sm:$0xf]
        %v601 = vld [vmem:[%s323 + $0x1c] sm:$0xf]
        %v606 = vunpack.c.l.b16 %v590
        %v607 = vunpack.c.h.b16 %v590
        %v608 = vunpack.c.l.b16 %v591
        %v609 = vunpack.c.h.b16 %v591
        %v610 = vunpack.c.l.b16 %v592
        %v611 = vunpack.c.h.b16 %v592
        %v612 = vunpack.c.l.b16 %v593
        %v613 = vunpack.c.h.b16 %v593
        %v614 = vpack.c.b16 %v606, %v606
        %v615 = vpack.c.b16 %v607, %v607
        %v616 = vpack.c.b16 %v608, %v608
        %v617 = vpack.c.b16 %v609, %v609
        %v618 = vpack.c.b16 %v610, %v610
        %v619 = vpack.c.b16 %v611, %v611
        %v620 = vpack.c.b16 %v612, %v612
        %v621 = vpack.c.b16 %v613, %v613
        %v630 = vld [vmem:[%s7] sm:$0xf]
        %v639 = vunpack.c.l.b16 %v594
        %v640 = vunpack.c.l.b16 %v595
        %v641 = vunpack.c.l.b16 %v596
        %v642 = vunpack.c.l.b16 %v597
        %v643 = vunpack.c.l.b16 %v598
        %v644 = vunpack.c.l.b16 %v599
        %v645 = vunpack.c.l.b16 %v600
        %v646 = vunpack.c.l.b16 %v601
        %v647 = vpack.c.b16 %v640, %v639
        %v648 = vpack.c.b16 %v642, %v641
        %v649 = vpack.c.b16 %v644, %v643
        %v650 = vpack.c.b16 %v646, %v645
        %v651 = vpack.c.b16 %v607, %v606
        %v652 = vpack.c.b16 %v609, %v608
        %v653 = vpack.c.b16 %v611, %v610
        %v654 = vpack.c.b16 %v613, %v612
        %655 = vrot.lane.b32.xlu0 %v647, 1
        %v656 = vpop.permute.xlu0 %655
        %657 = vrot.lane.b32.xlu0 %v648, 1
        %v658 = vpop.permute.xlu0 %657
        %659 = vrot.lane.b32.xlu0 %v649, 1
        %v660 = vpop.permute.xlu0 %659
        %661 = vrot.lane.b32.xlu0 %v650, 1
        %v662 = vpop.permute.xlu0 %661
        %663 = vrot.lane.b32.xlu0 %v651, 1
        %v664 = vpop.permute.xlu0 %663
        %665 = vrot.lane.b32.xlu0 %v652, 1
        %v666 = vpop.permute.xlu0 %665
        %667 = vrot.lane.b32.xlu0 %v653, 1
        %v668 = vpop.permute.xlu0 %667
        %669 = vrot.lane.b32.xlu0 %v654, 1
        %v670 = vpop.permute.xlu0 %669
        %vm671 = vcmask 7168
        %v674 = vsel %vm671, 0, %v656
        %v676 = vsel %vm671, 0, %v658
        %v678 = vsel %vm671, 0, %v660
        %v680 = vsel %vm671, 0, %v662
        %v682 = vsel %vm671, 0, %v664
        %v684 = vsel %vm671, 0, %v666
        %v686 = vsel %vm671, 0, %v668
        %v688 = vsel %vm671, 0, %v670
        %vm689 = vcmask 138240
        %v690 = vsel %vm689, %v674, 0
        %v691 = vsel %vm689, %v676, 0
        %v692 = vsel %vm689, %v678, 0
        %v693 = vsel %vm689, %v680, 0
        %v694 = vsel %vm689, %v682, 0
        %v695 = vsel %vm689, %v684, 0
        %v696 = vsel %vm689, %v686, 0
        %v697 = vsel %vm689, %v688, 0
        %v698 = vshrl.u32 %v690, 16
        %v700 = vrot.slane %v698, 7
        %v701 = vshll.u32 %v690, 16
        %v703 = vor.u32 %v700, %v701
        %v704 = vshrl.u32 %v691, 16
        %v706 = vrot.slane %v704, 7
        %v707 = vshll.u32 %v691, 16
        %v709 = vor.u32 %v706, %v707
        %v710 = vshrl.u32 %v692, 16
        %v712 = vrot.slane %v710, 7
        %v713 = vshll.u32 %v692, 16
        %v715 = vor.u32 %v712, %v713
        %v716 = vshrl.u32 %v693, 16
        %v718 = vrot.slane %v716, 7
        %v719 = vshll.u32 %v693, 16
        %v721 = vor.u32 %v718, %v719
        %v722 = vshrl.u32 %v694, 16
        %v724 = vrot.slane %v722, 7
        %v725 = vshll.u32 %v694, 16
        %v727 = vor.u32 %v724, %v725
        %v728 = vshrl.u32 %v695, 16
        %v730 = vrot.slane %v728, 7
        %v731 = vshll.u32 %v695, 16
        %v733 = vor.u32 %v730, %v731
        %v734 = vshrl.u32 %v696, 16
        %v736 = vrot.slane %v734, 7
        %v737 = vshll.u32 %v696, 16
        %v739 = vor.u32 %v736, %v737
        %v740 = vshrl.u32 %v697, 16
        %v742 = vrot.slane %v740, 7
        %v743 = vshll.u32 %v697, 16
        %v745 = vor.u32 %v742, %v743
        %vm762 = vcmask 1040384
        %vm763 = vsmask.f32 256
        %vm764 = vmand %vm762, %vm763
        %v765 = vsel %vm764, 0, %v703
        %v766 = vsel %vm764, 0, %v709
        %v767 = vsel %vm764, 0, %v715
        %v768 = vsel %vm764, 0, %v721
        %v769 = vsel %vm764, 0, %v727
        %v770 = vsel %vm764, 0, %v733
        %v771 = vsel %vm764, 0, %v739
        %v772 = vsel %vm764, 0, %v745
        %v773 = vsel %vm764, %v700, 0
        %v774 = vsel %vm764, %v706, 0
        %v775 = vsel %vm764, %v712, 0
        %v776 = vsel %vm764, %v718, 0
        %v777 = vsel %vm764, %v724, 0
        %v778 = vsel %vm764, %v730, 0
        %v779 = vsel %vm764, %v736, 0
        %v780 = vsel %vm764, %v742, 0
        %v781 = vld [vmem:[%s4] sm:$0x3]
        %v784 = vpack.i.b16 %v766, %v765
        %v786 = vshrl.u32 %v765, 16
        %v787 = vshrl.u32 %v766, 16
        %v788 = vpack.i.b16 %v787, %v786
        %v792 = vpack.i.b16 %v768, %v767
        %v794 = vshrl.u32 %v767, 16
        %v795 = vshrl.u32 %v768, 16
        %v796 = vpack.i.b16 %v795, %v794
        %v800 = vpack.i.b16 %v770, %v769
        %v802 = vshrl.u32 %v769, 16
        %v803 = vshrl.u32 %v770, 16
        %v804 = vpack.i.b16 %v803, %v802
        %v808 = vpack.i.b16 %v772, %v771
        %v810 = vshrl.u32 %v771, 16
        %v811 = vshrl.u32 %v772, 16
        %v812 = vpack.i.b16 %v811, %v810
        %v814 = vcombine.low %v784, %v800
        %v815 = vcombine.high %v784, %v800
        %v817 = vunpack.c.l.s4 1983009808
        %v818 = vunpack.c.0.s8 %v817
        %v819 = vlaneseq
        %v820 = vshrl.u32 %v819, 7
        %v821 = vsub.s32 %v818, %v820
        %v822 = vrot.slane %v814, %v821
        %v824 = vunpack.c.l.s4 1983009808
        %v825 = vunpack.c.0.s8 %v824
        %v826 = vlaneseq
        %v827 = vshrl.u32 %v826, 7
        %v828 = vsub.s32 %v825, %v827
        %v829 = vrot.slane %v815, %v828
        %v830 = vcombine.low %v792, %v808
        %v831 = vcombine.high %v792, %v808
        %v833 = vunpack.c.l.s4 1983009808
        %v834 = vunpack.c.0.s8 %v833
        %v835 = vlaneseq
        %v836 = vshrl.u32 %v835, 7
        %v837 = vsub.s32 %v834, %v836
        %v838 = vrot.slane %v830, %v837
        %v840 = vunpack.c.l.s4 1983009808
        %v841 = vunpack.c.0.s8 %v840
        %v842 = vlaneseq
        %v843 = vshrl.u32 %v842, 7
        %v844 = vsub.s32 %v841, %v843
        %v845 = vrot.slane %v831, %v844
        %v846 = vcombine.low %v822, %v838
        %v847 = vcombine.high %v822, %v838
        %v849 = vunpack.c.l.s4 1934713408
        %v850 = vunpack.c.0.s8 %v849
        %v851 = vlaneseq
        %v852 = vshrl.u32 %v851, 7
        %v853 = vsub.s32 %v850, %v852
        %v854 = vrot.slane %v846, %v853
        %v856 = vunpack.c.l.s4 1934713408
        %v857 = vunpack.c.0.s8 %v856
        %v858 = vlaneseq
        %v859 = vshrl.u32 %v858, 7
        %v860 = vsub.s32 %v857, %v859
        %v861 = vrot.slane %v847, %v860
        %v862 = vcombine.low %v829, %v845
        %v863 = vcombine.high %v829, %v845
        %v865 = vunpack.c.l.s4 1934713408
        %v866 = vunpack.c.0.s8 %v865
        %v867 = vlaneseq
        %v868 = vshrl.u32 %v867, 7
        %v869 = vsub.s32 %v866, %v868
        %v870 = vrot.slane %v862, %v869
        %v872 = vunpack.c.l.s4 1934713408
        %v873 = vunpack.c.0.s8 %v872
        %v874 = vlaneseq
        %v875 = vshrl.u32 %v874, 7
        %v876 = vsub.s32 %v873, %v875
        %v877 = vrot.slane %v863, %v876
        %v878 = vcombine.high %v854, 0
        %v879 = vcombine.high %v861, 0
        %v880 = vcombine.high %v870, 0
        %v881 = vcombine.high %v877, 0
        %v882 = vcombine.low %v788, %v804
        %v883 = vcombine.high %v788, %v804
        %v885 = vunpack.c.l.s4 1983009808
        %v886 = vunpack.c.0.s8 %v885
        %v887 = vlaneseq
        %v888 = vshrl.u32 %v887, 7
        %v889 = vsub.s32 %v886, %v888
        %v890 = vrot.slane %v882, %v889
        %v892 = vunpack.c.l.s4 1983009808
        %v893 = vunpack.c.0.s8 %v892
        %v894 = vlaneseq
        %v895 = vshrl.u32 %v894, 7
        %v896 = vsub.s32 %v893, %v895
        %v897 = vrot.slane %v883, %v896
        %v898 = vcombine.low %v796, %v812
        %v899 = vcombine.high %v796, %v812
        %v901 = vunpack.c.l.s4 1983009808
        %v902 = vunpack.c.0.s8 %v901
        %v903 = vlaneseq
        %v904 = vshrl.u32 %v903, 7
        %v905 = vsub.s32 %v902, %v904
        %v906 = vrot.slane %v898, %v905
        %v908 = vunpack.c.l.s4 1983009808
        %v909 = vunpack.c.0.s8 %v908
        %v910 = vlaneseq
        %v911 = vshrl.u32 %v910, 7
        %v912 = vsub.s32 %v909, %v911
        %v913 = vrot.slane %v899, %v912
        %v914 = vcombine.low %v890, %v906
        %v915 = vcombine.high %v890, %v906
        %v917 = vunpack.c.l.s4 1934713408
        %v918 = vunpack.c.0.s8 %v917
        %v919 = vlaneseq
        %v920 = vshrl.u32 %v919, 7
        %v921 = vsub.s32 %v918, %v920
        %v922 = vrot.slane %v914, %v921
        %v924 = vunpack.c.l.s4 1934713408
        %v925 = vunpack.c.0.s8 %v924
        %v926 = vlaneseq
        %v927 = vshrl.u32 %v926, 7
        %v928 = vsub.s32 %v925, %v927
        %v929 = vrot.slane %v915, %v928
        %v930 = vcombine.low %v897, %v913
        %v931 = vcombine.high %v897, %v913
        %v933 = vunpack.c.l.s4 1934713408
        %v934 = vunpack.c.0.s8 %v933
        %v935 = vlaneseq
        %v936 = vshrl.u32 %v935, 7
        %v937 = vsub.s32 %v934, %v936
        %v938 = vrot.slane %v930, %v937
        %v940 = vunpack.c.l.s4 1934713408
        %v941 = vunpack.c.0.s8 %v940
        %v942 = vlaneseq
        %v943 = vshrl.u32 %v942, 7
        %v944 = vsub.s32 %v941, %v943
        %v945 = vrot.slane %v931, %v944
        %v946 = vcombine.high %v922, 0
        %v947 = vcombine.high %v929, 0
        %v948 = vcombine.high %v938, 0
        %v949 = vcombine.high %v945, 0
        %951 = vrot.lane.b32.xlu0 %v922, 16
        %v952 = vpop.permute.xlu0 %951
        %954 = vrot.lane.b32.xlu0 %v878, 32
        %v955 = vpop.permute.xlu0 %954
        %957 = vrot.lane.b32.xlu0 %v946, 48
        %v958 = vpop.permute.xlu0 %957
        %960 = vrot.lane.b32.xlu0 %v861, 64
        %v961 = vpop.permute.xlu0 %960
        %963 = vrot.lane.b32.xlu0 %v929, 80
        %v964 = vpop.permute.xlu0 %963
        %966 = vrot.lane.b32.xlu0 %v879, 96
        %v967 = vpop.permute.xlu0 %966
        %969 = vrot.lane.b32.xlu0 %v947, 112
        %v970 = vpop.permute.xlu0 %969
        %972 = vrot.lane.b32.xlu0 %v938, 16
        %v973 = vpop.permute.xlu0 %972
        %975 = vrot.lane.b32.xlu0 %v880, 32
        %v976 = vpop.permute.xlu0 %975
        %978 = vrot.lane.b32.xlu0 %v948, 48
        %v979 = vpop.permute.xlu0 %978
        %981 = vrot.lane.b32.xlu0 %v877, 64
        %v982 = vpop.permute.xlu0 %981
        %984 = vrot.lane.b32.xlu0 %v945, 80
        %v985 = vpop.permute.xlu0 %984
        %987 = vrot.lane.b32.xlu0 %v881, 96
        %v988 = vpop.permute.xlu0 %987
        %990 = vrot.lane.b32.xlu0 %v949, 112
        %v991 = vpop.permute.xlu0 %990
        %vm992 = vcmask 130048
        %v995 = vsel %vm992, %v854, %v952
        %vm996 = vcmask 261120
        %v998 = vsel %vm996, %v995, %v955
        %vm999 = vcmask 392192
        %v1001 = vsel %vm999, %v998, %v958
        %vm1002 = vcmask 523264
        %v1004 = vsel %vm1002, %v1001, %v961
        %vm1005 = vcmask 654336
        %v1007 = vsel %vm1005, %v1004, %v964
        %vm1008 = vcmask 785408
        %v1010 = vsel %vm1008, %v1007, %v967
        %vm1011 = vcmask 916480
        %v1013 = vsel %vm1011, %v1010, %v970
        %v1016 = vsel %vm992, %v870, %v973
        %v1018 = vsel %vm996, %v1016, %v976
        %v1020 = vsel %vm999, %v1018, %v979
        %v1022 = vsel %vm1002, %v1020, %v982
        %v1024 = vsel %vm1005, %v1022, %v985
        %v1026 = vsel %vm1008, %v1024, %v988
        %v1028 = vsel %vm1011, %v1026, %v991
        %1037 = vrot.lane.b32.xlu0 %v765, 127
        %v1038 = vpop.permute.xlu0 %1037
        %1039 = vrot.lane.b32.xlu0 %v766, 127
        %v1040 = vpop.permute.xlu0 %1039
        %1041 = vrot.lane.b32.xlu0 %v767, 127
        %v1042 = vpop.permute.xlu0 %1041
        %1043 = vrot.lane.b32.xlu0 %v768, 127
        %v1044 = vpop.permute.xlu0 %1043
        %1045 = vrot.lane.b32.xlu0 %v769, 127
        %v1046 = vpop.permute.xlu0 %1045
        %1047 = vrot.lane.b32.xlu0 %v770, 127
        %v1048 = vpop.permute.xlu0 %1047
        %1049 = vrot.lane.b32.xlu0 %v771, 127
        %v1050 = vpop.permute.xlu0 %1049
        %1051 = vrot.lane.b32.xlu0 %v772, 127
        %v1052 = vpop.permute.xlu0 %1051
        %v1055 = vpack.i.b16 %v1040, %v1038
        %v1057 = vshrl.u32 %v1038, 16
        %v1058 = vshrl.u32 %v1040, 16
        %v1059 = vpack.i.b16 %v1058, %v1057
        %v1063 = vpack.i.b16 %v1044, %v1042
        %v1065 = vshrl.u32 %v1042, 16
        %v1066 = vshrl.u32 %v1044, 16
        %v1067 = vpack.i.b16 %v1066, %v1065
        %v1071 = vpack.i.b16 %v1048, %v1046
        %v1073 = vshrl.u32 %v1046, 16
        %v1074 = vshrl.u32 %v1048, 16
        %v1075 = vpack.i.b16 %v1074, %v1073
        %v1079 = vpack.i.b16 %v1052, %v1050
        %v1081 = vshrl.u32 %v1050, 16
        %v1082 = vshrl.u32 %v1052, 16
        %v1083 = vpack.i.b16 %v1082, %v1081
        %v1085 = vcombine.low %v1055, %v1071
        %v1086 = vcombine.high %v1055, %v1071
        %v1088 = vunpack.c.l.s4 1983009808
        %v1089 = vunpack.c.0.s8 %v1088
        %v1090 = vlaneseq
        %v1091 = vshrl.u32 %v1090, 7
        %v1092 = vsub.s32 %v1089, %v1091
        %v1093 = vrot.slane %v1085, %v1092
        %v1095 = vunpack.c.l.s4 1983009808
        %v1096 = vunpack.c.0.s8 %v1095
        %v1097 = vlaneseq
        %v1098 = vshrl.u32 %v1097, 7
        %v1099 = vsub.s32 %v1096, %v1098
        %v1100 = vrot.slane %v1086, %v1099
        %v1101 = vcombine.low %v1063, %v1079
        %v1102 = vcombine.high %v1063, %v1079
        %v1104 = vunpack.c.l.s4 1983009808
        %v1105 = vunpack.c.0.s8 %v1104
        %v1106 = vlaneseq
        %v1107 = vshrl.u32 %v1106, 7
        %v1108 = vsub.s32 %v1105, %v1107
        %v1109 = vrot.slane %v1101, %v1108
        %v1111 = vunpack.c.l.s4 1983009808
        %v1112 = vunpack.c.0.s8 %v1111
        %v1113 = vlaneseq
        %v1114 = vshrl.u32 %v1113, 7
        %v1115 = vsub.s32 %v1112, %v1114
        %v1116 = vrot.slane %v1102, %v1115
        %v1117 = vcombine.low %v1093, %v1109
        %v1118 = vcombine.high %v1093, %v1109
        %v1120 = vunpack.c.l.s4 1934713408
        %v1121 = vunpack.c.0.s8 %v1120
        %v1122 = vlaneseq
        %v1123 = vshrl.u32 %v1122, 7
        %v1124 = vsub.s32 %v1121, %v1123
        %v1125 = vrot.slane %v1117, %v1124
        %v1127 = vunpack.c.l.s4 1934713408
        %v1128 = vunpack.c.0.s8 %v1127
        %v1129 = vlaneseq
        %v1130 = vshrl.u32 %v1129, 7
        %v1131 = vsub.s32 %v1128, %v1130
        %v1132 = vrot.slane %v1118, %v1131
        %v1133 = vcombine.low %v1100, %v1116
        %v1134 = vcombine.high %v1100, %v1116
        %v1136 = vunpack.c.l.s4 1934713408
        %v1137 = vunpack.c.0.s8 %v1136
        %v1138 = vlaneseq
        %v1139 = vshrl.u32 %v1138, 7
        %v1140 = vsub.s32 %v1137, %v1139
        %v1141 = vrot.slane %v1133, %v1140
        %v1143 = vunpack.c.l.s4 1934713408
        %v1144 = vunpack.c.0.s8 %v1143
        %v1145 = vlaneseq
        %v1146 = vshrl.u32 %v1145, 7
        %v1147 = vsub.s32 %v1144, %v1146
        %v1148 = vrot.slane %v1134, %v1147
        %v1149 = vcombine.high %v1125, 0
        %v1150 = vcombine.high %v1132, 0
        %v1151 = vcombine.high %v1141, 0
        %v1152 = vcombine.high %v1148, 0
        %v1153 = vcombine.low %v1059, %v1075
        %v1154 = vcombine.high %v1059, %v1075
        %v1156 = vunpack.c.l.s4 1983009808
        %v1157 = vunpack.c.0.s8 %v1156
        %v1158 = vlaneseq
        %v1159 = vshrl.u32 %v1158, 7
        %v1160 = vsub.s32 %v1157, %v1159
        %v1161 = vrot.slane %v1153, %v1160
        %v1163 = vunpack.c.l.s4 1983009808
        %v1164 = vunpack.c.0.s8 %v1163
        %v1165 = vlaneseq
        %v1166 = vshrl.u32 %v1165, 7
        %v1167 = vsub.s32 %v1164, %v1166
        %v1168 = vrot.slane %v1154, %v1167
        %v1169 = vcombine.low %v1067, %v1083
        %v1170 = vcombine.high %v1067, %v1083
        %v1172 = vunpack.c.l.s4 1983009808
        %v1173 = vunpack.c.0.s8 %v1172
        %v1174 = vlaneseq
        %v1175 = vshrl.u32 %v1174, 7
        %v1176 = vsub.s32 %v1173, %v1175
        %v1177 = vrot.slane %v1169, %v1176
        %v1179 = vunpack.c.l.s4 1983009808
        %v1180 = vunpack.c.0.s8 %v1179
        %v1181 = vlaneseq
        %v1182 = vshrl.u32 %v1181, 7
        %v1183 = vsub.s32 %v1180, %v1182
        %v1184 = vrot.slane %v1170, %v1183
        %v1185 = vcombine.low %v1161, %v1177
        %v1186 = vcombine.high %v1161, %v1177
        %v1188 = vunpack.c.l.s4 1934713408
        %v1189 = vunpack.c.0.s8 %v1188
        %v1190 = vlaneseq
        %v1191 = vshrl.u32 %v1190, 7
        %v1192 = vsub.s32 %v1189, %v1191
        %v1193 = vrot.slane %v1185, %v1192
        %v1195 = vunpack.c.l.s4 1934713408
        %v1196 = vunpack.c.0.s8 %v1195
        %v1197 = vlaneseq
        %v1198 = vshrl.u32 %v1197, 7
        %v1199 = vsub.s32 %v1196, %v1198
        %v1200 = vrot.slane %v1186, %v1199
        %v1201 = vcombine.low %v1168, %v1184
        %v1202 = vcombine.high %v1168, %v1184
        %v1204 = vunpack.c.l.s4 1934713408
        %v1205 = vunpack.c.0.s8 %v1204
        %v1206 = vlaneseq
        %v1207 = vshrl.u32 %v1206, 7
        %v1208 = vsub.s32 %v1205, %v1207
        %v1209 = vrot.slane %v1201, %v1208
        %v1211 = vunpack.c.l.s4 1934713408
        %v1212 = vunpack.c.0.s8 %v1211
        %v1213 = vlaneseq
        %v1214 = vshrl.u32 %v1213, 7
        %v1215 = vsub.s32 %v1212, %v1214
        %v1216 = vrot.slane %v1202, %v1215
        %v1217 = vcombine.high %v1193, 0
        %v1218 = vcombine.high %v1200, 0
        %v1219 = vcombine.high %v1209, 0
        %v1220 = vcombine.high %v1216, 0
        %1222 = vrot.lane.b32.xlu0 %v1193, 16
        %v1223 = vpop.permute.xlu0 %1222
        %1225 = vrot.lane.b32.xlu0 %v1149, 32
        %v1226 = vpop.permute.xlu0 %1225
        %1228 = vrot.lane.b32.xlu0 %v1217, 48
        %v1229 = vpop.permute.xlu0 %1228
        %1231 = vrot.lane.b32.xlu0 %v1132, 64
        %v1232 = vpop.permute.xlu0 %1231
        %1234 = vrot.lane.b32.xlu0 %v1200, 80
        %v1235 = vpop.permute.xlu0 %1234
        %1237 = vrot.lane.b32.xlu0 %v1150, 96
        %v1238 = vpop.permute.xlu0 %1237
        %1240 = vrot.lane.b32.xlu0 %v1218, 112
        %v1241 = vpop.permute.xlu0 %1240
        %1243 = vrot.lane.b32.xlu0 %v1209, 16
        %v1244 = vpop.permute.xlu0 %1243
        %1246 = vrot.lane.b32.xlu0 %v1151, 32
        %v1247 = vpop.permute.xlu0 %1246
        %1249 = vrot.lane.b32.xlu0 %v1219, 48
        %v1250 = vpop.permute.xlu0 %1249
        %1252 = vrot.lane.b32.xlu0 %v1148, 64
        %v1253 = vpop.permute.xlu0 %1252
        %1255 = vrot.lane.b32.xlu0 %v1216, 80
        %v1256 = vpop.permute.xlu0 %1255
        %1258 = vrot.lane.b32.xlu0 %v1152, 96
        %v1259 = vpop.permute.xlu0 %1258
        %1261 = vrot.lane.b32.xlu0 %v1220, 112
        %v1262 = vpop.permute.xlu0 %1261
        %v1265 = vsel %vm992, %v1125, %v1223
        %v1267 = vsel %vm996, %v1265, %v1226
        %v1269 = vsel %vm999, %v1267, %v1229
        %v1271 = vsel %vm1002, %v1269, %v1232
        %v1273 = vsel %vm1005, %v1271, %v1235
        %v1275 = vsel %vm1008, %v1273, %v1238
        %v1277 = vsel %vm1011, %v1275, %v1241
        %v1280 = vsel %vm992, %v1141, %v1244
        %v1282 = vsel %vm996, %v1280, %v1247
        %v1284 = vsel %vm999, %v1282, %v1250
        %v1286 = vsel %vm1002, %v1284, %v1253
        %v1288 = vsel %vm1005, %v1286, %v1256
        %v1290 = vsel %vm1008, %v1288, %v1259
        %v1292 = vsel %vm1011, %v1290, %v1262
        %1293 = vrot.lane.b32.xlu0 %v765, 126
        %v1294 = vpop.permute.xlu0 %1293
        %1295 = vrot.lane.b32.xlu0 %v766, 126
        %v1296 = vpop.permute.xlu0 %1295
        %1297 = vrot.lane.b32.xlu0 %v767, 126
        %v1298 = vpop.permute.xlu0 %1297
        %1299 = vrot.lane.b32.xlu0 %v768, 126
        %v1300 = vpop.permute.xlu0 %1299
        %1301 = vrot.lane.b32.xlu0 %v769, 126
        %v1302 = vpop.permute.xlu0 %1301
        %1303 = vrot.lane.b32.xlu0 %v770, 126
        %v1304 = vpop.permute.xlu0 %1303
        %1305 = vrot.lane.b32.xlu0 %v771, 126
        %v1306 = vpop.permute.xlu0 %1305
        %1307 = vrot.lane.b32.xlu0 %v772, 126
        %v1308 = vpop.permute.xlu0 %1307
        %v1311 = vpack.i.b16 %v1296, %v1294
        %v1313 = vshrl.u32 %v1294, 16
        %v1314 = vshrl.u32 %v1296, 16
        %v1315 = vpack.i.b16 %v1314, %v1313
        %v1319 = vpack.i.b16 %v1300, %v1298
        %v1321 = vshrl.u32 %v1298, 16
        %v1322 = vshrl.u32 %v1300, 16
        %v1323 = vpack.i.b16 %v1322, %v1321
        %v1327 = vpack.i.b16 %v1304, %v1302
        %v1329 = vshrl.u32 %v1302, 16
        %v1330 = vshrl.u32 %v1304, 16
        %v1331 = vpack.i.b16 %v1330, %v1329
        %v1335 = vpack.i.b16 %v1308, %v1306
        %v1337 = vshrl.u32 %v1306, 16
        %v1338 = vshrl.u32 %v1308, 16
        %v1339 = vpack.i.b16 %v1338, %v1337
        %v1341 = vcombine.low %v1311, %v1327
        %v1342 = vcombine.high %v1311, %v1327
        %v1344 = vunpack.c.l.s4 1983009808
        %v1345 = vunpack.c.0.s8 %v1344
        %v1346 = vlaneseq
        %v1347 = vshrl.u32 %v1346, 7
        %v1348 = vsub.s32 %v1345, %v1347
        %v1349 = vrot.slane %v1341, %v1348
        %v1351 = vunpack.c.l.s4 1983009808
        %v1352 = vunpack.c.0.s8 %v1351
        %v1353 = vlaneseq
        %v1354 = vshrl.u32 %v1353, 7
        %v1355 = vsub.s32 %v1352, %v1354
        %v1356 = vrot.slane %v1342, %v1355
        %v1357 = vcombine.low %v1319, %v1335
        %v1358 = vcombine.high %v1319, %v1335
        %v1360 = vunpack.c.l.s4 1983009808
        %v1361 = vunpack.c.0.s8 %v1360
        %v1362 = vlaneseq
        %v1363 = vshrl.u32 %v1362, 7
        %v1364 = vsub.s32 %v1361, %v1363
        %v1365 = vrot.slane %v1357, %v1364
        %v1367 = vunpack.c.l.s4 1983009808
        %v1368 = vunpack.c.0.s8 %v1367
        %v1369 = vlaneseq
        %v1370 = vshrl.u32 %v1369, 7
        %v1371 = vsub.s32 %v1368, %v1370
        %v1372 = vrot.slane %v1358, %v1371
        %v1373 = vcombine.low %v1349, %v1365
        %v1374 = vcombine.high %v1349, %v1365
        %v1376 = vunpack.c.l.s4 1934713408
        %v1377 = vunpack.c.0.s8 %v1376
        %v1378 = vlaneseq
        %v1379 = vshrl.u32 %v1378, 7
        %v1380 = vsub.s32 %v1377, %v1379
        %v1381 = vrot.slane %v1373, %v1380
        %v1383 = vunpack.c.l.s4 1934713408
        %v1384 = vunpack.c.0.s8 %v1383
        %v1385 = vlaneseq
        %v1386 = vshrl.u32 %v1385, 7
        %v1387 = vsub.s32 %v1384, %v1386
        %v1388 = vrot.slane %v1374, %v1387
        %v1389 = vcombine.low %v1356, %v1372
        %v1390 = vcombine.high %v1356, %v1372
        %v1392 = vunpack.c.l.s4 1934713408
        %v1393 = vunpack.c.0.s8 %v1392
        %v1394 = vlaneseq
        %v1395 = vshrl.u32 %v1394, 7
        %v1396 = vsub.s32 %v1393, %v1395
        %v1397 = vrot.slane %v1389, %v1396
        %v1399 = vunpack.c.l.s4 1934713408
        %v1400 = vunpack.c.0.s8 %v1399
        %v1401 = vlaneseq
        %v1402 = vshrl.u32 %v1401, 7
        %v1403 = vsub.s32 %v1400, %v1402
        %v1404 = vrot.slane %v1390, %v1403
        %v1405 = vcombine.high %v1381, 0
        %v1406 = vcombine.high %v1388, 0
        %v1407 = vcombine.high %v1397, 0
        %v1408 = vcombine.high %v1404, 0
        %v1409 = vcombine.low %v1315, %v1331
        %v1410 = vcombine.high %v1315, %v1331
        %v1412 = vunpack.c.l.s4 1983009808
        %v1413 = vunpack.c.0.s8 %v1412
        %v1414 = vlaneseq
        %v1415 = vshrl.u32 %v1414, 7
        %v1416 = vsub.s32 %v1413, %v1415
        %v1417 = vrot.slane %v1409, %v1416
        %v1419 = vunpack.c.l.s4 1983009808
        %v1420 = vunpack.c.0.s8 %v1419
        %v1421 = vlaneseq
        %v1422 = vshrl.u32 %v1421, 7
        %v1423 = vsub.s32 %v1420, %v1422
        %v1424 = vrot.slane %v1410, %v1423
        %v1425 = vcombine.low %v1323, %v1339
        %v1426 = vcombine.high %v1323, %v1339
        %v1428 = vunpack.c.l.s4 1983009808
        %v1429 = vunpack.c.0.s8 %v1428
        %v1430 = vlaneseq
        %v1431 = vshrl.u32 %v1430, 7
        %v1432 = vsub.s32 %v1429, %v1431
        %v1433 = vrot.slane %v1425, %v1432
        %v1435 = vunpack.c.l.s4 1983009808
        %v1436 = vunpack.c.0.s8 %v1435
        %v1437 = vlaneseq
        %v1438 = vshrl.u32 %v1437, 7
        %v1439 = vsub.s32 %v1436, %v1438
        %v1440 = vrot.slane %v1426, %v1439
        %v1441 = vcombine.low %v1417, %v1433
        %v1442 = vcombine.high %v1417, %v1433
        %v1444 = vunpack.c.l.s4 1934713408
        %v1445 = vunpack.c.0.s8 %v1444
        %v1446 = vlaneseq
        %v1447 = vshrl.u32 %v1446, 7
        %v1448 = vsub.s32 %v1445, %v1447
        %v1449 = vrot.slane %v1441, %v1448
        %v1451 = vunpack.c.l.s4 1934713408
        %v1452 = vunpack.c.0.s8 %v1451
        %v1453 = vlaneseq
        %v1454 = vshrl.u32 %v1453, 7
        %v1455 = vsub.s32 %v1452, %v1454
        %v1456 = vrot.slane %v1442, %v1455
        %v1457 = vcombine.low %v1424, %v1440
        %v1458 = vcombine.high %v1424, %v1440
        %v1460 = vunpack.c.l.s4 1934713408
        %v1461 = vunpack.c.0.s8 %v1460
        %v1462 = vlaneseq
        %v1463 = vshrl.u32 %v1462, 7
        %v1464 = vsub.s32 %v1461, %v1463
        %v1465 = vrot.slane %v1457, %v1464
        %v1467 = vunpack.c.l.s4 1934713408
        %v1468 = vunpack.c.0.s8 %v1467
        %v1469 = vlaneseq
        %v1470 = vshrl.u32 %v1469, 7
        %v1471 = vsub.s32 %v1468, %v1470
        %v1472 = vrot.slane %v1458, %v1471
        %v1473 = vcombine.high %v1449, 0
        %v1474 = vcombine.high %v1456, 0
        %v1475 = vcombine.high %v1465, 0
        %v1476 = vcombine.high %v1472, 0
        %1478 = vrot.lane.b32.xlu0 %v1449, 16
        %v1479 = vpop.permute.xlu0 %1478
        %1481 = vrot.lane.b32.xlu0 %v1405, 32
        %v1482 = vpop.permute.xlu0 %1481
        %1484 = vrot.lane.b32.xlu0 %v1473, 48
        %v1485 = vpop.permute.xlu0 %1484
        %1487 = vrot.lane.b32.xlu0 %v1388, 64
        %v1488 = vpop.permute.xlu0 %1487
        %1490 = vrot.lane.b32.xlu0 %v1456, 80
        %v1491 = vpop.permute.xlu0 %1490
        %1493 = vrot.lane.b32.xlu0 %v1406, 96
        %v1494 = vpop.permute.xlu0 %1493
        %1496 = vrot.lane.b32.xlu0 %v1474, 112
        %v1497 = vpop.permute.xlu0 %1496
        %1499 = vrot.lane.b32.xlu0 %v1465, 16
        %v1500 = vpop.permute.xlu0 %1499
        %1502 = vrot.lane.b32.xlu0 %v1407, 32
        %v1503 = vpop.permute.xlu0 %1502
        %1505 = vrot.lane.b32.xlu0 %v1475, 48
        %v1506 = vpop.permute.xlu0 %1505
        %1508 = vrot.lane.b32.xlu0 %v1404, 64
        %v1509 = vpop.permute.xlu0 %1508
        %1511 = vrot.lane.b32.xlu0 %v1472, 80
        %v1512 = vpop.permute.xlu0 %1511
        %1514 = vrot.lane.b32.xlu0 %v1408, 96
        %v1515 = vpop.permute.xlu0 %1514
        %1517 = vrot.lane.b32.xlu0 %v1476, 112
        %v1518 = vpop.permute.xlu0 %1517
        %v1521 = vsel %vm992, %v1381, %v1479
        %v1523 = vsel %vm996, %v1521, %v1482
        %v1525 = vsel %vm999, %v1523, %v1485
        %v1527 = vsel %vm1002, %v1525, %v1488
        %v1529 = vsel %vm1005, %v1527, %v1491
        %v1531 = vsel %vm1008, %v1529, %v1494
        %v1533 = vsel %vm1011, %v1531, %v1497
        %v1536 = vsel %vm992, %v1397, %v1500
        %v1538 = vsel %vm996, %v1536, %v1503
        %v1540 = vsel %vm999, %v1538, %v1506
        %v1542 = vsel %vm1002, %v1540, %v1509
        %v1544 = vsel %vm1005, %v1542, %v1512
        %v1546 = vsel %vm1008, %v1544, %v1515
        %v1548 = vsel %vm1011, %v1546, %v1518
        %vm1549 = vsmask.f32 7424
        %v1551 = vshll.u32 %v765, 16
        %v1553 = vrot.slane %v1551, 1
        %v1554 = vor.u32 %v786, %v1553
        %v1556 = vshll.u32 %v773, 16
        %v1558 = vrot.slane %v1556, 1
        %v1559 = vsel %vm1549, %v1554, %v1558
        %v1561 = vshll.u32 %v766, 16
        %v1563 = vrot.slane %v1561, 1
        %v1564 = vor.u32 %v787, %v1563
        %v1566 = vshll.u32 %v774, 16
        %v1568 = vrot.slane %v1566, 1
        %v1569 = vsel %vm1549, %v1564, %v1568
        %v1571 = vshll.u32 %v767, 16
        %v1573 = vrot.slane %v1571, 1
        %v1574 = vor.u32 %v794, %v1573
        %v1576 = vshll.u32 %v775, 16
        %v1578 = vrot.slane %v1576, 1
        %v1579 = vsel %vm1549, %v1574, %v1578
        %v1581 = vshll.u32 %v768, 16
        %v1583 = vrot.slane %v1581, 1
        %v1584 = vor.u32 %v795, %v1583
        %v1586 = vshll.u32 %v776, 16
        %v1588 = vrot.slane %v1586, 1
        %v1589 = vsel %vm1549, %v1584, %v1588
        %v1591 = vshll.u32 %v769, 16
        %v1593 = vrot.slane %v1591, 1
        %v1594 = vor.u32 %v802, %v1593
        %v1596 = vshll.u32 %v777, 16
        %v1598 = vrot.slane %v1596, 1
        %v1599 = vsel %vm1549, %v1594, %v1598
        %v1601 = vshll.u32 %v770, 16
        %v1603 = vrot.slane %v1601, 1
        %v1604 = vor.u32 %v803, %v1603
        %v1606 = vshll.u32 %v778, 16
        %v1608 = vrot.slane %v1606, 1
        %v1609 = vsel %vm1549, %v1604, %v1608
        %v1611 = vshll.u32 %v771, 16
        %v1613 = vrot.slane %v1611, 1
        %v1614 = vor.u32 %v810, %v1613
        %v1616 = vshll.u32 %v779, 16
        %v1618 = vrot.slane %v1616, 1
        %v1619 = vsel %vm1549, %v1614, %v1618
        %v1621 = vshll.u32 %v772, 16
        %v1623 = vrot.slane %v1621, 1
        %v1624 = vor.u32 %v811, %v1623
        %v1626 = vshll.u32 %v780, 16
        %v1628 = vrot.slane %v1626, 1
        %v1629 = vsel %vm1549, %v1624, %v1628
        %v1632 = vpack.i.b16 %v1569, %v1559
        %v1634 = vshrl.u32 %v1559, 16
        %v1635 = vshrl.u32 %v1569, 16
        %v1636 = vpack.i.b16 %v1635, %v1634
        %v1640 = vpack.i.b16 %v1589, %v1579
        %v1642 = vshrl.u32 %v1579, 16
        %v1643 = vshrl.u32 %v1589, 16
        %v1644 = vpack.i.b16 %v1643, %v1642
        %v1648 = vpack.i.b16 %v1609, %v1599
        %v1650 = vshrl.u32 %v1599, 16
        %v1651 = vshrl.u32 %v1609, 16
        %v1652 = vpack.i.b16 %v1651, %v1650
        %v1656 = vpack.i.b16 %v1629, %v1619
        %v1658 = vshrl.u32 %v1619, 16
        %v1659 = vshrl.u32 %v1629, 16
        %v1660 = vpack.i.b16 %v1659, %v1658
        %v1662 = vcombine.low %v1632, %v1648
        %v1663 = vcombine.high %v1632, %v1648
        %v1665 = vunpack.c.l.s4 1983009808
        %v1666 = vunpack.c.0.s8 %v1665
        %v1667 = vlaneseq
        %v1668 = vshrl.u32 %v1667, 7
        %v1669 = vsub.s32 %v1666, %v1668
        %v1670 = vrot.slane %v1662, %v1669
        %v1672 = vunpack.c.l.s4 1983009808
        %v1673 = vunpack.c.0.s8 %v1672
        %v1674 = vlaneseq
        %v1675 = vshrl.u32 %v1674, 7
        %v1676 = vsub.s32 %v1673, %v1675
        %v1677 = vrot.slane %v1663, %v1676
        %v1678 = vcombine.low %v1640, %v1656
        %v1679 = vcombine.high %v1640, %v1656
        %v1681 = vunpack.c.l.s4 1983009808
        %v1682 = vunpack.c.0.s8 %v1681
        %v1683 = vlaneseq
        %v1684 = vshrl.u32 %v1683, 7
        %v1685 = vsub.s32 %v1682, %v1684
        %v1686 = vrot.slane %v1678, %v1685
        %v1688 = vunpack.c.l.s4 1983009808
        %v1689 = vunpack.c.0.s8 %v1688
        %v1690 = vlaneseq
        %v1691 = vshrl.u32 %v1690, 7
        %v1692 = vsub.s32 %v1689, %v1691
        %v1693 = vrot.slane %v1679, %v1692
        %v1694 = vcombine.low %v1670, %v1686
        %v1695 = vcombine.high %v1670, %v1686
        %v1697 = vunpack.c.l.s4 1934713408
        %v1698 = vunpack.c.0.s8 %v1697
        %v1699 = vlaneseq
        %v1700 = vshrl.u32 %v1699, 7
        %v1701 = vsub.s32 %v1698, %v1700
        %v1702 = vrot.slane %v1694, %v1701
        %v1704 = vunpack.c.l.s4 1934713408
        %v1705 = vunpack.c.0.s8 %v1704
        %v1706 = vlaneseq
        %v1707 = vshrl.u32 %v1706, 7
        %v1708 = vsub.s32 %v1705, %v1707
        %v1709 = vrot.slane %v1695, %v1708
        %v1710 = vcombine.low %v1677, %v1693
        %v1711 = vcombine.high %v1677, %v1693
        %v1713 = vunpack.c.l.s4 1934713408
        %v1714 = vunpack.c.0.s8 %v1713
        %v1715 = vlaneseq
        %v1716 = vshrl.u32 %v1715, 7
        %v1717 = vsub.s32 %v1714, %v1716
        %v1718 = vrot.slane %v1710, %v1717
        %v1720 = vunpack.c.l.s4 1934713408
        %v1721 = vunpack.c.0.s8 %v1720
        %v1722 = vlaneseq
        %v1723 = vshrl.u32 %v1722, 7
        %v1724 = vsub.s32 %v1721, %v1723
        %v1725 = vrot.slane %v1711, %v1724
        %v1726 = vcombine.high %v1702, 0
        %v1727 = vcombine.high %v1709, 0
        %v1728 = vcombine.high %v1718, 0
        %v1729 = vcombine.high %v1725, 0
        %v1730 = vcombine.low %v1636, %v1652
        %v1731 = vcombine.high %v1636, %v1652
        %v1733 = vunpack.c.l.s4 1983009808
        %v1734 = vunpack.c.0.s8 %v1733
        %v1735 = vlaneseq
        %v1736 = vshrl.u32 %v1735, 7
        %v1737 = vsub.s32 %v1734, %v1736
        %v1738 = vrot.slane %v1730, %v1737
        %v1740 = vunpack.c.l.s4 1983009808
        %v1741 = vunpack.c.0.s8 %v1740
        %v1742 = vlaneseq
        %v1743 = vshrl.u32 %v1742, 7
        %v1744 = vsub.s32 %v1741, %v1743
        %v1745 = vrot.slane %v1731, %v1744
        %v1746 = vcombine.low %v1644, %v1660
        %v1747 = vcombine.high %v1644, %v1660
        %v1749 = vunpack.c.l.s4 1983009808
        %v1750 = vunpack.c.0.s8 %v1749
        %v1751 = vlaneseq
        %v1752 = vshrl.u32 %v1751, 7
        %v1753 = vsub.s32 %v1750, %v1752
        %v1754 = vrot.slane %v1746, %v1753
        %v1756 = vunpack.c.l.s4 1983009808
        %v1757 = vunpack.c.0.s8 %v1756
        %v1758 = vlaneseq
        %v1759 = vshrl.u32 %v1758, 7
        %v1760 = vsub.s32 %v1757, %v1759
        %v1761 = vrot.slane %v1747, %v1760
        %v1762 = vcombine.low %v1738, %v1754
        %v1763 = vcombine.high %v1738, %v1754
        %v1765 = vunpack.c.l.s4 1934713408
        %v1766 = vunpack.c.0.s8 %v1765
        %v1767 = vlaneseq
        %v1768 = vshrl.u32 %v1767, 7
        %v1769 = vsub.s32 %v1766, %v1768
        %v1770 = vrot.slane %v1762, %v1769
        %v1772 = vunpack.c.l.s4 1934713408
        %v1773 = vunpack.c.0.s8 %v1772
        %v1774 = vlaneseq
        %v1775 = vshrl.u32 %v1774, 7
        %v1776 = vsub.s32 %v1773, %v1775
        %v1777 = vrot.slane %v1763, %v1776
        %v1778 = vcombine.low %v1745, %v1761
        %v1779 = vcombine.high %v1745, %v1761
        %v1781 = vunpack.c.l.s4 1934713408
        %v1782 = vunpack.c.0.s8 %v1781
        %v1783 = vlaneseq
        %v1784 = vshrl.u32 %v1783, 7
        %v1785 = vsub.s32 %v1782, %v1784
        %v1786 = vrot.slane %v1778, %v1785
        %v1788 = vunpack.c.l.s4 1934713408
        %v1789 = vunpack.c.0.s8 %v1788
        %v1790 = vlaneseq
        %v1791 = vshrl.u32 %v1790, 7
        %v1792 = vsub.s32 %v1789, %v1791
        %v1793 = vrot.slane %v1779, %v1792
        %v1794 = vcombine.high %v1770, 0
        %v1795 = vcombine.high %v1777, 0
        %v1796 = vcombine.high %v1786, 0
        %v1797 = vcombine.high %v1793, 0
        %1799 = vrot.lane.b32.xlu0 %v1770, 16
        %v1800 = vpop.permute.xlu0 %1799
        %1802 = vrot.lane.b32.xlu0 %v1726, 32
        %v1803 = vpop.permute.xlu0 %1802
        %1805 = vrot.lane.b32.xlu0 %v1794, 48
        %v1806 = vpop.permute.xlu0 %1805
        %1808 = vrot.lane.b32.xlu0 %v1709, 64
        %v1809 = vpop.permute.xlu0 %1808
        %1811 = vrot.lane.b32.xlu0 %v1777, 80
        %v1812 = vpop.permute.xlu0 %1811
        %1814 = vrot.lane.b32.xlu0 %v1727, 96
        %v1815 = vpop.permute.xlu0 %1814
        %1817 = vrot.lane.b32.xlu0 %v1795, 112
        %v1818 = vpop.permute.xlu0 %1817
        %1820 = vrot.lane.b32.xlu0 %v1786, 16
        %v1821 = vpop.permute.xlu0 %1820
        %1823 = vrot.lane.b32.xlu0 %v1728, 32
        %v1824 = vpop.permute.xlu0 %1823
        %1826 = vrot.lane.b32.xlu0 %v1796, 48
        %v1827 = vpop.permute.xlu0 %1826
        %1829 = vrot.lane.b32.xlu0 %v1725, 64
        %v1830 = vpop.permute.xlu0 %1829
        %1832 = vrot.lane.b32.xlu0 %v1793, 80
        %v1833 = vpop.permute.xlu0 %1832
        %1835 = vrot.lane.b32.xlu0 %v1729, 96
        %v1836 = vpop.permute.xlu0 %1835
        %1838 = vrot.lane.b32.xlu0 %v1797, 112
        %v1839 = vpop.permute.xlu0 %1838
        %v1842 = vsel %vm992, %v1702, %v1800
        %v1844 = vsel %vm996, %v1842, %v1803
        %v1846 = vsel %vm999, %v1844, %v1806
        %v1848 = vsel %vm1002, %v1846, %v1809
        %v1850 = vsel %vm1005, %v1848, %v1812
        %v1852 = vsel %vm1008, %v1850, %v1815
        %v1854 = vsel %vm1011, %v1852, %v1818
        %v1857 = vsel %vm992, %v1718, %v1821
        %v1859 = vsel %vm996, %v1857, %v1824
        %v1861 = vsel %vm999, %v1859, %v1827
        %v1863 = vsel %vm1002, %v1861, %v1830
        %v1865 = vsel %vm1005, %v1863, %v1833
        %v1867 = vsel %vm1008, %v1865, %v1836
        %v1869 = vsel %vm1011, %v1867, %v1839
        %1870 = vrot.lane.b32.xlu0 %v1559, 127
        %v1871 = vpop.permute.xlu0 %1870
        %1872 = vrot.lane.b32.xlu0 %v1569, 127
        %v1873 = vpop.permute.xlu0 %1872
        %1874 = vrot.lane.b32.xlu0 %v1579, 127
        %v1875 = vpop.permute.xlu0 %1874
        %1876 = vrot.lane.b32.xlu0 %v1589, 127
        %v1877 = vpop.permute.xlu0 %1876
        %1878 = vrot.lane.b32.xlu0 %v1599, 127
        %v1879 = vpop.permute.xlu0 %1878
        %1880 = vrot.lane.b32.xlu0 %v1609, 127
        %v1881 = vpop.permute.xlu0 %1880
        %1882 = vrot.lane.b32.xlu0 %v1619, 127
        %v1883 = vpop.permute.xlu0 %1882
        %1884 = vrot.lane.b32.xlu0 %v1629, 127
        %v1885 = vpop.permute.xlu0 %1884
        %v1888 = vpack.i.b16 %v1873, %v1871
        %v1890 = vshrl.u32 %v1871, 16
        %v1891 = vshrl.u32 %v1873, 16
        %v1892 = vpack.i.b16 %v1891, %v1890
        %v1896 = vpack.i.b16 %v1877, %v1875
        %v1898 = vshrl.u32 %v1875, 16
        %v1899 = vshrl.u32 %v1877, 16
        %v1900 = vpack.i.b16 %v1899, %v1898
        %v1904 = vpack.i.b16 %v1881, %v1879
        %v1906 = vshrl.u32 %v1879, 16
        %v1907 = vshrl.u32 %v1881, 16
        %v1908 = vpack.i.b16 %v1907, %v1906
        %v1912 = vpack.i.b16 %v1885, %v1883
        %v1914 = vshrl.u32 %v1883, 16
        %v1915 = vshrl.u32 %v1885, 16
        %v1916 = vpack.i.b16 %v1915, %v1914
        %v1918 = vcombine.low %v1888, %v1904
        %v1919 = vcombine.high %v1888, %v1904
        %v1921 = vunpack.c.l.s4 1983009808
        %v1922 = vunpack.c.0.s8 %v1921
        %v1923 = vlaneseq
        %v1924 = vshrl.u32 %v1923, 7
        %v1925 = vsub.s32 %v1922, %v1924
        %v1926 = vrot.slane %v1918, %v1925
        %v1928 = vunpack.c.l.s4 1983009808
        %v1929 = vunpack.c.0.s8 %v1928
        %v1930 = vlaneseq
        %v1931 = vshrl.u32 %v1930, 7
        %v1932 = vsub.s32 %v1929, %v1931
        %v1933 = vrot.slane %v1919, %v1932
        %v1934 = vcombine.low %v1896, %v1912
        %v1935 = vcombine.high %v1896, %v1912
        %v1937 = vunpack.c.l.s4 1983009808
        %v1938 = vunpack.c.0.s8 %v1937
        %v1939 = vlaneseq
        %v1940 = vshrl.u32 %v1939, 7
        %v1941 = vsub.s32 %v1938, %v1940
        %v1942 = vrot.slane %v1934, %v1941
        %v1944 = vunpack.c.l.s4 1983009808
        %v1945 = vunpack.c.0.s8 %v1944
        %v1946 = vlaneseq
        %v1947 = vshrl.u32 %v1946, 7
        %v1948 = vsub.s32 %v1945, %v1947
        %v1949 = vrot.slane %v1935, %v1948
        %v1950 = vcombine.low %v1926, %v1942
        %v1951 = vcombine.high %v1926, %v1942
        %v1953 = vunpack.c.l.s4 1934713408
        %v1954 = vunpack.c.0.s8 %v1953
        %v1955 = vlaneseq
        %v1956 = vshrl.u32 %v1955, 7
        %v1957 = vsub.s32 %v1954, %v1956
        %v1958 = vrot.slane %v1950, %v1957
        %v1960 = vunpack.c.l.s4 1934713408
        %v1961 = vunpack.c.0.s8 %v1960
        %v1962 = vlaneseq
        %v1963 = vshrl.u32 %v1962, 7
        %v1964 = vsub.s32 %v1961, %v1963
        %v1965 = vrot.slane %v1951, %v1964
        %v1966 = vcombine.low %v1933, %v1949
        %v1967 = vcombine.high %v1933, %v1949
        %v1969 = vunpack.c.l.s4 1934713408
        %v1970 = vunpack.c.0.s8 %v1969
        %v1971 = vlaneseq
        %v1972 = vshrl.u32 %v1971, 7
        %v1973 = vsub.s32 %v1970, %v1972
        %v1974 = vrot.slane %v1966, %v1973
        %v1976 = vunpack.c.l.s4 1934713408
        %v1977 = vunpack.c.0.s8 %v1976
        %v1978 = vlaneseq
        %v1979 = vshrl.u32 %v1978, 7
        %v1980 = vsub.s32 %v1977, %v1979
        %v1981 = vrot.slane %v1967, %v1980
        %v1982 = vcombine.high %v1958, 0
        %v1983 = vcombine.high %v1965, 0
        %v1984 = vcombine.high %v1974, 0
        %v1985 = vcombine.high %v1981, 0
        %v1986 = vcombine.low %v1892, %v1908
        %v1987 = vcombine.high %v1892, %v1908
        %v1989 = vunpack.c.l.s4 1983009808
        %v1990 = vunpack.c.0.s8 %v1989
        %v1991 = vlaneseq
        %v1992 = vshrl.u32 %v1991, 7
        %v1993 = vsub.s32 %v1990, %v1992
        %v1994 = vrot.slane %v1986, %v1993
        %v1996 = vunpack.c.l.s4 1983009808
        %v1997 = vunpack.c.0.s8 %v1996
        %v1998 = vlaneseq
        %v1999 = vshrl.u32 %v1998, 7
        %v2000 = vsub.s32 %v1997, %v1999
        %v2001 = vrot.slane %v1987, %v2000
        %v2002 = vcombine.low %v1900, %v1916
        %v2003 = vcombine.high %v1900, %v1916
        %v2005 = vunpack.c.l.s4 1983009808
        %v2006 = vunpack.c.0.s8 %v2005
        %v2007 = vlaneseq
        %v2008 = vshrl.u32 %v2007, 7
        %v2009 = vsub.s32 %v2006, %v2008
        %v2010 = vrot.slane %v2002, %v2009
        %v2012 = vunpack.c.l.s4 1983009808
        %v2013 = vunpack.c.0.s8 %v2012
        %v2014 = vlaneseq
        %v2015 = vshrl.u32 %v2014, 7
        %v2016 = vsub.s32 %v2013, %v2015
        %v2017 = vrot.slane %v2003, %v2016
        %v2018 = vcombine.low %v1994, %v2010
        %v2019 = vcombine.high %v1994, %v2010
        %v2021 = vunpack.c.l.s4 1934713408
        %v2022 = vunpack.c.0.s8 %v2021
        %v2023 = vlaneseq
        %v2024 = vshrl.u32 %v2023, 7
        %v2025 = vsub.s32 %v2022, %v2024
        %v2026 = vrot.slane %v2018, %v2025
        %v2028 = vunpack.c.l.s4 1934713408
        %v2029 = vunpack.c.0.s8 %v2028
        %v2030 = vlaneseq
        %v2031 = vshrl.u32 %v2030, 7
        %v2032 = vsub.s32 %v2029, %v2031
        %v2033 = vrot.slane %v2019, %v2032
        %v2034 = vcombine.low %v2001, %v2017
        %v2035 = vcombine.high %v2001, %v2017
        %v2037 = vunpack.c.l.s4 1934713408
        %v2038 = vunpack.c.0.s8 %v2037
        %v2039 = vlaneseq
        %v2040 = vshrl.u32 %v2039, 7
        %v2041 = vsub.s32 %v2038, %v2040
        %v2042 = vrot.slane %v2034, %v2041
        %v2044 = vunpack.c.l.s4 1934713408
        %v2045 = vunpack.c.0.s8 %v2044
        %v2046 = vlaneseq
        %v2047 = vshrl.u32 %v2046, 7
        %v2048 = vsub.s32 %v2045, %v2047
        %v2049 = vrot.slane %v2035, %v2048
        %v2050 = vcombine.high %v2026, 0
        %v2051 = vcombine.high %v2033, 0
        %v2052 = vcombine.high %v2042, 0
        %v2053 = vcombine.high %v2049, 0
        %2055 = vrot.lane.b32.xlu0 %v2026, 16
        %v2056 = vpop.permute.xlu0 %2055
        %2058 = vrot.lane.b32.xlu0 %v1982, 32
        %v2059 = vpop.permute.xlu0 %2058
        %2061 = vrot.lane.b32.xlu0 %v2050, 48
        %v2062 = vpop.permute.xlu0 %2061
        %2064 = vrot.lane.b32.xlu0 %v1965, 64
        %v2065 = vpop.permute.xlu0 %2064
        %2067 = vrot.lane.b32.xlu0 %v2033, 80
        %v2068 = vpop.permute.xlu0 %2067
        %2070 = vrot.lane.b32.xlu0 %v1983, 96
        %v2071 = vpop.permute.xlu0 %2070
        %2073 = vrot.lane.b32.xlu0 %v2051, 112
        %v2074 = vpop.permute.xlu0 %2073
        %2076 = vrot.lane.b32.xlu0 %v2042, 16
        %v2077 = vpop.permute.xlu0 %2076
        %2079 = vrot.lane.b32.xlu0 %v1984, 32
        %v2080 = vpop.permute.xlu0 %2079
        %2082 = vrot.lane.b32.xlu0 %v2052, 48
        %v2083 = vpop.permute.xlu0 %2082
        %2085 = vrot.lane.b32.xlu0 %v1981, 64
        %v2086 = vpop.permute.xlu0 %2085
        %2088 = vrot.lane.b32.xlu0 %v2049, 80
        %v2089 = vpop.permute.xlu0 %2088
        %2091 = vrot.lane.b32.xlu0 %v1985, 96
        %v2092 = vpop.permute.xlu0 %2091
        %2094 = vrot.lane.b32.xlu0 %v2053, 112
        %v2095 = vpop.permute.xlu0 %2094
        %v2098 = vsel %vm992, %v1958, %v2056
        %v2100 = vsel %vm996, %v2098, %v2059
        %v2102 = vsel %vm999, %v2100, %v2062
        %v2104 = vsel %vm1002, %v2102, %v2065
        %v2106 = vsel %vm1005, %v2104, %v2068
        %v2108 = vsel %vm1008, %v2106, %v2071
        %v2110 = vsel %vm1011, %v2108, %v2074
        %v2113 = vsel %vm992, %v1974, %v2077
        %v2115 = vsel %vm996, %v2113, %v2080
        %v2117 = vsel %vm999, %v2115, %v2083
        %v2119 = vsel %vm1002, %v2117, %v2086
        %v2121 = vsel %vm1005, %v2119, %v2089
        %v2123 = vsel %vm1008, %v2121, %v2092
        %v2125 = vsel %vm1011, %v2123, %v2095
        %2126 = vrot.lane.b32.xlu0 %v1559, 126
        %v2127 = vpop.permute.xlu0 %2126
        %2128 = vrot.lane.b32.xlu0 %v1569, 126
        %v2129 = vpop.permute.xlu0 %2128
        %2130 = vrot.lane.b32.xlu0 %v1579, 126
        %v2131 = vpop.permute.xlu0 %2130
        %2132 = vrot.lane.b32.xlu0 %v1589, 126
        %v2133 = vpop.permute.xlu0 %2132
        %2134 = vrot.lane.b32.xlu0 %v1599, 126
        %v2135 = vpop.permute.xlu0 %2134
        %2136 = vrot.lane.b32.xlu0 %v1609, 126
        %v2137 = vpop.permute.xlu0 %2136
        %2138 = vrot.lane.b32.xlu0 %v1619, 126
        %v2139 = vpop.permute.xlu0 %2138
        %2140 = vrot.lane.b32.xlu0 %v1629, 126
        %v2141 = vpop.permute.xlu0 %2140
        %v2144 = vpack.i.b16 %v2129, %v2127
        %v2146 = vshrl.u32 %v2127, 16
        %v2147 = vshrl.u32 %v2129, 16
        %v2148 = vpack.i.b16 %v2147, %v2146
        %v2152 = vpack.i.b16 %v2133, %v2131
        %v2154 = vshrl.u32 %v2131, 16
        %v2155 = vshrl.u32 %v2133, 16
        %v2156 = vpack.i.b16 %v2155, %v2154
        %v2160 = vpack.i.b16 %v2137, %v2135
        %v2162 = vshrl.u32 %v2135, 16
        %v2163 = vshrl.u32 %v2137, 16
        %v2164 = vpack.i.b16 %v2163, %v2162
        %v2168 = vpack.i.b16 %v2141, %v2139
        %v2170 = vshrl.u32 %v2139, 16
        %v2171 = vshrl.u32 %v2141, 16
        %v2172 = vpack.i.b16 %v2171, %v2170
        %v2174 = vcombine.low %v2144, %v2160
        %v2175 = vcombine.high %v2144, %v2160
        %v2177 = vunpack.c.l.s4 1983009808
        %v2178 = vunpack.c.0.s8 %v2177
        %v2179 = vlaneseq
        %v2180 = vshrl.u32 %v2179, 7
        %v2181 = vsub.s32 %v2178, %v2180
        %v2182 = vrot.slane %v2174, %v2181
        %v2184 = vunpack.c.l.s4 1983009808
        %v2185 = vunpack.c.0.s8 %v2184
        %v2186 = vlaneseq
        %v2187 = vshrl.u32 %v2186, 7
        %v2188 = vsub.s32 %v2185, %v2187
        %v2189 = vrot.slane %v2175, %v2188
        %v2190 = vcombine.low %v2152, %v2168
        %v2191 = vcombine.high %v2152, %v2168
        %v2193 = vunpack.c.l.s4 1983009808
        %v2194 = vunpack.c.0.s8 %v2193
        %v2195 = vlaneseq
        %v2196 = vshrl.u32 %v2195, 7
        %v2197 = vsub.s32 %v2194, %v2196
        %v2198 = vrot.slane %v2190, %v2197
        %v2200 = vunpack.c.l.s4 1983009808
        %v2201 = vunpack.c.0.s8 %v2200
        %v2202 = vlaneseq
        %v2203 = vshrl.u32 %v2202, 7
        %v2204 = vsub.s32 %v2201, %v2203
        %v2205 = vrot.slane %v2191, %v2204
        %v2206 = vcombine.low %v2182, %v2198
        %v2207 = vcombine.high %v2182, %v2198
        %v2209 = vunpack.c.l.s4 1934713408
        %v2210 = vunpack.c.0.s8 %v2209
        %v2211 = vlaneseq
        %v2212 = vshrl.u32 %v2211, 7
        %v2213 = vsub.s32 %v2210, %v2212
        %v2214 = vrot.slane %v2206, %v2213
        %v2216 = vunpack.c.l.s4 1934713408
        %v2217 = vunpack.c.0.s8 %v2216
        %v2218 = vlaneseq
        %v2219 = vshrl.u32 %v2218, 7
        %v2220 = vsub.s32 %v2217, %v2219
        %v2221 = vrot.slane %v2207, %v2220
        %v2222 = vcombine.low %v2189, %v2205
        %v2223 = vcombine.high %v2189, %v2205
        %v2225 = vunpack.c.l.s4 1934713408
        %v2226 = vunpack.c.0.s8 %v2225
        %v2227 = vlaneseq
        %v2228 = vshrl.u32 %v2227, 7
        %v2229 = vsub.s32 %v2226, %v2228
        %v2230 = vrot.slane %v2222, %v2229
        %v2232 = vunpack.c.l.s4 1934713408
        %v2233 = vunpack.c.0.s8 %v2232
        %v2234 = vlaneseq
        %v2235 = vshrl.u32 %v2234, 7
        %v2236 = vsub.s32 %v2233, %v2235
        %v2237 = vrot.slane %v2223, %v2236
        %v2238 = vcombine.high %v2214, 0
        %v2239 = vcombine.high %v2221, 0
        %v2240 = vcombine.high %v2230, 0
        %v2241 = vcombine.high %v2237, 0
        %v2242 = vcombine.low %v2148, %v2164
        %v2243 = vcombine.high %v2148, %v2164
        %v2245 = vunpack.c.l.s4 1983009808
        %v2246 = vunpack.c.0.s8 %v2245
        %v2247 = vlaneseq
        %v2248 = vshrl.u32 %v2247, 7
        %v2249 = vsub.s32 %v2246, %v2248
        %v2250 = vrot.slane %v2242, %v2249
        %v2252 = vunpack.c.l.s4 1983009808
        %v2253 = vunpack.c.0.s8 %v2252
        %v2254 = vlaneseq
        %v2255 = vshrl.u32 %v2254, 7
        %v2256 = vsub.s32 %v2253, %v2255
        %v2257 = vrot.slane %v2243, %v2256
        %v2258 = vcombine.low %v2156, %v2172
        %v2259 = vcombine.high %v2156, %v2172
        %v2261 = vunpack.c.l.s4 1983009808
        %v2262 = vunpack.c.0.s8 %v2261
        %v2263 = vlaneseq
        %v2264 = vshrl.u32 %v2263, 7
        %v2265 = vsub.s32 %v2262, %v2264
        %v2266 = vrot.slane %v2258, %v2265
        %v2268 = vunpack.c.l.s4 1983009808
        %v2269 = vunpack.c.0.s8 %v2268
        %v2270 = vlaneseq
        %v2271 = vshrl.u32 %v2270, 7
        %v2272 = vsub.s32 %v2269, %v2271
        %v2273 = vrot.slane %v2259, %v2272
        %v2274 = vcombine.low %v2250, %v2266
        %v2275 = vcombine.high %v2250, %v2266
        %v2277 = vunpack.c.l.s4 1934713408
        %v2278 = vunpack.c.0.s8 %v2277
        %v2279 = vlaneseq
        %v2280 = vshrl.u32 %v2279, 7
        %v2281 = vsub.s32 %v2278, %v2280
        %v2282 = vrot.slane %v2274, %v2281
        %v2284 = vunpack.c.l.s4 1934713408
        %v2285 = vunpack.c.0.s8 %v2284
        %v2286 = vlaneseq
        %v2287 = vshrl.u32 %v2286, 7
        %v2288 = vsub.s32 %v2285, %v2287
        %v2289 = vrot.slane %v2275, %v2288
        %v2290 = vcombine.low %v2257, %v2273
        %v2291 = vcombine.high %v2257, %v2273
        %v2293 = vunpack.c.l.s4 1934713408
        %v2294 = vunpack.c.0.s8 %v2293
        %v2295 = vlaneseq
        %v2296 = vshrl.u32 %v2295, 7
        %v2297 = vsub.s32 %v2294, %v2296
        %v2298 = vrot.slane %v2290, %v2297
        %v2300 = vunpack.c.l.s4 1934713408
        %v2301 = vunpack.c.0.s8 %v2300
        %v2302 = vlaneseq
        %v2303 = vshrl.u32 %v2302, 7
        %v2304 = vsub.s32 %v2301, %v2303
        %v2305 = vrot.slane %v2291, %v2304
        %v2306 = vcombine.high %v2282, 0
        %v2307 = vcombine.high %v2289, 0
        %v2308 = vcombine.high %v2298, 0
        %v2309 = vcombine.high %v2305, 0
        %2311 = vrot.lane.b32.xlu0 %v2282, 16
        %v2312 = vpop.permute.xlu0 %2311
        %2314 = vrot.lane.b32.xlu0 %v2238, 32
        %v2315 = vpop.permute.xlu0 %2314
        %2317 = vrot.lane.b32.xlu0 %v2306, 48
        %v2318 = vpop.permute.xlu0 %2317
        %2320 = vrot.lane.b32.xlu0 %v2221, 64
        %v2321 = vpop.permute.xlu0 %2320
        %2323 = vrot.lane.b32.xlu0 %v2289, 80
        %v2324 = vpop.permute.xlu0 %2323
        %2326 = vrot.lane.b32.xlu0 %v2239, 96
        %v2327 = vpop.permute.xlu0 %2326
        %2329 = vrot.lane.b32.xlu0 %v2307, 112
        %v2330 = vpop.permute.xlu0 %2329
        %2332 = vrot.lane.b32.xlu0 %v2298, 16
        %v2333 = vpop.permute.xlu0 %2332
        %2335 = vrot.lane.b32.xlu0 %v2240, 32
        %v2336 = vpop.permute.xlu0 %2335
        %2338 = vrot.lane.b32.xlu0 %v2308, 48
        %v2339 = vpop.permute.xlu0 %2338
        %2341 = vrot.lane.b32.xlu0 %v2237, 64
        %v2342 = vpop.permute.xlu0 %2341
        %2344 = vrot.lane.b32.xlu0 %v2305, 80
        %v2345 = vpop.permute.xlu0 %2344
        %2347 = vrot.lane.b32.xlu0 %v2241, 96
        %v2348 = vpop.permute.xlu0 %2347
        %2350 = vrot.lane.b32.xlu0 %v2309, 112
        %v2351 = vpop.permute.xlu0 %2350
        %v2354 = vsel %vm992, %v2214, %v2312
        %v2356 = vsel %vm996, %v2354, %v2315
        %v2358 = vsel %vm999, %v2356, %v2318
        %v2360 = vsel %vm1002, %v2358, %v2321
        %v2362 = vsel %vm1005, %v2360, %v2324
        %v2364 = vsel %vm1008, %v2362, %v2327
        %v2366 = vsel %vm1011, %v2364, %v2330
        %v2369 = vsel %vm992, %v2230, %v2333
        %v2371 = vsel %vm996, %v2369, %v2336
        %v2373 = vsel %vm999, %v2371, %v2339
        %v2375 = vsel %vm1002, %v2373, %v2342
        %v2377 = vsel %vm1005, %v2375, %v2345
        %v2379 = vsel %vm1008, %v2377, %v2348
        %v2381 = vsel %vm1011, %v2379, %v2351
        %vm2390 = vcmask 1046528
        %v2391 = vrot.slane %v765, 1
        %v2392 = vrot.slane %v773, 1
        %v2393 = vsel %vm2390, %v2391, %v2392
        %v2394 = vrot.slane %v766, 1
        %v2395 = vrot.slane %v774, 1
        %v2396 = vsel %vm2390, %v2394, %v2395
        %v2397 = vrot.slane %v767, 1
        %v2398 = vrot.slane %v775, 1
        %v2399 = vsel %vm2390, %v2397, %v2398
        %v2400 = vrot.slane %v768, 1
        %v2401 = vrot.slane %v776, 1
        %v2402 = vsel %vm2390, %v2400, %v2401
        %v2403 = vrot.slane %v769, 1
        %v2404 = vrot.slane %v777, 1
        %v2405 = vsel %vm2390, %v2403, %v2404
        %v2406 = vrot.slane %v770, 1
        %v2407 = vrot.slane %v778, 1
        %v2408 = vsel %vm2390, %v2406, %v2407
        %v2409 = vrot.slane %v771, 1
        %v2410 = vrot.slane %v779, 1
        %v2411 = vsel %vm2390, %v2409, %v2410
        %v2412 = vrot.slane %v772, 1
        %v2413 = vrot.slane %v780, 1
        %v2414 = vsel %vm2390, %v2412, %v2413
        %v2417 = vpack.i.b16 %v2396, %v2393
        %v2419 = vshrl.u32 %v2393, 16
        %v2420 = vshrl.u32 %v2396, 16
        %v2421 = vpack.i.b16 %v2420, %v2419
        %v2425 = vpack.i.b16 %v2402, %v2399
        %v2427 = vshrl.u32 %v2399, 16
        %v2428 = vshrl.u32 %v2402, 16
        %v2429 = vpack.i.b16 %v2428, %v2427
        %v2433 = vpack.i.b16 %v2408, %v2405
        %v2435 = vshrl.u32 %v2405, 16
        %v2436 = vshrl.u32 %v2408, 16
        %v2437 = vpack.i.b16 %v2436, %v2435
        %v2441 = vpack.i.b16 %v2414, %v2411
        %v2443 = vshrl.u32 %v2411, 16
        %v2444 = vshrl.u32 %v2414, 16
        %v2445 = vpack.i.b16 %v2444, %v2443
        %v2447 = vcombine.low %v2417, %v2433
        %v2448 = vcombine.high %v2417, %v2433
        %v2450 = vunpack.c.l.s4 1983009808
        %v2451 = vunpack.c.0.s8 %v2450
        %v2452 = vlaneseq
        %v2453 = vshrl.u32 %v2452, 7
        %v2454 = vsub.s32 %v2451, %v2453
        %v2455 = vrot.slane %v2447, %v2454
        %v2457 = vunpack.c.l.s4 1983009808
        %v2458 = vunpack.c.0.s8 %v2457
        %v2459 = vlaneseq
        %v2460 = vshrl.u32 %v2459, 7
        %v2461 = vsub.s32 %v2458, %v2460
        %v2462 = vrot.slane %v2448, %v2461
        %v2463 = vcombine.low %v2425, %v2441
        %v2464 = vcombine.high %v2425, %v2441
        %v2466 = vunpack.c.l.s4 1983009808
        %v2467 = vunpack.c.0.s8 %v2466
        %v2468 = vlaneseq
        %v2469 = vshrl.u32 %v2468, 7
        %v2470 = vsub.s32 %v2467, %v2469
        %v2471 = vrot.slane %v2463, %v2470
        %v2473 = vunpack.c.l.s4 1983009808
        %v2474 = vunpack.c.0.s8 %v2473
        %v2475 = vlaneseq
        %v2476 = vshrl.u32 %v2475, 7
        %v2477 = vsub.s32 %v2474, %v2476
        %v2478 = vrot.slane %v2464, %v2477
        %v2479 = vcombine.low %v2455, %v2471
        %v2480 = vcombine.high %v2455, %v2471
        %v2482 = vunpack.c.l.s4 1934713408
        %v2483 = vunpack.c.0.s8 %v2482
        %v2484 = vlaneseq
        %v2485 = vshrl.u32 %v2484, 7
        %v2486 = vsub.s32 %v2483, %v2485
        %v2487 = vrot.slane %v2479, %v2486
        %v2489 = vunpack.c.l.s4 1934713408
        %v2490 = vunpack.c.0.s8 %v2489
        %v2491 = vlaneseq
        %v2492 = vshrl.u32 %v2491, 7
        %v2493 = vsub.s32 %v2490, %v2492
        %v2494 = vrot.slane %v2480, %v2493
        %v2495 = vcombine.low %v2462, %v2478
        %v2496 = vcombine.high %v2462, %v2478
        %v2498 = vunpack.c.l.s4 1934713408
        %v2499 = vunpack.c.0.s8 %v2498
        %v2500 = vlaneseq
        %v2501 = vshrl.u32 %v2500, 7
        %v2502 = vsub.s32 %v2499, %v2501
        %v2503 = vrot.slane %v2495, %v2502
        %v2505 = vunpack.c.l.s4 1934713408
        %v2506 = vunpack.c.0.s8 %v2505
        %v2507 = vlaneseq
        %v2508 = vshrl.u32 %v2507, 7
        %v2509 = vsub.s32 %v2506, %v2508
        %v2510 = vrot.slane %v2496, %v2509
        %v2511 = vcombine.high %v2487, 0
        %v2512 = vcombine.high %v2494, 0
        %v2513 = vcombine.high %v2503, 0
        %v2514 = vcombine.high %v2510, 0
        %v2515 = vcombine.low %v2421, %v2437
        %v2516 = vcombine.high %v2421, %v2437
        %v2518 = vunpack.c.l.s4 1983009808
        %v2519 = vunpack.c.0.s8 %v2518
        %v2520 = vlaneseq
        %v2521 = vshrl.u32 %v2520, 7
        %v2522 = vsub.s32 %v2519, %v2521
        %v2523 = vrot.slane %v2515, %v2522
        %v2525 = vunpack.c.l.s4 1983009808
        %v2526 = vunpack.c.0.s8 %v2525
        %v2527 = vlaneseq
        %v2528 = vshrl.u32 %v2527, 7
        %v2529 = vsub.s32 %v2526, %v2528
        %v2530 = vrot.slane %v2516, %v2529
        %v2531 = vcombine.low %v2429, %v2445
        %v2532 = vcombine.high %v2429, %v2445
        %v2534 = vunpack.c.l.s4 1983009808
        %v2535 = vunpack.c.0.s8 %v2534
        %v2536 = vlaneseq
        %v2537 = vshrl.u32 %v2536, 7
        %v2538 = vsub.s32 %v2535, %v2537
        %v2539 = vrot.slane %v2531, %v2538
        %v2541 = vunpack.c.l.s4 1983009808
        %v2542 = vunpack.c.0.s8 %v2541
        %v2543 = vlaneseq
        %v2544 = vshrl.u32 %v2543, 7
        %v2545 = vsub.s32 %v2542, %v2544
        %v2546 = vrot.slane %v2532, %v2545
        %v2547 = vcombine.low %v2523, %v2539
        %v2548 = vcombine.high %v2523, %v2539
        %v2550 = vunpack.c.l.s4 1934713408
        %v2551 = vunpack.c.0.s8 %v2550
        %v2552 = vlaneseq
        %v2553 = vshrl.u32 %v2552, 7
        %v2554 = vsub.s32 %v2551, %v2553
        %v2555 = vrot.slane %v2547, %v2554
        %v2557 = vunpack.c.l.s4 1934713408
        %v2558 = vunpack.c.0.s8 %v2557
        %v2559 = vlaneseq
        %v2560 = vshrl.u32 %v2559, 7
        %v2561 = vsub.s32 %v2558, %v2560
        %v2562 = vrot.slane %v2548, %v2561
        %v2563 = vcombine.low %v2530, %v2546
        %v2564 = vcombine.high %v2530, %v2546
        %v2566 = vunpack.c.l.s4 1934713408
        %v2567 = vunpack.c.0.s8 %v2566
        %v2568 = vlaneseq
        %v2569 = vshrl.u32 %v2568, 7
        %v2570 = vsub.s32 %v2567, %v2569
        %v2571 = vrot.slane %v2563, %v2570
        %v2573 = vunpack.c.l.s4 1934713408
        %v2574 = vunpack.c.0.s8 %v2573
        %v2575 = vlaneseq
        %v2576 = vshrl.u32 %v2575, 7
        %v2577 = vsub.s32 %v2574, %v2576
        %v2578 = vrot.slane %v2564, %v2577
        %v2579 = vcombine.high %v2555, 0
        %v2580 = vcombine.high %v2562, 0
        %v2581 = vcombine.high %v2571, 0
        %v2582 = vcombine.high %v2578, 0
        %2584 = vrot.lane.b32.xlu0 %v2555, 16
        %v2585 = vpop.permute.xlu0 %2584
        %2587 = vrot.lane.b32.xlu0 %v2511, 32
        %v2588 = vpop.permute.xlu0 %2587
        %2590 = vrot.lane.b32.xlu0 %v2579, 48
        %v2591 = vpop.permute.xlu0 %2590
        %2593 = vrot.lane.b32.xlu0 %v2494, 64
        %v2594 = vpop.permute.xlu0 %2593
        %2596 = vrot.lane.b32.xlu0 %v2562, 80
        %v2597 = vpop.permute.xlu0 %2596
        %2599 = vrot.lane.b32.xlu0 %v2512, 96
        %v2600 = vpop.permute.xlu0 %2599
        %2602 = vrot.lane.b32.xlu0 %v2580, 112
        %v2603 = vpop.permute.xlu0 %2602
        %2605 = vrot.lane.b32.xlu0 %v2571, 16
        %v2606 = vpop.permute.xlu0 %2605
        %2608 = vrot.lane.b32.xlu0 %v2513, 32
        %v2609 = vpop.permute.xlu0 %2608
        %2611 = vrot.lane.b32.xlu0 %v2581, 48
        %v2612 = vpop.permute.xlu0 %2611
        %2614 = vrot.lane.b32.xlu0 %v2510, 64
        %v2615 = vpop.permute.xlu0 %2614
        %2617 = vrot.lane.b32.xlu0 %v2578, 80
        %v2618 = vpop.permute.xlu0 %2617
        %2620 = vrot.lane.b32.xlu0 %v2514, 96
        %v2621 = vpop.permute.xlu0 %2620
        %2623 = vrot.lane.b32.xlu0 %v2582, 112
        %v2624 = vpop.permute.xlu0 %2623
        %v2627 = vsel %vm992, %v2487, %v2585
        %v2629 = vsel %vm996, %v2627, %v2588
        %v2631 = vsel %vm999, %v2629, %v2591
        %v2633 = vsel %vm1002, %v2631, %v2594
        %v2635 = vsel %vm1005, %v2633, %v2597
        %v2637 = vsel %vm1008, %v2635, %v2600
        %v2639 = vsel %vm1011, %v2637, %v2603
        %v2642 = vsel %vm992, %v2503, %v2606
        %v2644 = vsel %vm996, %v2642, %v2609
        %v2646 = vsel %vm999, %v2644, %v2612
        %v2648 = vsel %vm1002, %v2646, %v2615
        %v2650 = vsel %vm1005, %v2648, %v2618
        %v2652 = vsel %vm1008, %v2650, %v2621
        %v2654 = vsel %vm1011, %v2652, %v2624
        %2655 = vrot.lane.b32.xlu0 %v2393, 127
        %v2656 = vpop.permute.xlu0 %2655
        %2657 = vrot.lane.b32.xlu0 %v2396, 127
        %v2658 = vpop.permute.xlu0 %2657
        %2659 = vrot.lane.b32.xlu0 %v2399, 127
        %v2660 = vpop.permute.xlu0 %2659
        %2661 = vrot.lane.b32.xlu0 %v2402, 127
        %v2662 = vpop.permute.xlu0 %2661
        %2663 = vrot.lane.b32.xlu0 %v2405, 127
        %v2664 = vpop.permute.xlu0 %2663
        %2665 = vrot.lane.b32.xlu0 %v2408, 127
        %v2666 = vpop.permute.xlu0 %2665
        %2667 = vrot.lane.b32.xlu0 %v2411, 127
        %v2668 = vpop.permute.xlu0 %2667
        %2669 = vrot.lane.b32.xlu0 %v2414, 127
        %v2670 = vpop.permute.xlu0 %2669
        %v2673 = vpack.i.b16 %v2658, %v2656
        %v2675 = vshrl.u32 %v2656, 16
        %v2676 = vshrl.u32 %v2658, 16
        %v2677 = vpack.i.b16 %v2676, %v2675
        %v2681 = vpack.i.b16 %v2662, %v2660
        %v2683 = vshrl.u32 %v2660, 16
        %v2684 = vshrl.u32 %v2662, 16
        %v2685 = vpack.i.b16 %v2684, %v2683
        %v2689 = vpack.i.b16 %v2666, %v2664
        %v2691 = vshrl.u32 %v2664, 16
        %v2692 = vshrl.u32 %v2666, 16
        %v2693 = vpack.i.b16 %v2692, %v2691
        %v2697 = vpack.i.b16 %v2670, %v2668
        %v2699 = vshrl.u32 %v2668, 16
        %v2700 = vshrl.u32 %v2670, 16
        %v2701 = vpack.i.b16 %v2700, %v2699
        %v2703 = vcombine.low %v2673, %v2689
        %v2704 = vcombine.high %v2673, %v2689
        %v2706 = vunpack.c.l.s4 1983009808
        %v2707 = vunpack.c.0.s8 %v2706
        %v2708 = vlaneseq
        %v2709 = vshrl.u32 %v2708, 7
        %v2710 = vsub.s32 %v2707, %v2709
        %v2711 = vrot.slane %v2703, %v2710
        %v2713 = vunpack.c.l.s4 1983009808
        %v2714 = vunpack.c.0.s8 %v2713
        %v2715 = vlaneseq
        %v2716 = vshrl.u32 %v2715, 7
        %v2717 = vsub.s32 %v2714, %v2716
        %v2718 = vrot.slane %v2704, %v2717
        %v2719 = vcombine.low %v2681, %v2697
        %v2720 = vcombine.high %v2681, %v2697
        %v2722 = vunpack.c.l.s4 1983009808
        %v2723 = vunpack.c.0.s8 %v2722
        %v2724 = vlaneseq
        %v2725 = vshrl.u32 %v2724, 7
        %v2726 = vsub.s32 %v2723, %v2725
        %v2727 = vrot.slane %v2719, %v2726
        %v2729 = vunpack.c.l.s4 1983009808
        %v2730 = vunpack.c.0.s8 %v2729
        %v2731 = vlaneseq
        %v2732 = vshrl.u32 %v2731, 7
        %v2733 = vsub.s32 %v2730, %v2732
        %v2734 = vrot.slane %v2720, %v2733
        %v2735 = vcombine.low %v2711, %v2727
        %v2736 = vcombine.high %v2711, %v2727
        %v2738 = vunpack.c.l.s4 1934713408
        %v2739 = vunpack.c.0.s8 %v2738
        %v2740 = vlaneseq
        %v2741 = vshrl.u32 %v2740, 7
        %v2742 = vsub.s32 %v2739, %v2741
        %v2743 = vrot.slane %v2735, %v2742
        %v2745 = vunpack.c.l.s4 1934713408
        %v2746 = vunpack.c.0.s8 %v2745
        %v2747 = vlaneseq
        %v2748 = vshrl.u32 %v2747, 7
        %v2749 = vsub.s32 %v2746, %v2748
        %v2750 = vrot.slane %v2736, %v2749
        %v2751 = vcombine.low %v2718, %v2734
        %v2752 = vcombine.high %v2718, %v2734
        %v2754 = vunpack.c.l.s4 1934713408
        %v2755 = vunpack.c.0.s8 %v2754
        %v2756 = vlaneseq
        %v2757 = vshrl.u32 %v2756, 7
        %v2758 = vsub.s32 %v2755, %v2757
        %v2759 = vrot.slane %v2751, %v2758
        %v2761 = vunpack.c.l.s4 1934713408
        %v2762 = vunpack.c.0.s8 %v2761
        %v2763 = vlaneseq
        %v2764 = vshrl.u32 %v2763, 7
        %v2765 = vsub.s32 %v2762, %v2764
        %v2766 = vrot.slane %v2752, %v2765
        %v2767 = vcombine.high %v2743, 0
        %v2768 = vcombine.high %v2750, 0
        %v2769 = vcombine.high %v2759, 0
        %v2770 = vcombine.high %v2766, 0
        %v2771 = vcombine.low %v2677, %v2693
        %v2772 = vcombine.high %v2677, %v2693
        %v2774 = vunpack.c.l.s4 1983009808
        %v2775 = vunpack.c.0.s8 %v2774
        %v2776 = vlaneseq
        %v2777 = vshrl.u32 %v2776, 7
        %v2778 = vsub.s32 %v2775, %v2777
        %v2779 = vrot.slane %v2771, %v2778
        %v2781 = vunpack.c.l.s4 1983009808
        %v2782 = vunpack.c.0.s8 %v2781
        %v2783 = vlaneseq
        %v2784 = vshrl.u32 %v2783, 7
        %v2785 = vsub.s32 %v2782, %v2784
        %v2786 = vrot.slane %v2772, %v2785
        %v2787 = vcombine.low %v2685, %v2701
        %v2788 = vcombine.high %v2685, %v2701
        %v2790 = vunpack.c.l.s4 1983009808
        %v2791 = vunpack.c.0.s8 %v2790
        %v2792 = vlaneseq
        %v2793 = vshrl.u32 %v2792, 7
        %v2794 = vsub.s32 %v2791, %v2793
        %v2795 = vrot.slane %v2787, %v2794
        %v2797 = vunpack.c.l.s4 1983009808
        %v2798 = vunpack.c.0.s8 %v2797
        %v2799 = vlaneseq
        %v2800 = vshrl.u32 %v2799, 7
        %v2801 = vsub.s32 %v2798, %v2800
        %v2802 = vrot.slane %v2788, %v2801
        %v2803 = vcombine.low %v2779, %v2795
        %v2804 = vcombine.high %v2779, %v2795
        %v2806 = vunpack.c.l.s4 1934713408
        %v2807 = vunpack.c.0.s8 %v2806
        %v2808 = vlaneseq
        %v2809 = vshrl.u32 %v2808, 7
        %v2810 = vsub.s32 %v2807, %v2809
        %v2811 = vrot.slane %v2803, %v2810
        %v2813 = vunpack.c.l.s4 1934713408
        %v2814 = vunpack.c.0.s8 %v2813
        %v2815 = vlaneseq
        %v2816 = vshrl.u32 %v2815, 7
        %v2817 = vsub.s32 %v2814, %v2816
        %v2818 = vrot.slane %v2804, %v2817
        %v2819 = vcombine.low %v2786, %v2802
        %v2820 = vcombine.high %v2786, %v2802
        %v2822 = vunpack.c.l.s4 1934713408
        %v2823 = vunpack.c.0.s8 %v2822
        %v2824 = vlaneseq
        %v2825 = vshrl.u32 %v2824, 7
        %v2826 = vsub.s32 %v2823, %v2825
        %v2827 = vrot.slane %v2819, %v2826
        %v2829 = vunpack.c.l.s4 1934713408
        %v2830 = vunpack.c.0.s8 %v2829
        %v2831 = vlaneseq
        %v2832 = vshrl.u32 %v2831, 7
        %v2833 = vsub.s32 %v2830, %v2832
        %v2834 = vrot.slane %v2820, %v2833
        %v2835 = vcombine.high %v2811, 0
        %v2836 = vcombine.high %v2818, 0
        %v2837 = vcombine.high %v2827, 0
        %v2838 = vcombine.high %v2834, 0
        %2840 = vrot.lane.b32.xlu0 %v2811, 16
        %v2841 = vpop.permute.xlu0 %2840
        %2843 = vrot.lane.b32.xlu0 %v2767, 32
        %v2844 = vpop.permute.xlu0 %2843
        %2846 = vrot.lane.b32.xlu0 %v2835, 48
        %v2847 = vpop.permute.xlu0 %2846
        %2849 = vrot.lane.b32.xlu0 %v2750, 64
        %v2850 = vpop.permute.xlu0 %2849
        %2852 = vrot.lane.b32.xlu0 %v2818, 80
        %v2853 = vpop.permute.xlu0 %2852
        %2855 = vrot.lane.b32.xlu0 %v2768, 96
        %v2856 = vpop.permute.xlu0 %2855
        %2858 = vrot.lane.b32.xlu0 %v2836, 112
        %v2859 = vpop.permute.xlu0 %2858
        %2861 = vrot.lane.b32.xlu0 %v2827, 16
        %v2862 = vpop.permute.xlu0 %2861
        %2864 = vrot.lane.b32.xlu0 %v2769, 32
        %v2865 = vpop.permute.xlu0 %2864
        %2867 = vrot.lane.b32.xlu0 %v2837, 48
        %v2868 = vpop.permute.xlu0 %2867
        %2870 = vrot.lane.b32.xlu0 %v2766, 64
        %v2871 = vpop.permute.xlu0 %2870
        %2873 = vrot.lane.b32.xlu0 %v2834, 80
        %v2874 = vpop.permute.xlu0 %2873
        %2876 = vrot.lane.b32.xlu0 %v2770, 96
        %v2877 = vpop.permute.xlu0 %2876
        %2879 = vrot.lane.b32.xlu0 %v2838, 112
        %v2880 = vpop.permute.xlu0 %2879
        %v2883 = vsel %vm992, %v2743, %v2841
        %v2885 = vsel %vm996, %v2883, %v2844
        %v2887 = vsel %vm999, %v2885, %v2847
        %v2889 = vsel %vm1002, %v2887, %v2850
        %v2891 = vsel %vm1005, %v2889, %v2853
        %v2893 = vsel %vm1008, %v2891, %v2856
        %v2895 = vsel %vm1011, %v2893, %v2859
        %v2898 = vsel %vm992, %v2759, %v2862
        %v2900 = vsel %vm996, %v2898, %v2865
        %v2902 = vsel %vm999, %v2900, %v2868
        %v2904 = vsel %vm1002, %v2902, %v2871
        %v2906 = vsel %vm1005, %v2904, %v2874
        %v2908 = vsel %vm1008, %v2906, %v2877
        %v2910 = vsel %vm1011, %v2908, %v2880
        %2911 = vrot.lane.b32.xlu0 %v2393, 126
        %v2912 = vpop.permute.xlu0 %2911
        %2913 = vrot.lane.b32.xlu0 %v2396, 126
        %v2914 = vpop.permute.xlu0 %2913
        %2915 = vrot.lane.b32.xlu0 %v2399, 126
        %v2916 = vpop.permute.xlu0 %2915
        %2917 = vrot.lane.b32.xlu0 %v2402, 126
        %v2918 = vpop.permute.xlu0 %2917
        %2919 = vrot.lane.b32.xlu0 %v2405, 126
        %v2920 = vpop.permute.xlu0 %2919
        %2921 = vrot.lane.b32.xlu0 %v2408, 126
        %v2922 = vpop.permute.xlu0 %2921
        %2923 = vrot.lane.b32.xlu0 %v2411, 126
        %v2924 = vpop.permute.xlu0 %2923
        %2925 = vrot.lane.b32.xlu0 %v2414, 126
        %v2926 = vpop.permute.xlu0 %2925
        %v2929 = vpack.i.b16 %v2914, %v2912
        %v2931 = vshrl.u32 %v2912, 16
        %v2932 = vshrl.u32 %v2914, 16
        %v2933 = vpack.i.b16 %v2932, %v2931
        %v2937 = vpack.i.b16 %v2918, %v2916
        %v2939 = vshrl.u32 %v2916, 16
        %v2940 = vshrl.u32 %v2918, 16
        %v2941 = vpack.i.b16 %v2940, %v2939
        %v2945 = vpack.i.b16 %v2922, %v2920
        %v2947 = vshrl.u32 %v2920, 16
        %v2948 = vshrl.u32 %v2922, 16
        %v2949 = vpack.i.b16 %v2948, %v2947
        %v2953 = vpack.i.b16 %v2926, %v2924
        %v2955 = vshrl.u32 %v2924, 16
        %v2956 = vshrl.u32 %v2926, 16
        %v2957 = vpack.i.b16 %v2956, %v2955
        %v2959 = vcombine.low %v2929, %v2945
        %v2960 = vcombine.high %v2929, %v2945
        %v2962 = vunpack.c.l.s4 1983009808
        %v2963 = vunpack.c.0.s8 %v2962
        %v2964 = vlaneseq
        %v2965 = vshrl.u32 %v2964, 7
        %v2966 = vsub.s32 %v2963, %v2965
        %v2967 = vrot.slane %v2959, %v2966
        %v2969 = vunpack.c.l.s4 1983009808
        %v2970 = vunpack.c.0.s8 %v2969
        %v2971 = vlaneseq
        %v2972 = vshrl.u32 %v2971, 7
        %v2973 = vsub.s32 %v2970, %v2972
        %v2974 = vrot.slane %v2960, %v2973
        %v2975 = vcombine.low %v2937, %v2953
        %v2976 = vcombine.high %v2937, %v2953
        %v2978 = vunpack.c.l.s4 1983009808
        %v2979 = vunpack.c.0.s8 %v2978
        %v2980 = vlaneseq
        %v2981 = vshrl.u32 %v2980, 7
        %v2982 = vsub.s32 %v2979, %v2981
        %v2983 = vrot.slane %v2975, %v2982
        %v2985 = vunpack.c.l.s4 1983009808
        %v2986 = vunpack.c.0.s8 %v2985
        %v2987 = vlaneseq
        %v2988 = vshrl.u32 %v2987, 7
        %v2989 = vsub.s32 %v2986, %v2988
        %v2990 = vrot.slane %v2976, %v2989
        %v2991 = vcombine.low %v2967, %v2983
        %v2992 = vcombine.high %v2967, %v2983
        %v2994 = vunpack.c.l.s4 1934713408
        %v2995 = vunpack.c.0.s8 %v2994
        %v2996 = vlaneseq
        %v2997 = vshrl.u32 %v2996, 7
        %v2998 = vsub.s32 %v2995, %v2997
        %v2999 = vrot.slane %v2991, %v2998
        %v3001 = vunpack.c.l.s4 1934713408
        %v3002 = vunpack.c.0.s8 %v3001
        %v3003 = vlaneseq
        %v3004 = vshrl.u32 %v3003, 7
        %v3005 = vsub.s32 %v3002, %v3004
        %v3006 = vrot.slane %v2992, %v3005
        %v3007 = vcombine.low %v2974, %v2990
        %v3008 = vcombine.high %v2974, %v2990
        %v3010 = vunpack.c.l.s4 1934713408
        %v3011 = vunpack.c.0.s8 %v3010
        %v3012 = vlaneseq
        %v3013 = vshrl.u32 %v3012, 7
        %v3014 = vsub.s32 %v3011, %v3013
        %v3015 = vrot.slane %v3007, %v3014
        %v3017 = vunpack.c.l.s4 1934713408
        %v3018 = vunpack.c.0.s8 %v3017
        %v3019 = vlaneseq
        %v3020 = vshrl.u32 %v3019, 7
        %v3021 = vsub.s32 %v3018, %v3020
        %v3022 = vrot.slane %v3008, %v3021
        %v3023 = vcombine.high %v2999, 0
        %v3024 = vcombine.high %v3006, 0
        %v3025 = vcombine.high %v3015, 0
        %v3026 = vcombine.high %v3022, 0
        %v3027 = vcombine.low %v2933, %v2949
        %v3028 = vcombine.high %v2933, %v2949
        %v3030 = vunpack.c.l.s4 1983009808
        %v3031 = vunpack.c.0.s8 %v3030
        %v3032 = vlaneseq
        %v3033 = vshrl.u32 %v3032, 7
        %v3034 = vsub.s32 %v3031, %v3033
        %v3035 = vrot.slane %v3027, %v3034
        %v3037 = vunpack.c.l.s4 1983009808
        %v3038 = vunpack.c.0.s8 %v3037
        %v3039 = vlaneseq
        %v3040 = vshrl.u32 %v3039, 7
        %v3041 = vsub.s32 %v3038, %v3040
        %v3042 = vrot.slane %v3028, %v3041
        %v3043 = vcombine.low %v2941, %v2957
        %v3044 = vcombine.high %v2941, %v2957
        %v3046 = vunpack.c.l.s4 1983009808
        %v3047 = vunpack.c.0.s8 %v3046
        %v3048 = vlaneseq
        %v3049 = vshrl.u32 %v3048, 7
        %v3050 = vsub.s32 %v3047, %v3049
        %v3051 = vrot.slane %v3043, %v3050
        %v3053 = vunpack.c.l.s4 1983009808
        %v3054 = vunpack.c.0.s8 %v3053
        %v3055 = vlaneseq
        %v3056 = vshrl.u32 %v3055, 7
        %v3057 = vsub.s32 %v3054, %v3056
        %v3058 = vrot.slane %v3044, %v3057
        %v3059 = vcombine.low %v3035, %v3051
        %v3060 = vcombine.high %v3035, %v3051
        %v3062 = vunpack.c.l.s4 1934713408
        %v3063 = vunpack.c.0.s8 %v3062
        %v3064 = vlaneseq
        %v3065 = vshrl.u32 %v3064, 7
        %v3066 = vsub.s32 %v3063, %v3065
        %v3067 = vrot.slane %v3059, %v3066
        %v3069 = vunpack.c.l.s4 1934713408
        %v3070 = vunpack.c.0.s8 %v3069
        %v3071 = vlaneseq
        %v3072 = vshrl.u32 %v3071, 7
        %v3073 = vsub.s32 %v3070, %v3072
        %v3074 = vrot.slane %v3060, %v3073
        %v3075 = vcombine.low %v3042, %v3058
        %v3076 = vcombine.high %v3042, %v3058
        %v3078 = vunpack.c.l.s4 1934713408
        %v3079 = vunpack.c.0.s8 %v3078
        %v3080 = vlaneseq
        %v3081 = vshrl.u32 %v3080, 7
        %v3082 = vsub.s32 %v3079, %v3081
        %v3083 = vrot.slane %v3075, %v3082
        %v3085 = vunpack.c.l.s4 1934713408
        %v3086 = vunpack.c.0.s8 %v3085
        %v3087 = vlaneseq
        %v3088 = vshrl.u32 %v3087, 7
        %v3089 = vsub.s32 %v3086, %v3088
        %v3090 = vrot.slane %v3076, %v3089
        %v3091 = vcombine.high %v3067, 0
        %v3092 = vcombine.high %v3074, 0
        %v3093 = vcombine.high %v3083, 0
        %v3094 = vcombine.high %v3090, 0
        %3096 = vrot.lane.b32.xlu0 %v3067, 16
        %v3097 = vpop.permute.xlu0 %3096
        %3099 = vrot.lane.b32.xlu0 %v3023, 32
        %v3100 = vpop.permute.xlu0 %3099
        %3102 = vrot.lane.b32.xlu0 %v3091, 48
        %v3103 = vpop.permute.xlu0 %3102
        %3105 = vrot.lane.b32.xlu0 %v3006, 64
        %v3106 = vpop.permute.xlu0 %3105
        %3108 = vrot.lane.b32.xlu0 %v3074, 80
        %v3109 = vpop.permute.xlu0 %3108
        %3111 = vrot.lane.b32.xlu0 %v3024, 96
        %v3112 = vpop.permute.xlu0 %3111
        %3114 = vrot.lane.b32.xlu0 %v3092, 112
        %v3115 = vpop.permute.xlu0 %3114
        %3117 = vrot.lane.b32.xlu0 %v3083, 16
        %v3118 = vpop.permute.xlu0 %3117
        %3120 = vrot.lane.b32.xlu0 %v3025, 32
        %v3121 = vpop.permute.xlu0 %3120
        %3123 = vrot.lane.b32.xlu0 %v3093, 48
        %v3124 = vpop.permute.xlu0 %3123
        %3126 = vrot.lane.b32.xlu0 %v3022, 64
        %v3127 = vpop.permute.xlu0 %3126
        %3129 = vrot.lane.b32.xlu0 %v3090, 80
        %v3130 = vpop.permute.xlu0 %3129
        %3132 = vrot.lane.b32.xlu0 %v3026, 96
        %v3133 = vpop.permute.xlu0 %3132
        %3135 = vrot.lane.b32.xlu0 %v3094, 112
        %v3136 = vpop.permute.xlu0 %3135
        %v3139 = vsel %vm992, %v2999, %v3097
        %v3141 = vsel %vm996, %v3139, %v3100
        %v3143 = vsel %vm999, %v3141, %v3103
        %v3145 = vsel %vm1002, %v3143, %v3106
        %v3147 = vsel %vm1005, %v3145, %v3109
        %v3149 = vsel %vm1008, %v3147, %v3112
        %v3151 = vsel %vm1011, %v3149, %v3115
        %v3154 = vsel %vm992, %v3015, %v3118
        %v3156 = vsel %vm996, %v3154, %v3121
        %v3158 = vsel %vm999, %v3156, %v3124
        %v3160 = vsel %vm1002, %v3158, %v3127
        %v3162 = vsel %vm1005, %v3160, %v3130
        %v3164 = vsel %vm1008, %v3162, %v3133
        %v3166 = vsel %vm1011, %v3164, %v3136
        %v3169 = vrot.slane %v1277, 4
        %v3170 = vrot.slane %v1292, 4
        %v3173 = vrot.slane %v1854, 4
        %v3174 = vrot.slane %v1869, 4
        %v3177 = vrot.slane %v2366, 4
        %v3178 = vrot.slane %v2381, 4
        %v3181 = vrot.slane %v2895, 4
        %v3182 = vrot.slane %v2910, 4
        %v3184 = vsel %vm347, %v1013, %v3169
        %v3187 = vsel %vm347, %v1028, %v3170
        %v3190 = vsel %vm347, %v1533, %v3173
        %v3193 = vsel %vm347, %v1548, %v3174
        %v3196 = vsel %vm347, %v2110, %v3177
        %v3199 = vsel %vm347, %v2125, %v3178
        %v3202 = vsel %vm347, %v2639, %v3181
        %v3205 = vsel %vm347, %v2654, %v3182
        %vm3207 = vcmask 588800
        %v3209 = vsel %vm3207, %v781, 0
        %v3211 = vsel %vm347, %v3151, 0
        %v3213 = vsel %vm347, %v3166, 0
        %3215 = vmatprep.subr.bf16.mxu0 %v3187
        %3216 = vmatpush1.bf16.msra.mxu0 %v3184
        %3217 = vmatprep.subr.bf16.mxu0 %v3193
        %3218 = vmatpush1.bf16.msra.mxu0 %v3190
        %3219 = vmatprep.subr.bf16.mxu0 %v3199
        %3220 = vmatpush1.bf16.msra.mxu0 %v3196
        %3221 = vmatprep.subr.bf16.mxu0 %v3205
        %3222 = vmatpush1.bf16.msra.mxu0 %v3202
        %3223 = vmatprep.subr.bf16.mxu0 %v3213
        %3224 = vmatpush1.bf16.msra.mxu0 %v3211
        %3225 = vmatprep.subr.bf16.mxu0 0
        %3226 = vmatpush1.bf16.msra.mxu0 0
        %3227 = vmatprep.subr.bf16.mxu0 0
        %3228 = vmatpush1.bf16.msra.mxu0 0
        %3229 = vmatprep.subr.bf16.mxu0 0
        %3230 = vmatpush1.bf16.msra.mxu0 0
        %3231 = vmatprep.subr.bf16.mxu0 0
        %3232 = vmatpush1.bf16.msra.mxu0 0
        %3233 = vmatprep.subr.bf16.mxu0 0
        %3234 = vmatpush1.bf16.msra.mxu0 0
        %3235 = vmatprep.subr.bf16.mxu0 0
        %3236 = vmatpush1.bf16.msra.mxu0 0
        %3237 = vmatprep.subr.bf16.mxu0 0
        %3238 = vmatpush1.bf16.msra.mxu0 0
        %3239 = vmatprep.subr.bf16.mxu0 0
        %3240 = vmatpush1.bf16.msra.mxu0 0
        %3241 = vmatprep.subr.bf16.mxu0 0
        %3242 = vmatpush1.bf16.msra.mxu0 0
        %3243 = vmatprep.subr.bf16.mxu0 0
        %3244 = vmatpush1.bf16.msra.mxu0 0
        %3245 = vmatprep.subr.bf16.mxu0 0
        %3246 = vmatpush1.bf16.msra.mxu0 0
        %3247 = vmatprep.mubr.bf16.mxu0 0
        %3248 = vmatmul.mubr.bf16.gmra.mrb[0].mxu0 %v3209
        %v3249 = vpop.f32.mrb[0].mxu0
        %v3250 = vadd.f32 0.0, %v3249
        %v3251 = vpop.f32.mrb[0].mxu0
        %v3252 = vadd.f32 0.0, %v3251
        %v3253 = vpop.f32.mrb[0].mxu0
        %v3254 = vpop.f32.mrb[0].mxu0
        %3255 = vdwg.mxu0
        %3257 = vset.pattern.permute.xlu0 0
        %3258 = vperm.xlu0 %3257, %v630
        %v3259 = vpop.permute.xlu0 %3258
        %v3261 = vmul.f32 %v3250, %v3259
        %v3262 = vmul.f32 %v3252, %v3259
        %3263 = vset.pattern.permute.xlu0 1
        %3264 = vperm.xlu0 %3263, %v630
        %v3265 = vpop.permute.xlu0 %3264
        %v3267 = vadd.f32 %v3261, %v3265
        %v3268 = vadd.f32 %v3262, %v3265
        %v3269 = vmax.f32 %v3267, 0.0
        %v3270 = vmax.f32 %v3268, 0.0
        %v3271 = vpack.c.bf16 %v3269, %v3269
        %v3272 = vpack.c.bf16 %v3270, %v3270
        %3274 = vrot.lane.b32.xlu0 %v3271, 112
        %v3275 = vpop.permute.xlu0 %3274
        %3277 = vrot.lane.b32.xlu0 %v3271, 96
        %v3278 = vpop.permute.xlu0 %3277
        %3280 = vrot.lane.b32.xlu0 %v3271, 80
        %v3281 = vpop.permute.xlu0 %3280
        %3283 = vrot.lane.b32.xlu0 %v3271, 64
        %v3284 = vpop.permute.xlu0 %3283
        %3286 = vrot.lane.b32.xlu0 %v3271, 48
        %v3287 = vpop.permute.xlu0 %3286
        %3289 = vrot.lane.b32.xlu0 %v3271, 32
        %v3290 = vpop.permute.xlu0 %3289
        %3292 = vrot.lane.b32.xlu0 %v3271, 16
        %v3293 = vpop.permute.xlu0 %3292
        %3296 = vrot.lane.b32.xlu0 %v3272, 112
        %v3297 = vpop.permute.xlu0 %3296
        %3299 = vrot.lane.b32.xlu0 %v3272, 96
        %v3300 = vpop.permute.xlu0 %3299
        %3302 = vrot.lane.b32.xlu0 %v3272, 80
        %v3303 = vpop.permute.xlu0 %3302
        %3305 = vrot.lane.b32.xlu0 %v3272, 64
        %v3306 = vpop.permute.xlu0 %3305
        %3308 = vrot.lane.b32.xlu0 %v3272, 48
        %v3309 = vpop.permute.xlu0 %3308
        %3311 = vrot.lane.b32.xlu0 %v3272, 32
        %v3312 = vpop.permute.xlu0 %3311
        %3314 = vrot.lane.b32.xlu0 %v3272, 16
        %v3315 = vpop.permute.xlu0 %3314
        %v3317 = vcombine.low %v3271, %v3284
        %v3319 = vunpack.c.l.s4 1983009808
        %v3320 = vunpack.c.0.s8 %v3319
        %v3321 = vlaneseq
        %v3322 = vshrl.u32 %v3321, 7
        %v3323 = vsub.s32 %v3320, %v3322
        %v3324 = vrot.slane %v3317, %v3323
        %v3325 = vcombine.low %v3278, %v3290
        %v3327 = vunpack.c.l.s4 1983009808
        %v3328 = vunpack.c.0.s8 %v3327
        %v3329 = vlaneseq
        %v3330 = vshrl.u32 %v3329, 7
        %v3331 = vsub.s32 %v3328, %v3330
        %v3332 = vrot.slane %v3325, %v3331
        %v3333 = vcombine.low %v3272, %v3306
        %v3335 = vunpack.c.l.s4 1983009808
        %v3336 = vunpack.c.0.s8 %v3335
        %v3337 = vlaneseq
        %v3338 = vshrl.u32 %v3337, 7
        %v3339 = vsub.s32 %v3336, %v3338
        %v3340 = vrot.slane %v3333, %v3339
        %v3341 = vcombine.low %v3300, %v3312
        %v3343 = vunpack.c.l.s4 1983009808
        %v3344 = vunpack.c.0.s8 %v3343
        %v3345 = vlaneseq
        %v3346 = vshrl.u32 %v3345, 7
        %v3347 = vsub.s32 %v3344, %v3346
        %v3348 = vrot.slane %v3341, %v3347
        %v3349 = vcombine.low %v3324, %v3332
        %v3351 = vunpack.c.l.s4 1934713408
        %v3352 = vunpack.c.0.s8 %v3351
        %v3353 = vlaneseq
        %v3354 = vshrl.u32 %v3353, 7
        %v3355 = vsub.s32 %v3352, %v3354
        %v3356 = vrot.slane %v3349, %v3355
        %v3357 = vcombine.low %v3340, %v3348
        %v3359 = vunpack.c.l.s4 1934713408
        %v3360 = vunpack.c.0.s8 %v3359
        %v3361 = vlaneseq
        %v3362 = vshrl.u32 %v3361, 7
        %v3363 = vsub.s32 %v3360, %v3362
        %v3364 = vrot.slane %v3357, %v3363
        %v3365 = vcombine.low %v3356, %v3364
        %v3366 = vcombine.high %v3356, %v3364
        %v3367 = vcombine.low %v3275, %v3287
        %v3369 = vunpack.c.l.s4 1983009808
        %v3370 = vunpack.c.0.s8 %v3369
        %v3371 = vlaneseq
        %v3372 = vshrl.u32 %v3371, 7
        %v3373 = vsub.s32 %v3370, %v3372
        %v3374 = vrot.slane %v3367, %v3373
        %v3375 = vcombine.low %v3281, %v3293
        %v3377 = vunpack.c.l.s4 1983009808
        %v3378 = vunpack.c.0.s8 %v3377
        %v3379 = vlaneseq
        %v3380 = vshrl.u32 %v3379, 7
        %v3381 = vsub.s32 %v3378, %v3380
        %v3382 = vrot.slane %v3375, %v3381
        %v3383 = vcombine.low %v3297, %v3309
        %v3385 = vunpack.c.l.s4 1983009808
        %v3386 = vunpack.c.0.s8 %v3385
        %v3387 = vlaneseq
        %v3388 = vshrl.u32 %v3387, 7
        %v3389 = vsub.s32 %v3386, %v3388
        %v3390 = vrot.slane %v3383, %v3389
        %v3391 = vcombine.low %v3303, %v3315
        %v3393 = vunpack.c.l.s4 1983009808
        %v3394 = vunpack.c.0.s8 %v3393
        %v3395 = vlaneseq
        %v3396 = vshrl.u32 %v3395, 7
        %v3397 = vsub.s32 %v3394, %v3396
        %v3398 = vrot.slane %v3391, %v3397
        %v3399 = vcombine.low %v3374, %v3382
        %v3401 = vunpack.c.l.s4 1934713408
        %v3402 = vunpack.c.0.s8 %v3401
        %v3403 = vlaneseq
        %v3404 = vshrl.u32 %v3403, 7
        %v3405 = vsub.s32 %v3402, %v3404
        %v3406 = vrot.slane %v3399, %v3405
        %v3407 = vcombine.low %v3390, %v3398
        %v3409 = vunpack.c.l.s4 1934713408
        %v3410 = vunpack.c.0.s8 %v3409
        %v3411 = vlaneseq
        %v3412 = vshrl.u32 %v3411, 7
        %v3413 = vsub.s32 %v3410, %v3412
        %v3414 = vrot.slane %v3407, %v3413
        %v3415 = vcombine.low %v3406, %v3414
        %v3416 = vcombine.high %v3406, %v3414
        %v3419 = vpack.i.b16 %v3415, %v3365
        %v3420 = vshrl.u32 %v3365, 16
        %v3421 = vshrl.u32 %v3415, 16
        %v3422 = vpack.i.b16 %v3421, %v3420
        %v3425 = vpack.i.b16 %v3416, %v3366
        %v3426 = vshrl.u32 %v3366, 16
        %v3427 = vshrl.u32 %v3416, 16
        %v3428 = vpack.i.b16 %v3427, %v3426
        %3429 = vrot.lane.b32.xlu0 %v3419, 1
        %v3430 = vpop.permute.xlu0 %3429
        %3431 = vrot.lane.b32.xlu0 %v3422, 1
        %v3432 = vpop.permute.xlu0 %3431
        %3433 = vrot.lane.b32.xlu0 %v3425, 1
        %v3434 = vpop.permute.xlu0 %3433
        %3435 = vrot.lane.b32.xlu0 %v3428, 1
        %v3436 = vpop.permute.xlu0 %3435
        %v3438 = vsel %vm671, 0, %v3430
        %v3440 = vsel %vm671, 0, %v3432
        %v3442 = vsel %vm671, 0, %v3434
        %v3444 = vsel %vm671, 0, %v3436
        %v3445 = vsel %vm689, %v3438, 0
        %v3446 = vsel %vm689, %v3440, 0
        %v3447 = vsel %vm689, %v3442, 0
        %v3448 = vsel %vm689, %v3444, 0
        %v3449 = vshrl.u32 %v3445, 16
        %v3451 = vrot.slane %v3449, 7
        %v3452 = vshll.u32 %v3445, 16
        %v3454 = vor.u32 %v3451, %v3452
        %v3455 = vshrl.u32 %v3446, 16
        %v3457 = vrot.slane %v3455, 7
        %v3458 = vshll.u32 %v3446, 16
        %v3460 = vor.u32 %v3457, %v3458
        %v3461 = vshrl.u32 %v3447, 16
        %v3463 = vrot.slane %v3461, 7
        %v3464 = vshll.u32 %v3447, 16
        %v3466 = vor.u32 %v3463, %v3464
        %v3467 = vshrl.u32 %v3448, 16
        %v3469 = vrot.slane %v3467, 7
        %v3470 = vshll.u32 %v3448, 16
        %v3472 = vor.u32 %v3469, %v3470
        %v3481 = vsel %vm764, 0, %v3454
        %v3482 = vsel %vm764, 0, %v3460
        %v3483 = vsel %vm764, 0, %v3466
        %v3484 = vsel %vm764, 0, %v3472
        %v3485 = vsel %vm764, %v3451, 0
        %v3486 = vsel %vm764, %v3457, 0
        %v3487 = vsel %vm764, %v3463, 0
        %v3488 = vsel %vm764, %v3469, 0
        %v3489 = vld [vmem:[%s5] sm:$0x3]
        %v3492 = vpack.i.b16 %v3482, %v3481
        %v3494 = vshrl.u32 %v3481, 16
        %v3495 = vshrl.u32 %v3482, 16
        %v3496 = vpack.i.b16 %v3495, %v3494
        %v3500 = vpack.i.b16 %v3484, %v3483
        %v3502 = vshrl.u32 %v3483, 16
        %v3503 = vshrl.u32 %v3484, 16
        %v3504 = vpack.i.b16 %v3503, %v3502
        %v3506 = vpack.i.b16 0, 0
        %v3508 = vshrl.u32 0, 16
        %v3509 = vpack.i.b16 %v3508, %v3508
        %v3511 = vcombine.high %v3492, %v3506
        %v3513 = vunpack.c.l.s4 1983009808
        %v3514 = vunpack.c.0.s8 %v3513
        %v3515 = vlaneseq
        %v3516 = vshrl.u32 %v3515, 7
        %v3517 = vsub.s32 %v3514, %v3516
        %v3518 = vrot.slane %v3492, %v3517
        %v3520 = vunpack.c.l.s4 1983009808
        %v3521 = vunpack.c.0.s8 %v3520
        %v3522 = vlaneseq
        %v3523 = vshrl.u32 %v3522, 7
        %v3524 = vsub.s32 %v3521, %v3523
        %v3525 = vrot.slane %v3511, %v3524
        %v3526 = vcombine.high %v3500, %v3506
        %v3528 = vunpack.c.l.s4 1983009808
        %v3529 = vunpack.c.0.s8 %v3528
        %v3530 = vlaneseq
        %v3531 = vshrl.u32 %v3530, 7
        %v3532 = vsub.s32 %v3529, %v3531
        %v3533 = vrot.slane %v3500, %v3532
        %v3535 = vunpack.c.l.s4 1983009808
        %v3536 = vunpack.c.0.s8 %v3535
        %v3537 = vlaneseq
        %v3538 = vshrl.u32 %v3537, 7
        %v3539 = vsub.s32 %v3536, %v3538
        %v3540 = vrot.slane %v3526, %v3539
        %v3541 = vcombine.low %v3518, %v3533
        %v3542 = vcombine.high %v3518, %v3533
        %v3544 = vunpack.c.l.s4 1934713408
        %v3545 = vunpack.c.0.s8 %v3544
        %v3546 = vlaneseq
        %v3547 = vshrl.u32 %v3546, 7
        %v3548 = vsub.s32 %v3545, %v3547
        %v3549 = vrot.slane %v3541, %v3548
        %v3551 = vunpack.c.l.s4 1934713408
        %v3552 = vunpack.c.0.s8 %v3551
        %v3553 = vlaneseq
        %v3554 = vshrl.u32 %v3553, 7
        %v3555 = vsub.s32 %v3552, %v3554
        %v3556 = vrot.slane %v3542, %v3555
        %v3557 = vcombine.low %v3525, %v3540
        %v3558 = vcombine.high %v3525, %v3540
        %v3560 = vunpack.c.l.s4 1934713408
        %v3561 = vunpack.c.0.s8 %v3560
        %v3562 = vlaneseq
        %v3563 = vshrl.u32 %v3562, 7
        %v3564 = vsub.s32 %v3561, %v3563
        %v3565 = vrot.slane %v3557, %v3564
        %v3567 = vunpack.c.l.s4 1934713408
        %v3568 = vunpack.c.0.s8 %v3567
        %v3569 = vlaneseq
        %v3570 = vshrl.u32 %v3569, 7
        %v3571 = vsub.s32 %v3568, %v3570
        %v3572 = vrot.slane %v3558, %v3571
        %v3573 = vcombine.high %v3549, 0
        %v3574 = vcombine.high %v3556, 0
        %v3575 = vcombine.high %v3565, 0
        %v3576 = vcombine.high %v3572, 0
        %v3577 = vcombine.high %v3496, %v3509
        %v3579 = vunpack.c.l.s4 1983009808
        %v3580 = vunpack.c.0.s8 %v3579
        %v3581 = vlaneseq
        %v3582 = vshrl.u32 %v3581, 7
        %v3583 = vsub.s32 %v3580, %v3582
        %v3584 = vrot.slane %v3496, %v3583
        %v3586 = vunpack.c.l.s4 1983009808
        %v3587 = vunpack.c.0.s8 %v3586
        %v3588 = vlaneseq
        %v3589 = vshrl.u32 %v3588, 7
        %v3590 = vsub.s32 %v3587, %v3589
        %v3591 = vrot.slane %v3577, %v3590
        %v3592 = vcombine.high %v3504, %v3509
        %v3594 = vunpack.c.l.s4 1983009808
        %v3595 = vunpack.c.0.s8 %v3594
        %v3596 = vlaneseq
        %v3597 = vshrl.u32 %v3596, 7
        %v3598 = vsub.s32 %v3595, %v3597
        %v3599 = vrot.slane %v3504, %v3598
        %v3601 = vunpack.c.l.s4 1983009808
        %v3602 = vunpack.c.0.s8 %v3601
        %v3603 = vlaneseq
        %v3604 = vshrl.u32 %v3603, 7
        %v3605 = vsub.s32 %v3602, %v3604
        %v3606 = vrot.slane %v3592, %v3605
        %v3607 = vcombine.low %v3584, %v3599
        %v3608 = vcombine.high %v3584, %v3599
        %v3610 = vunpack.c.l.s4 1934713408
        %v3611 = vunpack.c.0.s8 %v3610
        %v3612 = vlaneseq
        %v3613 = vshrl.u32 %v3612, 7
        %v3614 = vsub.s32 %v3611, %v3613
        %v3615 = vrot.slane %v3607, %v3614
        %v3617 = vunpack.c.l.s4 1934713408
        %v3618 = vunpack.c.0.s8 %v3617
        %v3619 = vlaneseq
        %v3620 = vshrl.u32 %v3619, 7
        %v3621 = vsub.s32 %v3618, %v3620
        %v3622 = vrot.slane %v3608, %v3621
        %v3623 = vcombine.low %v3591, %v3606
        %v3624 = vcombine.high %v3591, %v3606
        %v3626 = vunpack.c.l.s4 1934713408
        %v3627 = vunpack.c.0.s8 %v3626
        %v3628 = vlaneseq
        %v3629 = vshrl.u32 %v3628, 7
        %v3630 = vsub.s32 %v3627, %v3629
        %v3631 = vrot.slane %v3623, %v3630
        %v3633 = vunpack.c.l.s4 1934713408
        %v3634 = vunpack.c.0.s8 %v3633
        %v3635 = vlaneseq
        %v3636 = vshrl.u32 %v3635, 7
        %v3637 = vsub.s32 %v3634, %v3636
        %v3638 = vrot.slane %v3624, %v3637
        %v3639 = vcombine.high %v3615, 0
        %v3640 = vcombine.high %v3622, 0
        %v3641 = vcombine.high %v3631, 0
        %v3642 = vcombine.high %v3638, 0
        %3644 = vrot.lane.b32.xlu0 %v3615, 16
        %v3645 = vpop.permute.xlu0 %3644
        %3647 = vrot.lane.b32.xlu0 %v3573, 32
        %v3648 = vpop.permute.xlu0 %3647
        %3650 = vrot.lane.b32.xlu0 %v3639, 48
        %v3651 = vpop.permute.xlu0 %3650
        %3653 = vrot.lane.b32.xlu0 %v3556, 64
        %v3654 = vpop.permute.xlu0 %3653
        %3656 = vrot.lane.b32.xlu0 %v3622, 80
        %v3657 = vpop.permute.xlu0 %3656
        %3659 = vrot.lane.b32.xlu0 %v3574, 96
        %v3660 = vpop.permute.xlu0 %3659
        %3662 = vrot.lane.b32.xlu0 %v3640, 112
        %v3663 = vpop.permute.xlu0 %3662
        %3665 = vrot.lane.b32.xlu0 %v3631, 16
        %v3666 = vpop.permute.xlu0 %3665
        %3668 = vrot.lane.b32.xlu0 %v3575, 32
        %v3669 = vpop.permute.xlu0 %3668
        %3671 = vrot.lane.b32.xlu0 %v3641, 48
        %v3672 = vpop.permute.xlu0 %3671
        %3674 = vrot.lane.b32.xlu0 %v3572, 64
        %v3675 = vpop.permute.xlu0 %3674
        %3677 = vrot.lane.b32.xlu0 %v3638, 80
        %v3678 = vpop.permute.xlu0 %3677
        %3680 = vrot.lane.b32.xlu0 %v3576, 96
        %v3681 = vpop.permute.xlu0 %3680
        %3683 = vrot.lane.b32.xlu0 %v3642, 112
        %v3684 = vpop.permute.xlu0 %3683
        %v3687 = vsel %vm992, %v3549, %v3645
        %v3689 = vsel %vm996, %v3687, %v3648
        %v3691 = vsel %vm999, %v3689, %v3651
        %v3693 = vsel %vm1002, %v3691, %v3654
        %v3695 = vsel %vm1005, %v3693, %v3657
        %v3697 = vsel %vm1008, %v3695, %v3660
        %v3699 = vsel %vm1011, %v3697, %v3663
        %v3702 = vsel %vm992, %v3565, %v3666
        %v3704 = vsel %vm996, %v3702, %v3669
        %v3706 = vsel %vm999, %v3704, %v3672
        %v3708 = vsel %vm1002, %v3706, %v3675
        %v3710 = vsel %vm1005, %v3708, %v3678
        %v3712 = vsel %vm1008, %v3710, %v3681
        %v3714 = vsel %vm1011, %v3712, %v3684
        %3719 = vrot.lane.b32.xlu0 %v3481, 127
        %v3720 = vpop.permute.xlu0 %3719
        %3721 = vrot.lane.b32.xlu0 %v3482, 127
        %v3722 = vpop.permute.xlu0 %3721
        %3723 = vrot.lane.b32.xlu0 %v3483, 127
        %v3724 = vpop.permute.xlu0 %3723
        %3725 = vrot.lane.b32.xlu0 %v3484, 127
        %v3726 = vpop.permute.xlu0 %3725
        %v3729 = vpack.i.b16 %v3722, %v3720
        %v3731 = vshrl.u32 %v3720, 16
        %v3732 = vshrl.u32 %v3722, 16
        %v3733 = vpack.i.b16 %v3732, %v3731
        %v3737 = vpack.i.b16 %v3726, %v3724
        %v3739 = vshrl.u32 %v3724, 16
        %v3740 = vshrl.u32 %v3726, 16
        %v3741 = vpack.i.b16 %v3740, %v3739
        %v3743 = vcombine.high %v3729, %v3506
        %v3745 = vunpack.c.l.s4 1983009808
        %v3746 = vunpack.c.0.s8 %v3745
        %v3747 = vlaneseq
        %v3748 = vshrl.u32 %v3747, 7
        %v3749 = vsub.s32 %v3746, %v3748
        %v3750 = vrot.slane %v3729, %v3749
        %v3752 = vunpack.c.l.s4 1983009808
        %v3753 = vunpack.c.0.s8 %v3752
        %v3754 = vlaneseq
        %v3755 = vshrl.u32 %v3754, 7
        %v3756 = vsub.s32 %v3753, %v3755
        %v3757 = vrot.slane %v3743, %v3756
        %v3758 = vcombine.high %v3737, %v3506
        %v3760 = vunpack.c.l.s4 1983009808
        %v3761 = vunpack.c.0.s8 %v3760
        %v3762 = vlaneseq
        %v3763 = vshrl.u32 %v3762, 7
        %v3764 = vsub.s32 %v3761, %v3763
        %v3765 = vrot.slane %v3737, %v3764
        %v3767 = vunpack.c.l.s4 1983009808
        %v3768 = vunpack.c.0.s8 %v3767
        %v3769 = vlaneseq
        %v3770 = vshrl.u32 %v3769, 7
        %v3771 = vsub.s32 %v3768, %v3770
        %v3772 = vrot.slane %v3758, %v3771
        %v3773 = vcombine.low %v3750, %v3765
        %v3774 = vcombine.high %v3750, %v3765
        %v3776 = vunpack.c.l.s4 1934713408
        %v3777 = vunpack.c.0.s8 %v3776
        %v3778 = vlaneseq
        %v3779 = vshrl.u32 %v3778, 7
        %v3780 = vsub.s32 %v3777, %v3779
        %v3781 = vrot.slane %v3773, %v3780
        %v3783 = vunpack.c.l.s4 1934713408
        %v3784 = vunpack.c.0.s8 %v3783
        %v3785 = vlaneseq
        %v3786 = vshrl.u32 %v3785, 7
        %v3787 = vsub.s32 %v3784, %v3786
        %v3788 = vrot.slane %v3774, %v3787
        %v3789 = vcombine.low %v3757, %v3772
        %v3790 = vcombine.high %v3757, %v3772
        %v3792 = vunpack.c.l.s4 1934713408
        %v3793 = vunpack.c.0.s8 %v3792
        %v3794 = vlaneseq
        %v3795 = vshrl.u32 %v3794, 7
        %v3796 = vsub.s32 %v3793, %v3795
        %v3797 = vrot.slane %v3789, %v3796
        %v3799 = vunpack.c.l.s4 1934713408
        %v3800 = vunpack.c.0.s8 %v3799
        %v3801 = vlaneseq
        %v3802 = vshrl.u32 %v3801, 7
        %v3803 = vsub.s32 %v3800, %v3802
        %v3804 = vrot.slane %v3790, %v3803
        %v3805 = vcombine.high %v3781, 0
        %v3806 = vcombine.high %v3788, 0
        %v3807 = vcombine.high %v3797, 0
        %v3808 = vcombine.high %v3804, 0
        %v3809 = vcombine.high %v3733, %v3509
        %v3811 = vunpack.c.l.s4 1983009808
        %v3812 = vunpack.c.0.s8 %v3811
        %v3813 = vlaneseq
        %v3814 = vshrl.u32 %v3813, 7
        %v3815 = vsub.s32 %v3812, %v3814
        %v3816 = vrot.slane %v3733, %v3815
        %v3818 = vunpack.c.l.s4 1983009808
        %v3819 = vunpack.c.0.s8 %v3818
        %v3820 = vlaneseq
        %v3821 = vshrl.u32 %v3820, 7
        %v3822 = vsub.s32 %v3819, %v3821
        %v3823 = vrot.slane %v3809, %v3822
        %v3824 = vcombine.high %v3741, %v3509
        %v3826 = vunpack.c.l.s4 1983009808
        %v3827 = vunpack.c.0.s8 %v3826
        %v3828 = vlaneseq
        %v3829 = vshrl.u32 %v3828, 7
        %v3830 = vsub.s32 %v3827, %v3829
        %v3831 = vrot.slane %v3741, %v3830
        %v3833 = vunpack.c.l.s4 1983009808
        %v3834 = vunpack.c.0.s8 %v3833
        %v3835 = vlaneseq
        %v3836 = vshrl.u32 %v3835, 7
        %v3837 = vsub.s32 %v3834, %v3836
        %v3838 = vrot.slane %v3824, %v3837
        %v3839 = vcombine.low %v3816, %v3831
        %v3840 = vcombine.high %v3816, %v3831
        %v3842 = vunpack.c.l.s4 1934713408
        %v3843 = vunpack.c.0.s8 %v3842
        %v3844 = vlaneseq
        %v3845 = vshrl.u32 %v3844, 7
        %v3846 = vsub.s32 %v3843, %v3845
        %v3847 = vrot.slane %v3839, %v3846
        %v3849 = vunpack.c.l.s4 1934713408
        %v3850 = vunpack.c.0.s8 %v3849
        %v3851 = vlaneseq
        %v3852 = vshrl.u32 %v3851, 7
        %v3853 = vsub.s32 %v3850, %v3852
        %v3854 = vrot.slane %v3840, %v3853
        %v3855 = vcombine.low %v3823, %v3838
        %v3856 = vcombine.high %v3823, %v3838
        %v3858 = vunpack.c.l.s4 1934713408
        %v3859 = vunpack.c.0.s8 %v3858
        %v3860 = vlaneseq
        %v3861 = vshrl.u32 %v3860, 7
        %v3862 = vsub.s32 %v3859, %v3861
        %v3863 = vrot.slane %v3855, %v3862
        %v3865 = vunpack.c.l.s4 1934713408
        %v3866 = vunpack.c.0.s8 %v3865
        %v3867 = vlaneseq
        %v3868 = vshrl.u32 %v3867, 7
        %v3869 = vsub.s32 %v3866, %v3868
        %v3870 = vrot.slane %v3856, %v3869
        %v3871 = vcombine.high %v3847, 0
        %v3872 = vcombine.high %v3854, 0
        %v3873 = vcombine.high %v3863, 0
        %v3874 = vcombine.high %v3870, 0
        %3876 = vrot.lane.b32.xlu0 %v3847, 16
        %v3877 = vpop.permute.xlu0 %3876
        %3879 = vrot.lane.b32.xlu0 %v3805, 32
        %v3880 = vpop.permute.xlu0 %3879
        %3882 = vrot.lane.b32.xlu0 %v3871, 48
        %v3883 = vpop.permute.xlu0 %3882
        %3885 = vrot.lane.b32.xlu0 %v3788, 64
        %v3886 = vpop.permute.xlu0 %3885
        %3888 = vrot.lane.b32.xlu0 %v3854, 80
        %v3889 = vpop.permute.xlu0 %3888
        %3891 = vrot.lane.b32.xlu0 %v3806, 96
        %v3892 = vpop.permute.xlu0 %3891
        %3894 = vrot.lane.b32.xlu0 %v3872, 112
        %v3895 = vpop.permute.xlu0 %3894
        %3897 = vrot.lane.b32.xlu0 %v3863, 16
        %v3898 = vpop.permute.xlu0 %3897
        %3900 = vrot.lane.b32.xlu0 %v3807, 32
        %v3901 = vpop.permute.xlu0 %3900
        %3903 = vrot.lane.b32.xlu0 %v3873, 48
        %v3904 = vpop.permute.xlu0 %3903
        %3906 = vrot.lane.b32.xlu0 %v3804, 64
        %v3907 = vpop.permute.xlu0 %3906
        %3909 = vrot.lane.b32.xlu0 %v3870, 80
        %v3910 = vpop.permute.xlu0 %3909
        %3912 = vrot.lane.b32.xlu0 %v3808, 96
        %v3913 = vpop.permute.xlu0 %3912
        %3915 = vrot.lane.b32.xlu0 %v3874, 112
        %v3916 = vpop.permute.xlu0 %3915
        %v3919 = vsel %vm992, %v3781, %v3877
        %v3921 = vsel %vm996, %v3919, %v3880
        %v3923 = vsel %vm999, %v3921, %v3883
        %v3925 = vsel %vm1002, %v3923, %v3886
        %v3927 = vsel %vm1005, %v3925, %v3889
        %v3929 = vsel %vm1008, %v3927, %v3892
        %v3931 = vsel %vm1011, %v3929, %v3895
        %v3934 = vsel %vm992, %v3797, %v3898
        %v3936 = vsel %vm996, %v3934, %v3901
        %v3938 = vsel %vm999, %v3936, %v3904
        %v3940 = vsel %vm1002, %v3938, %v3907
        %v3942 = vsel %vm1005, %v3940, %v3910
        %v3944 = vsel %vm1008, %v3942, %v3913
        %v3946 = vsel %vm1011, %v3944, %v3916
        %3947 = vrot.lane.b32.xlu0 %v3481, 126
        %v3948 = vpop.permute.xlu0 %3947
        %3949 = vrot.lane.b32.xlu0 %v3482, 126
        %v3950 = vpop.permute.xlu0 %3949
        %3951 = vrot.lane.b32.xlu0 %v3483, 126
        %v3952 = vpop.permute.xlu0 %3951
        %3953 = vrot.lane.b32.xlu0 %v3484, 126
        %v3954 = vpop.permute.xlu0 %3953
        %v3957 = vpack.i.b16 %v3950, %v3948
        %v3959 = vshrl.u32 %v3948, 16
        %v3960 = vshrl.u32 %v3950, 16
        %v3961 = vpack.i.b16 %v3960, %v3959
        %v3965 = vpack.i.b16 %v3954, %v3952
        %v3967 = vshrl.u32 %v3952, 16
        %v3968 = vshrl.u32 %v3954, 16
        %v3969 = vpack.i.b16 %v3968, %v3967
        %v3971 = vcombine.high %v3957, %v3506
        %v3973 = vunpack.c.l.s4 1983009808
        %v3974 = vunpack.c.0.s8 %v3973
        %v3975 = vlaneseq
        %v3976 = vshrl.u32 %v3975, 7
        %v3977 = vsub.s32 %v3974, %v3976
        %v3978 = vrot.slane %v3957, %v3977
        %v3980 = vunpack.c.l.s4 1983009808
        %v3981 = vunpack.c.0.s8 %v3980
        %v3982 = vlaneseq
        %v3983 = vshrl.u32 %v3982, 7
        %v3984 = vsub.s32 %v3981, %v3983
        %v3985 = vrot.slane %v3971, %v3984
        %v3986 = vcombine.high %v3965, %v3506
        %v3988 = vunpack.c.l.s4 1983009808
        %v3989 = vunpack.c.0.s8 %v3988
        %v3990 = vlaneseq
        %v3991 = vshrl.u32 %v3990, 7
        %v3992 = vsub.s32 %v3989, %v3991
        %v3993 = vrot.slane %v3965, %v3992
        %v3995 = vunpack.c.l.s4 1983009808
        %v3996 = vunpack.c.0.s8 %v3995
        %v3997 = vlaneseq
        %v3998 = vshrl.u32 %v3997, 7
        %v3999 = vsub.s32 %v3996, %v3998
        %v4000 = vrot.slane %v3986, %v3999
        %v4001 = vcombine.low %v3978, %v3993
        %v4002 = vcombine.high %v3978, %v3993
        %v4004 = vunpack.c.l.s4 1934713408
        %v4005 = vunpack.c.0.s8 %v4004
        %v4006 = vlaneseq
        %v4007 = vshrl.u32 %v4006, 7
        %v4008 = vsub.s32 %v4005, %v4007
        %v4009 = vrot.slane %v4001, %v4008
        %v4011 = vunpack.c.l.s4 1934713408
        %v4012 = vunpack.c.0.s8 %v4011
        %v4013 = vlaneseq
        %v4014 = vshrl.u32 %v4013, 7
        %v4015 = vsub.s32 %v4012, %v4014
        %v4016 = vrot.slane %v4002, %v4015
        %v4017 = vcombine.low %v3985, %v4000
        %v4018 = vcombine.high %v3985, %v4000
        %v4020 = vunpack.c.l.s4 1934713408
        %v4021 = vunpack.c.0.s8 %v4020
        %v4022 = vlaneseq
        %v4023 = vshrl.u32 %v4022, 7
        %v4024 = vsub.s32 %v4021, %v4023
        %v4025 = vrot.slane %v4017, %v4024
        %v4027 = vunpack.c.l.s4 1934713408
        %v4028 = vunpack.c.0.s8 %v4027
        %v4029 = vlaneseq
        %v4030 = vshrl.u32 %v4029, 7
        %v4031 = vsub.s32 %v4028, %v4030
        %v4032 = vrot.slane %v4018, %v4031
        %v4033 = vcombine.high %v4009, 0
        %v4034 = vcombine.high %v4016, 0
        %v4035 = vcombine.high %v4025, 0
        %v4036 = vcombine.high %v4032, 0
        %v4037 = vcombine.high %v3961, %v3509
        %v4039 = vunpack.c.l.s4 1983009808
        %v4040 = vunpack.c.0.s8 %v4039
        %v4041 = vlaneseq
        %v4042 = vshrl.u32 %v4041, 7
        %v4043 = vsub.s32 %v4040, %v4042
        %v4044 = vrot.slane %v3961, %v4043
        %v4046 = vunpack.c.l.s4 1983009808
        %v4047 = vunpack.c.0.s8 %v4046
        %v4048 = vlaneseq
        %v4049 = vshrl.u32 %v4048, 7
        %v4050 = vsub.s32 %v4047, %v4049
        %v4051 = vrot.slane %v4037, %v4050
        %v4052 = vcombine.high %v3969, %v3509
        %v4054 = vunpack.c.l.s4 1983009808
        %v4055 = vunpack.c.0.s8 %v4054
        %v4056 = vlaneseq
        %v4057 = vshrl.u32 %v4056, 7
        %v4058 = vsub.s32 %v4055, %v4057
        %v4059 = vrot.slane %v3969, %v4058
        %v4061 = vunpack.c.l.s4 1983009808
        %v4062 = vunpack.c.0.s8 %v4061
        %v4063 = vlaneseq
        %v4064 = vshrl.u32 %v4063, 7
        %v4065 = vsub.s32 %v4062, %v4064
        %v4066 = vrot.slane %v4052, %v4065
        %v4067 = vcombine.low %v4044, %v4059
        %v4068 = vcombine.high %v4044, %v4059
        %v4070 = vunpack.c.l.s4 1934713408
        %v4071 = vunpack.c.0.s8 %v4070
        %v4072 = vlaneseq
        %v4073 = vshrl.u32 %v4072, 7
        %v4074 = vsub.s32 %v4071, %v4073
        %v4075 = vrot.slane %v4067, %v4074
        %v4077 = vunpack.c.l.s4 1934713408
        %v4078 = vunpack.c.0.s8 %v4077
        %v4079 = vlaneseq
        %v4080 = vshrl.u32 %v4079, 7
        %v4081 = vsub.s32 %v4078, %v4080
        %v4082 = vrot.slane %v4068, %v4081
        %v4083 = vcombine.low %v4051, %v4066
        %v4084 = vcombine.high %v4051, %v4066
        %v4086 = vunpack.c.l.s4 1934713408
        %v4087 = vunpack.c.0.s8 %v4086
        %v4088 = vlaneseq
        %v4089 = vshrl.u32 %v4088, 7
        %v4090 = vsub.s32 %v4087, %v4089
        %v4091 = vrot.slane %v4083, %v4090
        %v4093 = vunpack.c.l.s4 1934713408
        %v4094 = vunpack.c.0.s8 %v4093
        %v4095 = vlaneseq
        %v4096 = vshrl.u32 %v4095, 7
        %v4097 = vsub.s32 %v4094, %v4096
        %v4098 = vrot.slane %v4084, %v4097
        %v4099 = vcombine.high %v4075, 0
        %v4100 = vcombine.high %v4082, 0
        %v4101 = vcombine.high %v4091, 0
        %v4102 = vcombine.high %v4098, 0
        %4104 = vrot.lane.b32.xlu0 %v4075, 16
        %v4105 = vpop.permute.xlu0 %4104
        %4107 = vrot.lane.b32.xlu0 %v4033, 32
        %v4108 = vpop.permute.xlu0 %4107
        %4110 = vrot.lane.b32.xlu0 %v4099, 48
        %v4111 = vpop.permute.xlu0 %4110
        %4113 = vrot.lane.b32.xlu0 %v4016, 64
        %v4114 = vpop.permute.xlu0 %4113
        %4116 = vrot.lane.b32.xlu0 %v4082, 80
        %v4117 = vpop.permute.xlu0 %4116
        %4119 = vrot.lane.b32.xlu0 %v4034, 96
        %v4120 = vpop.permute.xlu0 %4119
        %4122 = vrot.lane.b32.xlu0 %v4100, 112
        %v4123 = vpop.permute.xlu0 %4122
        %4125 = vrot.lane.b32.xlu0 %v4091, 16
        %v4126 = vpop.permute.xlu0 %4125
        %4128 = vrot.lane.b32.xlu0 %v4035, 32
        %v4129 = vpop.permute.xlu0 %4128
        %4131 = vrot.lane.b32.xlu0 %v4101, 48
        %v4132 = vpop.permute.xlu0 %4131
        %4134 = vrot.lane.b32.xlu0 %v4032, 64
        %v4135 = vpop.permute.xlu0 %4134
        %4137 = vrot.lane.b32.xlu0 %v4098, 80
        %v4138 = vpop.permute.xlu0 %4137
        %4140 = vrot.lane.b32.xlu0 %v4036, 96
        %v4141 = vpop.permute.xlu0 %4140
        %4143 = vrot.lane.b32.xlu0 %v4102, 112
        %v4144 = vpop.permute.xlu0 %4143
        %v4147 = vsel %vm992, %v4009, %v4105
        %v4149 = vsel %vm996, %v4147, %v4108
        %v4151 = vsel %vm999, %v4149, %v4111
        %v4153 = vsel %vm1002, %v4151, %v4114
        %v4155 = vsel %vm1005, %v4153, %v4117
        %v4157 = vsel %vm1008, %v4155, %v4120
        %v4159 = vsel %vm1011, %v4157, %v4123
        %v4162 = vsel %vm992, %v4025, %v4126
        %v4164 = vsel %vm996, %v4162, %v4129
        %v4166 = vsel %vm999, %v4164, %v4132
        %v4168 = vsel %vm1002, %v4166, %v4135
        %v4170 = vsel %vm1005, %v4168, %v4138
        %v4172 = vsel %vm1008, %v4170, %v4141
        %v4174 = vsel %vm1011, %v4172, %v4144
        %v4176 = vshll.u32 %v3481, 16
        %v4178 = vrot.slane %v4176, 1
        %v4179 = vor.u32 %v3494, %v4178
        %v4181 = vshll.u32 %v3485, 16
        %v4183 = vrot.slane %v4181, 1
        %v4184 = vsel %vm1549, %v4179, %v4183
        %v4186 = vshll.u32 %v3482, 16
        %v4188 = vrot.slane %v4186, 1
        %v4189 = vor.u32 %v3495, %v4188
        %v4191 = vshll.u32 %v3486, 16
        %v4193 = vrot.slane %v4191, 1
        %v4194 = vsel %vm1549, %v4189, %v4193
        %v4196 = vshll.u32 %v3483, 16
        %v4198 = vrot.slane %v4196, 1
        %v4199 = vor.u32 %v3502, %v4198
        %v4201 = vshll.u32 %v3487, 16
        %v4203 = vrot.slane %v4201, 1
        %v4204 = vsel %vm1549, %v4199, %v4203
        %v4206 = vshll.u32 %v3484, 16
        %v4208 = vrot.slane %v4206, 1
        %v4209 = vor.u32 %v3503, %v4208
        %v4211 = vshll.u32 %v3488, 16
        %v4213 = vrot.slane %v4211, 1
        %v4214 = vsel %vm1549, %v4209, %v4213
        %v4217 = vpack.i.b16 %v4194, %v4184
        %v4219 = vshrl.u32 %v4184, 16
        %v4220 = vshrl.u32 %v4194, 16
        %v4221 = vpack.i.b16 %v4220, %v4219
        %v4225 = vpack.i.b16 %v4214, %v4204
        %v4227 = vshrl.u32 %v4204, 16
        %v4228 = vshrl.u32 %v4214, 16
        %v4229 = vpack.i.b16 %v4228, %v4227
        %v4231 = vcombine.high %v4217, %v3506
        %v4233 = vunpack.c.l.s4 1983009808
        %v4234 = vunpack.c.0.s8 %v4233
        %v4235 = vlaneseq
        %v4236 = vshrl.u32 %v4235, 7
        %v4237 = vsub.s32 %v4234, %v4236
        %v4238 = vrot.slane %v4217, %v4237
        %v4240 = vunpack.c.l.s4 1983009808
        %v4241 = vunpack.c.0.s8 %v4240
        %v4242 = vlaneseq
        %v4243 = vshrl.u32 %v4242, 7
        %v4244 = vsub.s32 %v4241, %v4243
        %v4245 = vrot.slane %v4231, %v4244
        %v4246 = vcombine.high %v4225, %v3506
        %v4248 = vunpack.c.l.s4 1983009808
        %v4249 = vunpack.c.0.s8 %v4248
        %v4250 = vlaneseq
        %v4251 = vshrl.u32 %v4250, 7
        %v4252 = vsub.s32 %v4249, %v4251
        %v4253 = vrot.slane %v4225, %v4252
        %v4255 = vunpack.c.l.s4 1983009808
        %v4256 = vunpack.c.0.s8 %v4255
        %v4257 = vlaneseq
        %v4258 = vshrl.u32 %v4257, 7
        %v4259 = vsub.s32 %v4256, %v4258
        %v4260 = vrot.slane %v4246, %v4259
        %v4261 = vcombine.low %v4238, %v4253
        %v4262 = vcombine.high %v4238, %v4253
        %v4264 = vunpack.c.l.s4 1934713408
        %v4265 = vunpack.c.0.s8 %v4264
        %v4266 = vlaneseq
        %v4267 = vshrl.u32 %v4266, 7
        %v4268 = vsub.s32 %v4265, %v4267
        %v4269 = vrot.slane %v4261, %v4268
        %v4271 = vunpack.c.l.s4 1934713408
        %v4272 = vunpack.c.0.s8 %v4271
        %v4273 = vlaneseq
        %v4274 = vshrl.u32 %v4273, 7
        %v4275 = vsub.s32 %v4272, %v4274
        %v4276 = vrot.slane %v4262, %v4275
        %v4277 = vcombine.low %v4245, %v4260
        %v4278 = vcombine.high %v4245, %v4260
        %v4280 = vunpack.c.l.s4 1934713408
        %v4281 = vunpack.c.0.s8 %v4280
        %v4282 = vlaneseq
        %v4283 = vshrl.u32 %v4282, 7
        %v4284 = vsub.s32 %v4281, %v4283
        %v4285 = vrot.slane %v4277, %v4284
        %v4287 = vunpack.c.l.s4 1934713408
        %v4288 = vunpack.c.0.s8 %v4287
        %v4289 = vlaneseq
        %v4290 = vshrl.u32 %v4289, 7
        %v4291 = vsub.s32 %v4288, %v4290
        %v4292 = vrot.slane %v4278, %v4291
        %v4293 = vcombine.high %v4269, 0
        %v4294 = vcombine.high %v4276, 0
        %v4295 = vcombine.high %v4285, 0
        %v4296 = vcombine.high %v4292, 0
        %v4297 = vcombine.high %v4221, %v3509
        %v4299 = vunpack.c.l.s4 1983009808
        %v4300 = vunpack.c.0.s8 %v4299
        %v4301 = vlaneseq
        %v4302 = vshrl.u32 %v4301, 7
        %v4303 = vsub.s32 %v4300, %v4302
        %v4304 = vrot.slane %v4221, %v4303
        %v4306 = vunpack.c.l.s4 1983009808
        %v4307 = vunpack.c.0.s8 %v4306
        %v4308 = vlaneseq
        %v4309 = vshrl.u32 %v4308, 7
        %v4310 = vsub.s32 %v4307, %v4309
        %v4311 = vrot.slane %v4297, %v4310
        %v4312 = vcombine.high %v4229, %v3509
        %v4314 = vunpack.c.l.s4 1983009808
        %v4315 = vunpack.c.0.s8 %v4314
        %v4316 = vlaneseq
        %v4317 = vshrl.u32 %v4316, 7
        %v4318 = vsub.s32 %v4315, %v4317
        %v4319 = vrot.slane %v4229, %v4318
        %v4321 = vunpack.c.l.s4 1983009808
        %v4322 = vunpack.c.0.s8 %v4321
        %v4323 = vlaneseq
        %v4324 = vshrl.u32 %v4323, 7
        %v4325 = vsub.s32 %v4322, %v4324
        %v4326 = vrot.slane %v4312, %v4325
        %v4327 = vcombine.low %v4304, %v4319
        %v4328 = vcombine.high %v4304, %v4319
        %v4330 = vunpack.c.l.s4 1934713408
        %v4331 = vunpack.c.0.s8 %v4330
        %v4332 = vlaneseq
        %v4333 = vshrl.u32 %v4332, 7
        %v4334 = vsub.s32 %v4331, %v4333
        %v4335 = vrot.slane %v4327, %v4334
        %v4337 = vunpack.c.l.s4 1934713408
        %v4338 = vunpack.c.0.s8 %v4337
        %v4339 = vlaneseq
        %v4340 = vshrl.u32 %v4339, 7
        %v4341 = vsub.s32 %v4338, %v4340
        %v4342 = vrot.slane %v4328, %v4341
        %v4343 = vcombine.low %v4311, %v4326
        %v4344 = vcombine.high %v4311, %v4326
        %v4346 = vunpack.c.l.s4 1934713408
        %v4347 = vunpack.c.0.s8 %v4346
        %v4348 = vlaneseq
        %v4349 = vshrl.u32 %v4348, 7
        %v4350 = vsub.s32 %v4347, %v4349
        %v4351 = vrot.slane %v4343, %v4350
        %v4353 = vunpack.c.l.s4 1934713408
        %v4354 = vunpack.c.0.s8 %v4353
        %v4355 = vlaneseq
        %v4356 = vshrl.u32 %v4355, 7
        %v4357 = vsub.s32 %v4354, %v4356
        %v4358 = vrot.slane %v4344, %v4357
        %v4359 = vcombine.high %v4335, 0
        %v4360 = vcombine.high %v4342, 0
        %v4361 = vcombine.high %v4351, 0
        %v4362 = vcombine.high %v4358, 0
        %4364 = vrot.lane.b32.xlu0 %v4335, 16
        %v4365 = vpop.permute.xlu0 %4364
        %4367 = vrot.lane.b32.xlu0 %v4293, 32
        %v4368 = vpop.permute.xlu0 %4367
        %4370 = vrot.lane.b32.xlu0 %v4359, 48
        %v4371 = vpop.permute.xlu0 %4370
        %4373 = vrot.lane.b32.xlu0 %v4276, 64
        %v4374 = vpop.permute.xlu0 %4373
        %4376 = vrot.lane.b32.xlu0 %v4342, 80
        %v4377 = vpop.permute.xlu0 %4376
        %4379 = vrot.lane.b32.xlu0 %v4294, 96
        %v4380 = vpop.permute.xlu0 %4379
        %4382 = vrot.lane.b32.xlu0 %v4360, 112
        %v4383 = vpop.permute.xlu0 %4382
        %4385 = vrot.lane.b32.xlu0 %v4351, 16
        %v4386 = vpop.permute.xlu0 %4385
        %4388 = vrot.lane.b32.xlu0 %v4295, 32
        %v4389 = vpop.permute.xlu0 %4388
        %4391 = vrot.lane.b32.xlu0 %v4361, 48
        %v4392 = vpop.permute.xlu0 %4391
        %4394 = vrot.lane.b32.xlu0 %v4292, 64
        %v4395 = vpop.permute.xlu0 %4394
        %4397 = vrot.lane.b32.xlu0 %v4358, 80
        %v4398 = vpop.permute.xlu0 %4397
        %4400 = vrot.lane.b32.xlu0 %v4296, 96
        %v4401 = vpop.permute.xlu0 %4400
        %4403 = vrot.lane.b32.xlu0 %v4362, 112
        %v4404 = vpop.permute.xlu0 %4403
        %v4407 = vsel %vm992, %v4269, %v4365
        %v4409 = vsel %vm996, %v4407, %v4368
        %v4411 = vsel %vm999, %v4409, %v4371
        %v4413 = vsel %vm1002, %v4411, %v4374
        %v4415 = vsel %vm1005, %v4413, %v4377
        %v4417 = vsel %vm1008, %v4415, %v4380
        %v4419 = vsel %vm1011, %v4417, %v4383
        %v4422 = vsel %vm992, %v4285, %v4386
        %v4424 = vsel %vm996, %v4422, %v4389
        %v4426 = vsel %vm999, %v4424, %v4392
        %v4428 = vsel %vm1002, %v4426, %v4395
        %v4430 = vsel %vm1005, %v4428, %v4398
        %v4432 = vsel %vm1008, %v4430, %v4401
        %v4434 = vsel %vm1011, %v4432, %v4404
        %4435 = vrot.lane.b32.xlu0 %v4184, 127
        %v4436 = vpop.permute.xlu0 %4435
        %4437 = vrot.lane.b32.xlu0 %v4194, 127
        %v4438 = vpop.permute.xlu0 %4437
        %4439 = vrot.lane.b32.xlu0 %v4204, 127
        %v4440 = vpop.permute.xlu0 %4439
        %4441 = vrot.lane.b32.xlu0 %v4214, 127
        %v4442 = vpop.permute.xlu0 %4441
        %v4445 = vpack.i.b16 %v4438, %v4436
        %v4447 = vshrl.u32 %v4436, 16
        %v4448 = vshrl.u32 %v4438, 16
        %v4449 = vpack.i.b16 %v4448, %v4447
        %v4453 = vpack.i.b16 %v4442, %v4440
        %v4455 = vshrl.u32 %v4440, 16
        %v4456 = vshrl.u32 %v4442, 16
        %v4457 = vpack.i.b16 %v4456, %v4455
        %v4459 = vcombine.high %v4445, %v3506
        %v4461 = vunpack.c.l.s4 1983009808
        %v4462 = vunpack.c.0.s8 %v4461
        %v4463 = vlaneseq
        %v4464 = vshrl.u32 %v4463, 7
        %v4465 = vsub.s32 %v4462, %v4464
        %v4466 = vrot.slane %v4445, %v4465
        %v4468 = vunpack.c.l.s4 1983009808
        %v4469 = vunpack.c.0.s8 %v4468
        %v4470 = vlaneseq
        %v4471 = vshrl.u32 %v4470, 7
        %v4472 = vsub.s32 %v4469, %v4471
        %v4473 = vrot.slane %v4459, %v4472
        %v4474 = vcombine.high %v4453, %v3506
        %v4476 = vunpack.c.l.s4 1983009808
        %v4477 = vunpack.c.0.s8 %v4476
        %v4478 = vlaneseq
        %v4479 = vshrl.u32 %v4478, 7
        %v4480 = vsub.s32 %v4477, %v4479
        %v4481 = vrot.slane %v4453, %v4480
        %v4483 = vunpack.c.l.s4 1983009808
        %v4484 = vunpack.c.0.s8 %v4483
        %v4485 = vlaneseq
        %v4486 = vshrl.u32 %v4485, 7
        %v4487 = vsub.s32 %v4484, %v4486
        %v4488 = vrot.slane %v4474, %v4487
        %v4489 = vcombine.low %v4466, %v4481
        %v4490 = vcombine.high %v4466, %v4481
        %v4492 = vunpack.c.l.s4 1934713408
        %v4493 = vunpack.c.0.s8 %v4492
        %v4494 = vlaneseq
        %v4495 = vshrl.u32 %v4494, 7
        %v4496 = vsub.s32 %v4493, %v4495
        %v4497 = vrot.slane %v4489, %v4496
        %v4499 = vunpack.c.l.s4 1934713408
        %v4500 = vunpack.c.0.s8 %v4499
        %v4501 = vlaneseq
        %v4502 = vshrl.u32 %v4501, 7
        %v4503 = vsub.s32 %v4500, %v4502
        %v4504 = vrot.slane %v4490, %v4503
        %v4505 = vcombine.low %v4473, %v4488
        %v4506 = vcombine.high %v4473, %v4488
        %v4508 = vunpack.c.l.s4 1934713408
        %v4509 = vunpack.c.0.s8 %v4508
        %v4510 = vlaneseq
        %v4511 = vshrl.u32 %v4510, 7
        %v4512 = vsub.s32 %v4509, %v4511
        %v4513 = vrot.slane %v4505, %v4512
        %v4515 = vunpack.c.l.s4 1934713408
        %v4516 = vunpack.c.0.s8 %v4515
        %v4517 = vlaneseq
        %v4518 = vshrl.u32 %v4517, 7
        %v4519 = vsub.s32 %v4516, %v4518
        %v4520 = vrot.slane %v4506, %v4519
        %v4521 = vcombine.high %v4497, 0
        %v4522 = vcombine.high %v4504, 0
        %v4523 = vcombine.high %v4513, 0
        %v4524 = vcombine.high %v4520, 0
        %v4525 = vcombine.high %v4449, %v3509
        %v4527 = vunpack.c.l.s4 1983009808
        %v4528 = vunpack.c.0.s8 %v4527
        %v4529 = vlaneseq
        %v4530 = vshrl.u32 %v4529, 7
        %v4531 = vsub.s32 %v4528, %v4530
        %v4532 = vrot.slane %v4449, %v4531
        %v4534 = vunpack.c.l.s4 1983009808
        %v4535 = vunpack.c.0.s8 %v4534
        %v4536 = vlaneseq
        %v4537 = vshrl.u32 %v4536, 7
        %v4538 = vsub.s32 %v4535, %v4537
        %v4539 = vrot.slane %v4525, %v4538
        %v4540 = vcombine.high %v4457, %v3509
        %v4542 = vunpack.c.l.s4 1983009808
        %v4543 = vunpack.c.0.s8 %v4542
        %v4544 = vlaneseq
        %v4545 = vshrl.u32 %v4544, 7
        %v4546 = vsub.s32 %v4543, %v4545
        %v4547 = vrot.slane %v4457, %v4546
        %v4549 = vunpack.c.l.s4 1983009808
        %v4550 = vunpack.c.0.s8 %v4549
        %v4551 = vlaneseq
        %v4552 = vshrl.u32 %v4551, 7
        %v4553 = vsub.s32 %v4550, %v4552
        %v4554 = vrot.slane %v4540, %v4553
        %v4555 = vcombine.low %v4532, %v4547
        %v4556 = vcombine.high %v4532, %v4547
        %v4558 = vunpack.c.l.s4 1934713408
        %v4559 = vunpack.c.0.s8 %v4558
        %v4560 = vlaneseq
        %v4561 = vshrl.u32 %v4560, 7
        %v4562 = vsub.s32 %v4559, %v4561
        %v4563 = vrot.slane %v4555, %v4562
        %v4565 = vunpack.c.l.s4 1934713408
        %v4566 = vunpack.c.0.s8 %v4565
        %v4567 = vlaneseq
        %v4568 = vshrl.u32 %v4567, 7
        %v4569 = vsub.s32 %v4566, %v4568
        %v4570 = vrot.slane %v4556, %v4569
        %v4571 = vcombine.low %v4539, %v4554
        %v4572 = vcombine.high %v4539, %v4554
        %v4574 = vunpack.c.l.s4 1934713408
        %v4575 = vunpack.c.0.s8 %v4574
        %v4576 = vlaneseq
        %v4577 = vshrl.u32 %v4576, 7
        %v4578 = vsub.s32 %v4575, %v4577
        %v4579 = vrot.slane %v4571, %v4578
        %v4581 = vunpack.c.l.s4 1934713408
        %v4582 = vunpack.c.0.s8 %v4581
        %v4583 = vlaneseq
        %v4584 = vshrl.u32 %v4583, 7
        %v4585 = vsub.s32 %v4582, %v4584
        %v4586 = vrot.slane %v4572, %v4585
        %v4587 = vcombine.high %v4563, 0
        %v4588 = vcombine.high %v4570, 0
        %v4589 = vcombine.high %v4579, 0
        %v4590 = vcombine.high %v4586, 0
        %4592 = vrot.lane.b32.xlu0 %v4563, 16
        %v4593 = vpop.permute.xlu0 %4592
        %4595 = vrot.lane.b32.xlu0 %v4521, 32
        %v4596 = vpop.permute.xlu0 %4595
        %4598 = vrot.lane.b32.xlu0 %v4587, 48
        %v4599 = vpop.permute.xlu0 %4598
        %4601 = vrot.lane.b32.xlu0 %v4504, 64
        %v4602 = vpop.permute.xlu0 %4601
        %4604 = vrot.lane.b32.xlu0 %v4570, 80
        %v4605 = vpop.permute.xlu0 %4604
        %4607 = vrot.lane.b32.xlu0 %v4522, 96
        %v4608 = vpop.permute.xlu0 %4607
        %4610 = vrot.lane.b32.xlu0 %v4588, 112
        %v4611 = vpop.permute.xlu0 %4610
        %4613 = vrot.lane.b32.xlu0 %v4579, 16
        %v4614 = vpop.permute.xlu0 %4613
        %4616 = vrot.lane.b32.xlu0 %v4523, 32
        %v4617 = vpop.permute.xlu0 %4616
        %4619 = vrot.lane.b32.xlu0 %v4589, 48
        %v4620 = vpop.permute.xlu0 %4619
        %4622 = vrot.lane.b32.xlu0 %v4520, 64
        %v4623 = vpop.permute.xlu0 %4622
        %4625 = vrot.lane.b32.xlu0 %v4586, 80
        %v4626 = vpop.permute.xlu0 %4625
        %4628 = vrot.lane.b32.xlu0 %v4524, 96
        %v4629 = vpop.permute.xlu0 %4628
        %4631 = vrot.lane.b32.xlu0 %v4590, 112
        %v4632 = vpop.permute.xlu0 %4631
        %v4635 = vsel %vm992, %v4497, %v4593
        %v4637 = vsel %vm996, %v4635, %v4596
        %v4639 = vsel %vm999, %v4637, %v4599
        %v4641 = vsel %vm1002, %v4639, %v4602
        %v4643 = vsel %vm1005, %v4641, %v4605
        %v4645 = vsel %vm1008, %v4643, %v4608
        %v4647 = vsel %vm1011, %v4645, %v4611
        %v4650 = vsel %vm992, %v4513, %v4614
        %v4652 = vsel %vm996, %v4650, %v4617
        %v4654 = vsel %vm999, %v4652, %v4620
        %v4656 = vsel %vm1002, %v4654, %v4623
        %v4658 = vsel %vm1005, %v4656, %v4626
        %v4660 = vsel %vm1008, %v4658, %v4629
        %v4662 = vsel %vm1011, %v4660, %v4632
        %4663 = vrot.lane.b32.xlu0 %v4184, 126
        %v4664 = vpop.permute.xlu0 %4663
        %4665 = vrot.lane.b32.xlu0 %v4194, 126
        %v4666 = vpop.permute.xlu0 %4665
        %4667 = vrot.lane.b32.xlu0 %v4204, 126
        %v4668 = vpop.permute.xlu0 %4667
        %4669 = vrot.lane.b32.xlu0 %v4214, 126
        %v4670 = vpop.permute.xlu0 %4669
        %v4673 = vpack.i.b16 %v4666, %v4664
        %v4675 = vshrl.u32 %v4664, 16
        %v4676 = vshrl.u32 %v4666, 16
        %v4677 = vpack.i.b16 %v4676, %v4675
        %v4681 = vpack.i.b16 %v4670, %v4668
        %v4683 = vshrl.u32 %v4668, 16
        %v4684 = vshrl.u32 %v4670, 16
        %v4685 = vpack.i.b16 %v4684, %v4683
        %v4687 = vcombine.high %v4673, %v3506
        %v4689 = vunpack.c.l.s4 1983009808
        %v4690 = vunpack.c.0.s8 %v4689
        %v4691 = vlaneseq
        %v4692 = vshrl.u32 %v4691, 7
        %v4693 = vsub.s32 %v4690, %v4692
        %v4694 = vrot.slane %v4673, %v4693
        %v4696 = vunpack.c.l.s4 1983009808
        %v4697 = vunpack.c.0.s8 %v4696
        %v4698 = vlaneseq
        %v4699 = vshrl.u32 %v4698, 7
        %v4700 = vsub.s32 %v4697, %v4699
        %v4701 = vrot.slane %v4687, %v4700
        %v4702 = vcombine.high %v4681, %v3506
        %v4704 = vunpack.c.l.s4 1983009808
        %v4705 = vunpack.c.0.s8 %v4704
        %v4706 = vlaneseq
        %v4707 = vshrl.u32 %v4706, 7
        %v4708 = vsub.s32 %v4705, %v4707
        %v4709 = vrot.slane %v4681, %v4708
        %v4711 = vunpack.c.l.s4 1983009808
        %v4712 = vunpack.c.0.s8 %v4711
        %v4713 = vlaneseq
        %v4714 = vshrl.u32 %v4713, 7
        %v4715 = vsub.s32 %v4712, %v4714
        %v4716 = vrot.slane %v4702, %v4715
        %v4717 = vcombine.low %v4694, %v4709
        %v4718 = vcombine.high %v4694, %v4709
        %v4720 = vunpack.c.l.s4 1934713408
        %v4721 = vunpack.c.0.s8 %v4720
        %v4722 = vlaneseq
        %v4723 = vshrl.u32 %v4722, 7
        %v4724 = vsub.s32 %v4721, %v4723
        %v4725 = vrot.slane %v4717, %v4724
        %v4727 = vunpack.c.l.s4 1934713408
        %v4728 = vunpack.c.0.s8 %v4727
        %v4729 = vlaneseq
        %v4730 = vshrl.u32 %v4729, 7
        %v4731 = vsub.s32 %v4728, %v4730
        %v4732 = vrot.slane %v4718, %v4731
        %v4733 = vcombine.low %v4701, %v4716
        %v4734 = vcombine.high %v4701, %v4716
        %v4736 = vunpack.c.l.s4 1934713408
        %v4737 = vunpack.c.0.s8 %v4736
        %v4738 = vlaneseq
        %v4739 = vshrl.u32 %v4738, 7
        %v4740 = vsub.s32 %v4737, %v4739
        %v4741 = vrot.slane %v4733, %v4740
        %v4743 = vunpack.c.l.s4 1934713408
        %v4744 = vunpack.c.0.s8 %v4743
        %v4745 = vlaneseq
        %v4746 = vshrl.u32 %v4745, 7
        %v4747 = vsub.s32 %v4744, %v4746
        %v4748 = vrot.slane %v4734, %v4747
        %v4749 = vcombine.high %v4725, 0
        %v4750 = vcombine.high %v4732, 0
        %v4751 = vcombine.high %v4741, 0
        %v4752 = vcombine.high %v4748, 0
        %v4753 = vcombine.high %v4677, %v3509
        %v4755 = vunpack.c.l.s4 1983009808
        %v4756 = vunpack.c.0.s8 %v4755
        %v4757 = vlaneseq
        %v4758 = vshrl.u32 %v4757, 7
        %v4759 = vsub.s32 %v4756, %v4758
        %v4760 = vrot.slane %v4677, %v4759
        %v4762 = vunpack.c.l.s4 1983009808
        %v4763 = vunpack.c.0.s8 %v4762
        %v4764 = vlaneseq
        %v4765 = vshrl.u32 %v4764, 7
        %v4766 = vsub.s32 %v4763, %v4765
        %v4767 = vrot.slane %v4753, %v4766
        %v4768 = vcombine.high %v4685, %v3509
        %v4770 = vunpack.c.l.s4 1983009808
        %v4771 = vunpack.c.0.s8 %v4770
        %v4772 = vlaneseq
        %v4773 = vshrl.u32 %v4772, 7
        %v4774 = vsub.s32 %v4771, %v4773
        %v4775 = vrot.slane %v4685, %v4774
        %v4777 = vunpack.c.l.s4 1983009808
        %v4778 = vunpack.c.0.s8 %v4777
        %v4779 = vlaneseq
        %v4780 = vshrl.u32 %v4779, 7
        %v4781 = vsub.s32 %v4778, %v4780
        %v4782 = vrot.slane %v4768, %v4781
        %v4783 = vcombine.low %v4760, %v4775
        %v4784 = vcombine.high %v4760, %v4775
        %v4786 = vunpack.c.l.s4 1934713408
        %v4787 = vunpack.c.0.s8 %v4786
        %v4788 = vlaneseq
        %v4789 = vshrl.u32 %v4788, 7
        %v4790 = vsub.s32 %v4787, %v4789
        %v4791 = vrot.slane %v4783, %v4790
        %v4793 = vunpack.c.l.s4 1934713408
        %v4794 = vunpack.c.0.s8 %v4793
        %v4795 = vlaneseq
        %v4796 = vshrl.u32 %v4795, 7
        %v4797 = vsub.s32 %v4794, %v4796
        %v4798 = vrot.slane %v4784, %v4797
        %v4799 = vcombine.low %v4767, %v4782
        %v4800 = vcombine.high %v4767, %v4782
        %v4802 = vunpack.c.l.s4 1934713408
        %v4803 = vunpack.c.0.s8 %v4802
        %v4804 = vlaneseq
        %v4805 = vshrl.u32 %v4804, 7
        %v4806 = vsub.s32 %v4803, %v4805
        %v4807 = vrot.slane %v4799, %v4806
        %v4809 = vunpack.c.l.s4 1934713408
        %v4810 = vunpack.c.0.s8 %v4809
        %v4811 = vlaneseq
        %v4812 = vshrl.u32 %v4811, 7
        %v4813 = vsub.s32 %v4810, %v4812
        %v4814 = vrot.slane %v4800, %v4813
        %v4815 = vcombine.high %v4791, 0
        %v4816 = vcombine.high %v4798, 0
        %v4817 = vcombine.high %v4807, 0
        %v4818 = vcombine.high %v4814, 0
        %4820 = vrot.lane.b32.xlu0 %v4791, 16
        %v4821 = vpop.permute.xlu0 %4820
        %4823 = vrot.lane.b32.xlu0 %v4749, 32
        %v4824 = vpop.permute.xlu0 %4823
        %4826 = vrot.lane.b32.xlu0 %v4815, 48
        %v4827 = vpop.permute.xlu0 %4826
        %4829 = vrot.lane.b32.xlu0 %v4732, 64
        %v4830 = vpop.permute.xlu0 %4829
        %4832 = vrot.lane.b32.xlu0 %v4798, 80
        %v4833 = vpop.permute.xlu0 %4832
        %4835 = vrot.lane.b32.xlu0 %v4750, 96
        %v4836 = vpop.permute.xlu0 %4835
        %4838 = vrot.lane.b32.xlu0 %v4816, 112
        %v4839 = vpop.permute.xlu0 %4838
        %4841 = vrot.lane.b32.xlu0 %v4807, 16
        %v4842 = vpop.permute.xlu0 %4841
        %4844 = vrot.lane.b32.xlu0 %v4751, 32
        %v4845 = vpop.permute.xlu0 %4844
        %4847 = vrot.lane.b32.xlu0 %v4817, 48
        %v4848 = vpop.permute.xlu0 %4847
        %4850 = vrot.lane.b32.xlu0 %v4748, 64
        %v4851 = vpop.permute.xlu0 %4850
        %4853 = vrot.lane.b32.xlu0 %v4814, 80
        %v4854 = vpop.permute.xlu0 %4853
        %4856 = vrot.lane.b32.xlu0 %v4752, 96
        %v4857 = vpop.permute.xlu0 %4856
        %4859 = vrot.lane.b32.xlu0 %v4818, 112
        %v4860 = vpop.permute.xlu0 %4859
        %v4863 = vsel %vm992, %v4725, %v4821
        %v4865 = vsel %vm996, %v4863, %v4824
        %v4867 = vsel %vm999, %v4865, %v4827
        %v4869 = vsel %vm1002, %v4867, %v4830
        %v4871 = vsel %vm1005, %v4869, %v4833
        %v4873 = vsel %vm1008, %v4871, %v4836
        %v4875 = vsel %vm1011, %v4873, %v4839
        %v4878 = vsel %vm992, %v4741, %v4842
        %v4880 = vsel %vm996, %v4878, %v4845
        %v4882 = vsel %vm999, %v4880, %v4848
        %v4884 = vsel %vm1002, %v4882, %v4851
        %v4886 = vsel %vm1005, %v4884, %v4854
        %v4888 = vsel %vm1008, %v4886, %v4857
        %v4890 = vsel %vm1011, %v4888, %v4860
        %v4895 = vrot.slane %v3481, 1
        %v4896 = vrot.slane %v3485, 1
        %v4897 = vsel %vm2390, %v4895, %v4896
        %v4898 = vrot.slane %v3482, 1
        %v4899 = vrot.slane %v3486, 1
        %v4900 = vsel %vm2390, %v4898, %v4899
        %v4901 = vrot.slane %v3483, 1
        %v4902 = vrot.slane %v3487, 1
        %v4903 = vsel %vm2390, %v4901, %v4902
        %v4904 = vrot.slane %v3484, 1
        %v4905 = vrot.slane %v3488, 1
        %v4906 = vsel %vm2390, %v4904, %v4905
        %v4909 = vpack.i.b16 %v4900, %v4897
        %v4911 = vshrl.u32 %v4897, 16
        %v4912 = vshrl.u32 %v4900, 16
        %v4913 = vpack.i.b16 %v4912, %v4911
        %v4917 = vpack.i.b16 %v4906, %v4903
        %v4919 = vshrl.u32 %v4903, 16
        %v4920 = vshrl.u32 %v4906, 16
        %v4921 = vpack.i.b16 %v4920, %v4919
        %v4923 = vcombine.high %v4909, %v3506
        %v4925 = vunpack.c.l.s4 1983009808
        %v4926 = vunpack.c.0.s8 %v4925
        %v4927 = vlaneseq
        %v4928 = vshrl.u32 %v4927, 7
        %v4929 = vsub.s32 %v4926, %v4928
        %v4930 = vrot.slane %v4909, %v4929
        %v4932 = vunpack.c.l.s4 1983009808
        %v4933 = vunpack.c.0.s8 %v4932
        %v4934 = vlaneseq
        %v4935 = vshrl.u32 %v4934, 7
        %v4936 = vsub.s32 %v4933, %v4935
        %v4937 = vrot.slane %v4923, %v4936
        %v4938 = vcombine.high %v4917, %v3506
        %v4940 = vunpack.c.l.s4 1983009808
        %v4941 = vunpack.c.0.s8 %v4940
        %v4942 = vlaneseq
        %v4943 = vshrl.u32 %v4942, 7
        %v4944 = vsub.s32 %v4941, %v4943
        %v4945 = vrot.slane %v4917, %v4944
        %v4947 = vunpack.c.l.s4 1983009808
        %v4948 = vunpack.c.0.s8 %v4947
        %v4949 = vlaneseq
        %v4950 = vshrl.u32 %v4949, 7
        %v4951 = vsub.s32 %v4948, %v4950
        %v4952 = vrot.slane %v4938, %v4951
        %v4953 = vcombine.low %v4930, %v4945
        %v4954 = vcombine.high %v4930, %v4945
        %v4956 = vunpack.c.l.s4 1934713408
        %v4957 = vunpack.c.0.s8 %v4956
        %v4958 = vlaneseq
        %v4959 = vshrl.u32 %v4958, 7
        %v4960 = vsub.s32 %v4957, %v4959
        %v4961 = vrot.slane %v4953, %v4960
        %v4963 = vunpack.c.l.s4 1934713408
        %v4964 = vunpack.c.0.s8 %v4963
        %v4965 = vlaneseq
        %v4966 = vshrl.u32 %v4965, 7
        %v4967 = vsub.s32 %v4964, %v4966
        %v4968 = vrot.slane %v4954, %v4967
        %v4969 = vcombine.low %v4937, %v4952
        %v4970 = vcombine.high %v4937, %v4952
        %v4972 = vunpack.c.l.s4 1934713408
        %v4973 = vunpack.c.0.s8 %v4972
        %v4974 = vlaneseq
        %v4975 = vshrl.u32 %v4974, 7
        %v4976 = vsub.s32 %v4973, %v4975
        %v4977 = vrot.slane %v4969, %v4976
        %v4979 = vunpack.c.l.s4 1934713408
        %v4980 = vunpack.c.0.s8 %v4979
        %v4981 = vlaneseq
        %v4982 = vshrl.u32 %v4981, 7
        %v4983 = vsub.s32 %v4980, %v4982
        %v4984 = vrot.slane %v4970, %v4983
        %v4985 = vcombine.high %v4961, 0
        %v4986 = vcombine.high %v4968, 0
        %v4987 = vcombine.high %v4977, 0
        %v4988 = vcombine.high %v4984, 0
        %v4989 = vcombine.high %v4913, %v3509
        %v4991 = vunpack.c.l.s4 1983009808
        %v4992 = vunpack.c.0.s8 %v4991
        %v4993 = vlaneseq
        %v4994 = vshrl.u32 %v4993, 7
        %v4995 = vsub.s32 %v4992, %v4994
        %v4996 = vrot.slane %v4913, %v4995
        %v4998 = vunpack.c.l.s4 1983009808
        %v4999 = vunpack.c.0.s8 %v4998
        %v5000 = vlaneseq
        %v5001 = vshrl.u32 %v5000, 7
        %v5002 = vsub.s32 %v4999, %v5001
        %v5003 = vrot.slane %v4989, %v5002
        %v5004 = vcombine.high %v4921, %v3509
        %v5006 = vunpack.c.l.s4 1983009808
        %v5007 = vunpack.c.0.s8 %v5006
        %v5008 = vlaneseq
        %v5009 = vshrl.u32 %v5008, 7
        %v5010 = vsub.s32 %v5007, %v5009
        %v5011 = vrot.slane %v4921, %v5010
        %v5013 = vunpack.c.l.s4 1983009808
        %v5014 = vunpack.c.0.s8 %v5013
        %v5015 = vlaneseq
        %v5016 = vshrl.u32 %v5015, 7
        %v5017 = vsub.s32 %v5014, %v5016
        %v5018 = vrot.slane %v5004, %v5017
        %v5019 = vcombine.low %v4996, %v5011
        %v5020 = vcombine.high %v4996, %v5011
        %v5022 = vunpack.c.l.s4 1934713408
        %v5023 = vunpack.c.0.s8 %v5022
        %v5024 = vlaneseq
        %v5025 = vshrl.u32 %v5024, 7
        %v5026 = vsub.s32 %v5023, %v5025
        %v5027 = vrot.slane %v5019, %v5026
        %v5029 = vunpack.c.l.s4 1934713408
        %v5030 = vunpack.c.0.s8 %v5029
        %v5031 = vlaneseq
        %v5032 = vshrl.u32 %v5031, 7
        %v5033 = vsub.s32 %v5030, %v5032
        %v5034 = vrot.slane %v5020, %v5033
        %v5035 = vcombine.low %v5003, %v5018
        %v5036 = vcombine.high %v5003, %v5018
        %v5038 = vunpack.c.l.s4 1934713408
        %v5039 = vunpack.c.0.s8 %v5038
        %v5040 = vlaneseq
        %v5041 = vshrl.u32 %v5040, 7
        %v5042 = vsub.s32 %v5039, %v5041
        %v5043 = vrot.slane %v5035, %v5042
        %v5045 = vunpack.c.l.s4 1934713408
        %v5046 = vunpack.c.0.s8 %v5045
        %v5047 = vlaneseq
        %v5048 = vshrl.u32 %v5047, 7
        %v5049 = vsub.s32 %v5046, %v5048
        %v5050 = vrot.slane %v5036, %v5049
        %v5051 = vcombine.high %v5027, 0
        %v5052 = vcombine.high %v5034, 0
        %v5053 = vcombine.high %v5043, 0
        %v5054 = vcombine.high %v5050, 0
        %5056 = vrot.lane.b32.xlu0 %v5027, 16
        %v5057 = vpop.permute.xlu0 %5056
        %5059 = vrot.lane.b32.xlu0 %v4985, 32
        %v5060 = vpop.permute.xlu0 %5059
        %5062 = vrot.lane.b32.xlu0 %v5051, 48
        %v5063 = vpop.permute.xlu0 %5062
        %5065 = vrot.lane.b32.xlu0 %v4968, 64
        %v5066 = vpop.permute.xlu0 %5065
        %5068 = vrot.lane.b32.xlu0 %v5034, 80
        %v5069 = vpop.permute.xlu0 %5068
        %5071 = vrot.lane.b32.xlu0 %v4986, 96
        %v5072 = vpop.permute.xlu0 %5071
        %5074 = vrot.lane.b32.xlu0 %v5052, 112
        %v5075 = vpop.permute.xlu0 %5074
        %5077 = vrot.lane.b32.xlu0 %v5043, 16
        %v5078 = vpop.permute.xlu0 %5077
        %5080 = vrot.lane.b32.xlu0 %v4987, 32
        %v5081 = vpop.permute.xlu0 %5080
        %5083 = vrot.lane.b32.xlu0 %v5053, 48
        %v5084 = vpop.permute.xlu0 %5083
        %5086 = vrot.lane.b32.xlu0 %v4984, 64
        %v5087 = vpop.permute.xlu0 %5086
        %5089 = vrot.lane.b32.xlu0 %v5050, 80
        %v5090 = vpop.permute.xlu0 %5089
        %5092 = vrot.lane.b32.xlu0 %v4988, 96
        %v5093 = vpop.permute.xlu0 %5092
        %5095 = vrot.lane.b32.xlu0 %v5054, 112
        %v5096 = vpop.permute.xlu0 %5095
        %v5099 = vsel %vm992, %v4961, %v5057
        %v5101 = vsel %vm996, %v5099, %v5060
        %v5103 = vsel %vm999, %v5101, %v5063
        %v5105 = vsel %vm1002, %v5103, %v5066
        %v5107 = vsel %vm1005, %v5105, %v5069
        %v5109 = vsel %vm1008, %v5107, %v5072
        %v5111 = vsel %vm1011, %v5109, %v5075
        %v5114 = vsel %vm992, %v4977, %v5078
        %v5116 = vsel %vm996, %v5114, %v5081
        %v5118 = vsel %vm999, %v5116, %v5084
        %v5120 = vsel %vm1002, %v5118, %v5087
        %v5122 = vsel %vm1005, %v5120, %v5090
        %v5124 = vsel %vm1008, %v5122, %v5093
        %v5126 = vsel %vm1011, %v5124, %v5096
        %5127 = vrot.lane.b32.xlu0 %v4897, 127
        %v5128 = vpop.permute.xlu0 %5127
        %5129 = vrot.lane.b32.xlu0 %v4900, 127
        %v5130 = vpop.permute.xlu0 %5129
        %5131 = vrot.lane.b32.xlu0 %v4903, 127
        %v5132 = vpop.permute.xlu0 %5131
        %5133 = vrot.lane.b32.xlu0 %v4906, 127
        %v5134 = vpop.permute.xlu0 %5133
        %v5137 = vpack.i.b16 %v5130, %v5128
        %v5139 = vshrl.u32 %v5128, 16
        %v5140 = vshrl.u32 %v5130, 16
        %v5141 = vpack.i.b16 %v5140, %v5139
        %v5145 = vpack.i.b16 %v5134, %v5132
        %v5147 = vshrl.u32 %v5132, 16
        %v5148 = vshrl.u32 %v5134, 16
        %v5149 = vpack.i.b16 %v5148, %v5147
        %v5151 = vcombine.high %v5137, %v3506
        %v5153 = vunpack.c.l.s4 1983009808
        %v5154 = vunpack.c.0.s8 %v5153
        %v5155 = vlaneseq
        %v5156 = vshrl.u32 %v5155, 7
        %v5157 = vsub.s32 %v5154, %v5156
        %v5158 = vrot.slane %v5137, %v5157
        %v5160 = vunpack.c.l.s4 1983009808
        %v5161 = vunpack.c.0.s8 %v5160
        %v5162 = vlaneseq
        %v5163 = vshrl.u32 %v5162, 7
        %v5164 = vsub.s32 %v5161, %v5163
        %v5165 = vrot.slane %v5151, %v5164
        %v5166 = vcombine.high %v5145, %v3506
        %v5168 = vunpack.c.l.s4 1983009808
        %v5169 = vunpack.c.0.s8 %v5168
        %v5170 = vlaneseq
        %v5171 = vshrl.u32 %v5170, 7
        %v5172 = vsub.s32 %v5169, %v5171
        %v5173 = vrot.slane %v5145, %v5172
        %v5175 = vunpack.c.l.s4 1983009808
        %v5176 = vunpack.c.0.s8 %v5175
        %v5177 = vlaneseq
        %v5178 = vshrl.u32 %v5177, 7
        %v5179 = vsub.s32 %v5176, %v5178
        %v5180 = vrot.slane %v5166, %v5179
        %v5181 = vcombine.low %v5158, %v5173
        %v5182 = vcombine.high %v5158, %v5173
        %v5184 = vunpack.c.l.s4 1934713408
        %v5185 = vunpack.c.0.s8 %v5184
        %v5186 = vlaneseq
        %v5187 = vshrl.u32 %v5186, 7
        %v5188 = vsub.s32 %v5185, %v5187
        %v5189 = vrot.slane %v5181, %v5188
        %v5191 = vunpack.c.l.s4 1934713408
        %v5192 = vunpack.c.0.s8 %v5191
        %v5193 = vlaneseq
        %v5194 = vshrl.u32 %v5193, 7
        %v5195 = vsub.s32 %v5192, %v5194
        %v5196 = vrot.slane %v5182, %v5195
        %v5197 = vcombine.low %v5165, %v5180
        %v5198 = vcombine.high %v5165, %v5180
        %v5200 = vunpack.c.l.s4 1934713408
        %v5201 = vunpack.c.0.s8 %v5200
        %v5202 = vlaneseq
        %v5203 = vshrl.u32 %v5202, 7
        %v5204 = vsub.s32 %v5201, %v5203
        %v5205 = vrot.slane %v5197, %v5204
        %v5207 = vunpack.c.l.s4 1934713408
        %v5208 = vunpack.c.0.s8 %v5207
        %v5209 = vlaneseq
        %v5210 = vshrl.u32 %v5209, 7
        %v5211 = vsub.s32 %v5208, %v5210
        %v5212 = vrot.slane %v5198, %v5211
        %v5213 = vcombine.high %v5189, 0
        %v5214 = vcombine.high %v5196, 0
        %v5215 = vcombine.high %v5205, 0
        %v5216 = vcombine.high %v5212, 0
        %v5217 = vcombine.high %v5141, %v3509
        %v5219 = vunpack.c.l.s4 1983009808
        %v5220 = vunpack.c.0.s8 %v5219
        %v5221 = vlaneseq
        %v5222 = vshrl.u32 %v5221, 7
        %v5223 = vsub.s32 %v5220, %v5222
        %v5224 = vrot.slane %v5141, %v5223
        %v5226 = vunpack.c.l.s4 1983009808
        %v5227 = vunpack.c.0.s8 %v5226
        %v5228 = vlaneseq
        %v5229 = vshrl.u32 %v5228, 7
        %v5230 = vsub.s32 %v5227, %v5229
        %v5231 = vrot.slane %v5217, %v5230
        %v5232 = vcombine.high %v5149, %v3509
        %v5234 = vunpack.c.l.s4 1983009808
        %v5235 = vunpack.c.0.s8 %v5234
        %v5236 = vlaneseq
        %v5237 = vshrl.u32 %v5236, 7
        %v5238 = vsub.s32 %v5235, %v5237
        %v5239 = vrot.slane %v5149, %v5238
        %v5241 = vunpack.c.l.s4 1983009808
        %v5242 = vunpack.c.0.s8 %v5241
        %v5243 = vlaneseq
        %v5244 = vshrl.u32 %v5243, 7
        %v5245 = vsub.s32 %v5242, %v5244
        %v5246 = vrot.slane %v5232, %v5245
        %v5247 = vcombine.low %v5224, %v5239
        %v5248 = vcombine.high %v5224, %v5239
        %v5250 = vunpack.c.l.s4 1934713408
        %v5251 = vunpack.c.0.s8 %v5250
        %v5252 = vlaneseq
        %v5253 = vshrl.u32 %v5252, 7
        %v5254 = vsub.s32 %v5251, %v5253
        %v5255 = vrot.slane %v5247, %v5254
        %v5257 = vunpack.c.l.s4 1934713408
        %v5258 = vunpack.c.0.s8 %v5257
        %v5259 = vlaneseq
        %v5260 = vshrl.u32 %v5259, 7
        %v5261 = vsub.s32 %v5258, %v5260
        %v5262 = vrot.slane %v5248, %v5261
        %v5263 = vcombine.low %v5231, %v5246
        %v5264 = vcombine.high %v5231, %v5246
        %v5266 = vunpack.c.l.s4 1934713408
        %v5267 = vunpack.c.0.s8 %v5266
        %v5268 = vlaneseq
        %v5269 = vshrl.u32 %v5268, 7
        %v5270 = vsub.s32 %v5267, %v5269
        %v5271 = vrot.slane %v5263, %v5270
        %v5273 = vunpack.c.l.s4 1934713408
        %v5274 = vunpack.c.0.s8 %v5273
        %v5275 = vlaneseq
        %v5276 = vshrl.u32 %v5275, 7
        %v5277 = vsub.s32 %v5274, %v5276
        %v5278 = vrot.slane %v5264, %v5277
        %v5279 = vcombine.high %v5255, 0
        %v5280 = vcombine.high %v5262, 0
        %v5281 = vcombine.high %v5271, 0
        %v5282 = vcombine.high %v5278, 0
        %5284 = vrot.lane.b32.xlu0 %v5255, 16
        %v5285 = vpop.permute.xlu0 %5284
        %5287 = vrot.lane.b32.xlu0 %v5213, 32
        %v5288 = vpop.permute.xlu0 %5287
        %5290 = vrot.lane.b32.xlu0 %v5279, 48
        %v5291 = vpop.permute.xlu0 %5290
        %5293 = vrot.lane.b32.xlu0 %v5196, 64
        %v5294 = vpop.permute.xlu0 %5293
        %5296 = vrot.lane.b32.xlu0 %v5262, 80
        %v5297 = vpop.permute.xlu0 %5296
        %5299 = vrot.lane.b32.xlu0 %v5214, 96
        %v5300 = vpop.permute.xlu0 %5299
        %5302 = vrot.lane.b32.xlu0 %v5280, 112
        %v5303 = vpop.permute.xlu0 %5302
        %5305 = vrot.lane.b32.xlu0 %v5271, 16
        %v5306 = vpop.permute.xlu0 %5305
        %5308 = vrot.lane.b32.xlu0 %v5215, 32
        %v5309 = vpop.permute.xlu0 %5308
        %5311 = vrot.lane.b32.xlu0 %v5281, 48
        %v5312 = vpop.permute.xlu0 %5311
        %5314 = vrot.lane.b32.xlu0 %v5212, 64
        %v5315 = vpop.permute.xlu0 %5314
        %5317 = vrot.lane.b32.xlu0 %v5278, 80
        %v5318 = vpop.permute.xlu0 %5317
        %5320 = vrot.lane.b32.xlu0 %v5216, 96
        %v5321 = vpop.permute.xlu0 %5320
        %5323 = vrot.lane.b32.xlu0 %v5282, 112
        %v5324 = vpop.permute.xlu0 %5323
        %v5327 = vsel %vm992, %v5189, %v5285
        %v5329 = vsel %vm996, %v5327, %v5288
        %v5331 = vsel %vm999, %v5329, %v5291
        %v5333 = vsel %vm1002, %v5331, %v5294
        %v5335 = vsel %vm1005, %v5333, %v5297
        %v5337 = vsel %vm1008, %v5335, %v5300
        %v5339 = vsel %vm1011, %v5337, %v5303
        %v5342 = vsel %vm992, %v5205, %v5306
        %v5344 = vsel %vm996, %v5342, %v5309
        %v5346 = vsel %vm999, %v5344, %v5312
        %v5348 = vsel %vm1002, %v5346, %v5315
        %v5350 = vsel %vm1005, %v5348, %v5318
        %v5352 = vsel %vm1008, %v5350, %v5321
        %v5354 = vsel %vm1011, %v5352, %v5324
        %5355 = vrot.lane.b32.xlu0 %v4897, 126
        %v5356 = vpop.permute.xlu0 %5355
        %5357 = vrot.lane.b32.xlu0 %v4900, 126
        %v5358 = vpop.permute.xlu0 %5357
        %5359 = vrot.lane.b32.xlu0 %v4903, 126
        %v5360 = vpop.permute.xlu0 %5359
        %5361 = vrot.lane.b32.xlu0 %v4906, 126
        %v5362 = vpop.permute.xlu0 %5361
        %v5365 = vpack.i.b16 %v5358, %v5356
        %v5367 = vshrl.u32 %v5356, 16
        %v5368 = vshrl.u32 %v5358, 16
        %v5369 = vpack.i.b16 %v5368, %v5367
        %v5373 = vpack.i.b16 %v5362, %v5360
        %v5375 = vshrl.u32 %v5360, 16
        %v5376 = vshrl.u32 %v5362, 16
        %v5377 = vpack.i.b16 %v5376, %v5375
        %v5379 = vcombine.high %v5365, %v3506
        %v5381 = vunpack.c.l.s4 1983009808
        %v5382 = vunpack.c.0.s8 %v5381
        %v5383 = vlaneseq
        %v5384 = vshrl.u32 %v5383, 7
        %v5385 = vsub.s32 %v5382, %v5384
        %v5386 = vrot.slane %v5365, %v5385
        %v5388 = vunpack.c.l.s4 1983009808
        %v5389 = vunpack.c.0.s8 %v5388
        %v5390 = vlaneseq
        %v5391 = vshrl.u32 %v5390, 7
        %v5392 = vsub.s32 %v5389, %v5391
        %v5393 = vrot.slane %v5379, %v5392
        %v5394 = vcombine.high %v5373, %v3506
        %v5396 = vunpack.c.l.s4 1983009808
        %v5397 = vunpack.c.0.s8 %v5396
        %v5398 = vlaneseq
        %v5399 = vshrl.u32 %v5398, 7
        %v5400 = vsub.s32 %v5397, %v5399
        %v5401 = vrot.slane %v5373, %v5400
        %v5403 = vunpack.c.l.s4 1983009808
        %v5404 = vunpack.c.0.s8 %v5403
        %v5405 = vlaneseq
        %v5406 = vshrl.u32 %v5405, 7
        %v5407 = vsub.s32 %v5404, %v5406
        %v5408 = vrot.slane %v5394, %v5407
        %v5409 = vcombine.low %v5386, %v5401
        %v5410 = vcombine.high %v5386, %v5401
        %v5412 = vunpack.c.l.s4 1934713408
        %v5413 = vunpack.c.0.s8 %v5412
        %v5414 = vlaneseq
        %v5415 = vshrl.u32 %v5414, 7
        %v5416 = vsub.s32 %v5413, %v5415
        %v5417 = vrot.slane %v5409, %v5416
        %v5419 = vunpack.c.l.s4 1934713408
        %v5420 = vunpack.c.0.s8 %v5419
        %v5421 = vlaneseq
        %v5422 = vshrl.u32 %v5421, 7
        %v5423 = vsub.s32 %v5420, %v5422
        %v5424 = vrot.slane %v5410, %v5423
        %v5425 = vcombine.low %v5393, %v5408
        %v5426 = vcombine.high %v5393, %v5408
        %v5428 = vunpack.c.l.s4 1934713408
        %v5429 = vunpack.c.0.s8 %v5428
        %v5430 = vlaneseq
        %v5431 = vshrl.u32 %v5430, 7
        %v5432 = vsub.s32 %v5429, %v5431
        %v5433 = vrot.slane %v5425, %v5432
        %v5435 = vunpack.c.l.s4 1934713408
        %v5436 = vunpack.c.0.s8 %v5435
        %v5437 = vlaneseq
        %v5438 = vshrl.u32 %v5437, 7
        %v5439 = vsub.s32 %v5436, %v5438
        %v5440 = vrot.slane %v5426, %v5439
        %v5441 = vcombine.high %v5417, 0
        %v5442 = vcombine.high %v5424, 0
        %v5443 = vcombine.high %v5433, 0
        %v5444 = vcombine.high %v5440, 0
        %v5445 = vcombine.high %v5369, %v3509
        %v5447 = vunpack.c.l.s4 1983009808
        %v5448 = vunpack.c.0.s8 %v5447
        %v5449 = vlaneseq
        %v5450 = vshrl.u32 %v5449, 7
        %v5451 = vsub.s32 %v5448, %v5450
        %v5452 = vrot.slane %v5369, %v5451
        %v5454 = vunpack.c.l.s4 1983009808
        %v5455 = vunpack.c.0.s8 %v5454
        %v5456 = vlaneseq
        %v5457 = vshrl.u32 %v5456, 7
        %v5458 = vsub.s32 %v5455, %v5457
        %v5459 = vrot.slane %v5445, %v5458
        %v5460 = vcombine.high %v5377, %v3509
        %v5462 = vunpack.c.l.s4 1983009808
        %v5463 = vunpack.c.0.s8 %v5462
        %v5464 = vlaneseq
        %v5465 = vshrl.u32 %v5464, 7
        %v5466 = vsub.s32 %v5463, %v5465
        %v5467 = vrot.slane %v5377, %v5466
        %v5469 = vunpack.c.l.s4 1983009808
        %v5470 = vunpack.c.0.s8 %v5469
        %v5471 = vlaneseq
        %v5472 = vshrl.u32 %v5471, 7
        %v5473 = vsub.s32 %v5470, %v5472
        %v5474 = vrot.slane %v5460, %v5473
        %v5475 = vcombine.low %v5452, %v5467
        %v5476 = vcombine.high %v5452, %v5467
        %v5478 = vunpack.c.l.s4 1934713408
        %v5479 = vunpack.c.0.s8 %v5478
        %v5480 = vlaneseq
        %v5481 = vshrl.u32 %v5480, 7
        %v5482 = vsub.s32 %v5479, %v5481
        %v5483 = vrot.slane %v5475, %v5482
        %v5485 = vunpack.c.l.s4 1934713408
        %v5486 = vunpack.c.0.s8 %v5485
        %v5487 = vlaneseq
        %v5488 = vshrl.u32 %v5487, 7
        %v5489 = vsub.s32 %v5486, %v5488
        %v5490 = vrot.slane %v5476, %v5489
        %v5491 = vcombine.low %v5459, %v5474
        %v5492 = vcombine.high %v5459, %v5474
        %v5494 = vunpack.c.l.s4 1934713408
        %v5495 = vunpack.c.0.s8 %v5494
        %v5496 = vlaneseq
        %v5497 = vshrl.u32 %v5496, 7
        %v5498 = vsub.s32 %v5495, %v5497
        %v5499 = vrot.slane %v5491, %v5498
        %v5501 = vunpack.c.l.s4 1934713408
        %v5502 = vunpack.c.0.s8 %v5501
        %v5503 = vlaneseq
        %v5504 = vshrl.u32 %v5503, 7
        %v5505 = vsub.s32 %v5502, %v5504
        %v5506 = vrot.slane %v5492, %v5505
        %v5507 = vcombine.high %v5483, 0
        %v5508 = vcombine.high %v5490, 0
        %v5509 = vcombine.high %v5499, 0
        %v5510 = vcombine.high %v5506, 0
        %5512 = vrot.lane.b32.xlu0 %v5483, 16
        %v5513 = vpop.permute.xlu0 %5512
        %5515 = vrot.lane.b32.xlu0 %v5441, 32
        %v5516 = vpop.permute.xlu0 %5515
        %5518 = vrot.lane.b32.xlu0 %v5507, 48
        %v5519 = vpop.permute.xlu0 %5518
        %5521 = vrot.lane.b32.xlu0 %v5424, 64
        %v5522 = vpop.permute.xlu0 %5521
        %5524 = vrot.lane.b32.xlu0 %v5490, 80
        %v5525 = vpop.permute.xlu0 %5524
        %5527 = vrot.lane.b32.xlu0 %v5442, 96
        %v5528 = vpop.permute.xlu0 %5527
        %5530 = vrot.lane.b32.xlu0 %v5508, 112
        %v5531 = vpop.permute.xlu0 %5530
        %5533 = vrot.lane.b32.xlu0 %v5499, 16
        %v5534 = vpop.permute.xlu0 %5533
        %5536 = vrot.lane.b32.xlu0 %v5443, 32
        %v5537 = vpop.permute.xlu0 %5536
        %5539 = vrot.lane.b32.xlu0 %v5509, 48
        %v5540 = vpop.permute.xlu0 %5539
        %5542 = vrot.lane.b32.xlu0 %v5440, 64
        %v5543 = vpop.permute.xlu0 %5542
        %5545 = vrot.lane.b32.xlu0 %v5506, 80
        %v5546 = vpop.permute.xlu0 %5545
        %5548 = vrot.lane.b32.xlu0 %v5444, 96
        %v5549 = vpop.permute.xlu0 %5548
        %5551 = vrot.lane.b32.xlu0 %v5510, 112
        %v5552 = vpop.permute.xlu0 %5551
        %v5555 = vsel %vm992, %v5417, %v5513
        %v5557 = vsel %vm996, %v5555, %v5516
        %v5559 = vsel %vm999, %v5557, %v5519
        %v5561 = vsel %vm1002, %v5559, %v5522
        %v5563 = vsel %vm1005, %v5561, %v5525
        %v5565 = vsel %vm1008, %v5563, %v5528
        %v5567 = vsel %vm1011, %v5565, %v5531
        %v5570 = vsel %vm992, %v5433, %v5534
        %v5572 = vsel %vm996, %v5570, %v5537
        %v5574 = vsel %vm999, %v5572, %v5540
        %v5576 = vsel %vm1002, %v5574, %v5543
        %v5578 = vsel %vm1005, %v5576, %v5546
        %v5580 = vsel %vm1008, %v5578, %v5549
        %v5582 = vsel %vm1011, %v5580, %v5552
        %v5585 = vrot.slane %v3931, 6
        %v5586 = vrot.slane %v3946, 6
        %v5589 = vrot.slane %v4159, 4
        %v5590 = vrot.slane %v4174, 4
        %v5593 = vrot.slane %v4419, 2
        %v5594 = vrot.slane %v4434, 2
        %v5597 = vrot.slane %v4875, 6
        %v5598 = vrot.slane %v4890, 6
        %v5601 = vrot.slane %v5111, 4
        %v5602 = vrot.slane %v5126, 4
        %v5605 = vrot.slane %v5339, 2
        %v5606 = vrot.slane %v5354, 2
        %vm5607 = vcmask 1041408
        %v5609 = vsel %vm5607, %v3699, %v5585
        %v5611 = vsel %vm5607, %v3714, %v5586
        %v5613 = vsel %vm347, %v5609, %v5589
        %v5615 = vsel %vm347, %v5611, %v5590
        %vm5616 = vcmask 1045504
        %v5618 = vsel %vm5616, %v5613, %v5593
        %v5621 = vsel %vm5616, %v5615, %v5594
        %v5624 = vsel %vm5607, %v4647, %v5597
        %v5626 = vsel %vm5607, %v4662, %v5598
        %v5628 = vsel %vm347, %v5624, %v5601
        %v5630 = vsel %vm347, %v5626, %v5602
        %v5632 = vsel %vm5616, %v5628, %v5605
        %v5635 = vsel %vm5616, %v5630, %v5606
        %vm5637 = vcmask 293888
        %v5639 = vsel %vm5637, %v3489, 0
        %v5641 = vsel %vm5607, %v5567, 0
        %v5643 = vsel %vm5607, %v5582, 0
        %5645 = vmatprep.subr.bf16.mxu0 %v5621
        %5646 = vmatpush1.bf16.msra.mxu0 %v5618
        %5647 = vmatprep.subr.bf16.mxu0 %v5635
        %5648 = vmatpush1.bf16.msra.mxu0 %v5632
        %5649 = vmatprep.subr.bf16.mxu0 %v5643
        %5650 = vmatpush1.bf16.msra.mxu0 %v5641
        %5651 = vmatprep.subr.bf16.mxu0 0
        %5652 = vmatpush1.bf16.msra.mxu0 0
        %5653 = vmatprep.subr.bf16.mxu0 0
        %5654 = vmatpush1.bf16.msra.mxu0 0
        %5655 = vmatprep.subr.bf16.mxu0 0
        %5656 = vmatpush1.bf16.msra.mxu0 0
        %5657 = vmatprep.subr.bf16.mxu0 0
        %5658 = vmatpush1.bf16.msra.mxu0 0
        %5659 = vmatprep.subr.bf16.mxu0 0
        %5660 = vmatpush1.bf16.msra.mxu0 0
        %5661 = vmatprep.subr.bf16.mxu0 0
        %5662 = vmatpush1.bf16.msra.mxu0 0
        %5663 = vmatprep.subr.bf16.mxu0 0
        %5664 = vmatpush1.bf16.msra.mxu0 0
        %5665 = vmatprep.subr.bf16.mxu0 0
        %5666 = vmatpush1.bf16.msra.mxu0 0
        %5667 = vmatprep.subr.bf16.mxu0 0
        %5668 = vmatpush1.bf16.msra.mxu0 0
        %5669 = vmatprep.subr.bf16.mxu0 0
        %5670 = vmatpush1.bf16.msra.mxu0 0
        %5671 = vmatprep.subr.bf16.mxu0 0
        %5672 = vmatpush1.bf16.msra.mxu0 0
        %5673 = vmatprep.subr.bf16.mxu0 0
        %5674 = vmatpush1.bf16.msra.mxu0 0
        %5675 = vmatprep.subr.bf16.mxu0 0
        %5676 = vmatpush1.bf16.msra.mxu0 0
        %5677 = vmatprep.mubr.bf16.mxu0 0
        %5678 = vmatmul.mubr.bf16.gmra.mrb[0].mxu0 %v5639
        %v5679 = vpop.f32.mrb[0].mxu0
        %v5680 = vadd.f32 0.0, %v5679
        %v5681 = vpop.f32.mrb[0].mxu0
        %v5682 = vadd.f32 0.0, %v5681
        %v5683 = vpop.f32.mrb[0].mxu0
        %v5684 = vpop.f32.mrb[0].mxu0
        %5685 = vdwg.mxu0
        %5686 = vset.pattern.permute.xlu0 2
        %5687 = vperm.xlu0 %5686, %v630
        %v5688 = vpop.permute.xlu0 %5687
        %v5690 = vmul.f32 %v5680, %v5688
        %v5691 = vmul.f32 %v5682, %v5688
        %5692 = vset.pattern.permute.xlu0 3
        %5693 = vperm.xlu0 %5692, %v630
        %v5694 = vpop.permute.xlu0 %5693
        %v5696 = vadd.f32 %v5690, %v5694
        %v5697 = vadd.f32 %v5691, %v5694
        %v5698 = vmax.f32 %v5696, 0.0
        %v5699 = vmax.f32 %v5697, 0.0
        %v5700 = vcombine.low %v594, %v614
        %v5702 = vunpack.c.l.s4 1983009808
        %v5703 = vunpack.c.0.s8 %v5702
        %v5704 = vlaneseq
        %v5705 = vshrl.u32 %v5704, 7
        %v5706 = vsub.s32 %v5703, %v5705
        %v5707 = vrot.slane %v5700, %v5706
        %v5708 = vcombine.low %v598, %v618
        %v5710 = vunpack.c.l.s4 1983009808
        %v5711 = vunpack.c.0.s8 %v5710
        %v5712 = vlaneseq
        %v5713 = vshrl.u32 %v5712, 7
        %v5714 = vsub.s32 %v5711, %v5713
        %v5715 = vrot.slane %v5708, %v5714
        %v5716 = vcombine.low %v5707, %v5715
        %v5717 = vcombine.high %v5707, %v5715
        %v5719 = vunpack.c.l.s4 1934713408
        %v5720 = vunpack.c.0.s8 %v5719
        %v5721 = vlaneseq
        %v5722 = vshrl.u32 %v5721, 7
        %v5723 = vsub.s32 %v5720, %v5722
        %v5724 = vrot.slane %v5716, %v5723
        %v5726 = vunpack.c.l.s4 1934713408
        %v5727 = vunpack.c.0.s8 %v5726
        %v5728 = vlaneseq
        %v5729 = vshrl.u32 %v5728, 7
        %v5730 = vsub.s32 %v5727, %v5729
        %v5731 = vrot.slane %v5717, %v5730
        %v5732 = vcombine.high %v5724, 0
        %v5733 = vcombine.high %v5731, 0
        %v5734 = vcombine.low %v596, %v616
        %v5736 = vunpack.c.l.s4 1983009808
        %v5737 = vunpack.c.0.s8 %v5736
        %v5738 = vlaneseq
        %v5739 = vshrl.u32 %v5738, 7
        %v5740 = vsub.s32 %v5737, %v5739
        %v5741 = vrot.slane %v5734, %v5740
        %v5742 = vcombine.low %v600, %v620
        %v5744 = vunpack.c.l.s4 1983009808
        %v5745 = vunpack.c.0.s8 %v5744
        %v5746 = vlaneseq
        %v5747 = vshrl.u32 %v5746, 7
        %v5748 = vsub.s32 %v5745, %v5747
        %v5749 = vrot.slane %v5742, %v5748
        %v5750 = vcombine.low %v5741, %v5749
        %v5751 = vcombine.high %v5741, %v5749
        %v5753 = vunpack.c.l.s4 1934713408
        %v5754 = vunpack.c.0.s8 %v5753
        %v5755 = vlaneseq
        %v5756 = vshrl.u32 %v5755, 7
        %v5757 = vsub.s32 %v5754, %v5756
        %v5758 = vrot.slane %v5750, %v5757
        %v5760 = vunpack.c.l.s4 1934713408
        %v5761 = vunpack.c.0.s8 %v5760
        %v5762 = vlaneseq
        %v5763 = vshrl.u32 %v5762, 7
        %v5764 = vsub.s32 %v5761, %v5763
        %v5765 = vrot.slane %v5751, %v5764
        %v5766 = vcombine.high %v5758, 0
        %v5767 = vcombine.high %v5765, 0
        %v5768 = vcombine.low %v595, %v615
        %v5770 = vunpack.c.l.s4 1983009808
        %v5771 = vunpack.c.0.s8 %v5770
        %v5772 = vlaneseq
        %v5773 = vshrl.u32 %v5772, 7
        %v5774 = vsub.s32 %v5771, %v5773
        %v5775 = vrot.slane %v5768, %v5774
        %v5776 = vcombine.low %v599, %v619
        %v5778 = vunpack.c.l.s4 1983009808
        %v5779 = vunpack.c.0.s8 %v5778
        %v5780 = vlaneseq
        %v5781 = vshrl.u32 %v5780, 7
        %v5782 = vsub.s32 %v5779, %v5781
        %v5783 = vrot.slane %v5776, %v5782
        %v5784 = vcombine.low %v5775, %v5783
        %v5785 = vcombine.high %v5775, %v5783
        %v5787 = vunpack.c.l.s4 1934713408
        %v5788 = vunpack.c.0.s8 %v5787
        %v5789 = vlaneseq
        %v5790 = vshrl.u32 %v5789, 7
        %v5791 = vsub.s32 %v5788, %v5790
        %v5792 = vrot.slane %v5784, %v5791
        %v5794 = vunpack.c.l.s4 1934713408
        %v5795 = vunpack.c.0.s8 %v5794
        %v5796 = vlaneseq
        %v5797 = vshrl.u32 %v5796, 7
        %v5798 = vsub.s32 %v5795, %v5797
        %v5799 = vrot.slane %v5785, %v5798
        %v5800 = vcombine.high %v5792, 0
        %v5801 = vcombine.high %v5799, 0
        %v5802 = vcombine.low %v597, %v617
        %v5804 = vunpack.c.l.s4 1983009808
        %v5805 = vunpack.c.0.s8 %v5804
        %v5806 = vlaneseq
        %v5807 = vshrl.u32 %v5806, 7
        %v5808 = vsub.s32 %v5805, %v5807
        %v5809 = vrot.slane %v5802, %v5808
        %v5810 = vcombine.low %v601, %v621
        %v5812 = vunpack.c.l.s4 1983009808
        %v5813 = vunpack.c.0.s8 %v5812
        %v5814 = vlaneseq
        %v5815 = vshrl.u32 %v5814, 7
        %v5816 = vsub.s32 %v5813, %v5815
        %v5817 = vrot.slane %v5810, %v5816
        %v5818 = vcombine.low %v5809, %v5817
        %v5819 = vcombine.high %v5809, %v5817
        %v5821 = vunpack.c.l.s4 1934713408
        %v5822 = vunpack.c.0.s8 %v5821
        %v5823 = vlaneseq
        %v5824 = vshrl.u32 %v5823, 7
        %v5825 = vsub.s32 %v5822, %v5824
        %v5826 = vrot.slane %v5818, %v5825
        %v5828 = vunpack.c.l.s4 1934713408
        %v5829 = vunpack.c.0.s8 %v5828
        %v5830 = vlaneseq
        %v5831 = vshrl.u32 %v5830, 7
        %v5832 = vsub.s32 %v5829, %v5831
        %v5833 = vrot.slane %v5819, %v5832
        %v5834 = vcombine.high %v5826, 0
        %v5835 = vcombine.high %v5833, 0
        %v5838 = vpack.i.b16 %v5758, %v5724
        %v5839 = vshrl.u32 %v5724, 16
        %v5840 = vshrl.u32 %v5758, 16
        %v5841 = vpack.i.b16 %v5840, %v5839
        %v5844 = vpack.i.b16 %v5766, %v5732
        %v5845 = vshrl.u32 %v5732, 16
        %v5846 = vshrl.u32 %v5766, 16
        %v5847 = vpack.i.b16 %v5846, %v5845
        %v5850 = vpack.i.b16 %v5765, %v5731
        %v5851 = vshrl.u32 %v5731, 16
        %v5852 = vshrl.u32 %v5765, 16
        %v5853 = vpack.i.b16 %v5852, %v5851
        %v5856 = vpack.i.b16 %v5767, %v5733
        %v5857 = vshrl.u32 %v5733, 16
        %v5858 = vshrl.u32 %v5767, 16
        %v5859 = vpack.i.b16 %v5858, %v5857
        %v5862 = vpack.i.b16 %v5826, %v5792
        %v5863 = vshrl.u32 %v5792, 16
        %v5864 = vshrl.u32 %v5826, 16
        %v5865 = vpack.i.b16 %v5864, %v5863
        %v5868 = vpack.i.b16 %v5834, %v5800
        %v5869 = vshrl.u32 %v5800, 16
        %v5870 = vshrl.u32 %v5834, 16
        %v5871 = vpack.i.b16 %v5870, %v5869
        %v5874 = vpack.i.b16 %v5833, %v5799
        %v5875 = vshrl.u32 %v5799, 16
        %v5876 = vshrl.u32 %v5833, 16
        %v5877 = vpack.i.b16 %v5876, %v5875
        %v5880 = vpack.i.b16 %v5835, %v5801
        %v5881 = vshrl.u32 %v5801, 16
        %v5882 = vshrl.u32 %v5835, 16
        %v5883 = vpack.i.b16 %v5882, %v5881
        %v5884 = vunpack.c.l.b16 %v5841
        %v5885 = vpack.c.b16 %v5884, %v5884
        %5886 = vrot.lane.b32.xlu0 %v5885, 16
        %v5887 = vpop.permute.xlu0 %5886
        %v5888 = vunpack.c.l.b16 %v5844
        %v5889 = vpack.c.b16 %v5888, %v5888
        %5890 = vrot.lane.b32.xlu0 %v5889, 32
        %v5891 = vpop.permute.xlu0 %5890
        %v5892 = vunpack.c.l.b16 %v5847
        %v5893 = vpack.c.b16 %v5892, %v5892
        %5894 = vrot.lane.b32.xlu0 %v5893, 48
        %v5895 = vpop.permute.xlu0 %5894
        %v5896 = vunpack.c.l.b16 %v5850
        %v5897 = vpack.c.b16 %v5896, %v5896
        %5898 = vrot.lane.b32.xlu0 %v5897, 64
        %v5899 = vpop.permute.xlu0 %5898
        %v5900 = vunpack.c.l.b16 %v5853
        %v5901 = vpack.c.b16 %v5900, %v5900
        %5902 = vrot.lane.b32.xlu0 %v5901, 80
        %v5903 = vpop.permute.xlu0 %5902
        %v5904 = vunpack.c.l.b16 %v5856
        %v5905 = vpack.c.b16 %v5904, %v5904
        %5906 = vrot.lane.b32.xlu0 %v5905, 96
        %v5907 = vpop.permute.xlu0 %5906
        %v5908 = vunpack.c.l.b16 %v5859
        %v5909 = vpack.c.b16 %v5908, %v5908
        %5910 = vrot.lane.b32.xlu0 %v5909, 112
        %v5911 = vpop.permute.xlu0 %5910
        %v5912 = vunpack.c.l.b16 %v5865
        %v5913 = vpack.c.b16 %v5912, %v5912
        %5914 = vrot.lane.b32.xlu0 %v5913, 16
        %v5915 = vpop.permute.xlu0 %5914
        %v5916 = vunpack.c.l.b16 %v5868
        %v5917 = vpack.c.b16 %v5916, %v5916
        %5918 = vrot.lane.b32.xlu0 %v5917, 32
        %v5919 = vpop.permute.xlu0 %5918
        %v5920 = vunpack.c.l.b16 %v5871
        %v5921 = vpack.c.b16 %v5920, %v5920
        %5922 = vrot.lane.b32.xlu0 %v5921, 48
        %v5923 = vpop.permute.xlu0 %5922
        %v5924 = vunpack.c.l.b16 %v5874
        %v5925 = vpack.c.b16 %v5924, %v5924
        %5926 = vrot.lane.b32.xlu0 %v5925, 64
        %v5927 = vpop.permute.xlu0 %5926
        %v5928 = vunpack.c.l.b16 %v5877
        %v5929 = vpack.c.b16 %v5928, %v5928
        %5930 = vrot.lane.b32.xlu0 %v5929, 80
        %v5931 = vpop.permute.xlu0 %5930
        %v5932 = vunpack.c.l.b16 %v5880
        %v5933 = vpack.c.b16 %v5932, %v5932
        %5934 = vrot.lane.b32.xlu0 %v5933, 96
        %v5935 = vpop.permute.xlu0 %5934
        %v5936 = vunpack.c.l.b16 %v5883
        %v5937 = vpack.c.b16 %v5936, %v5936
        %5938 = vrot.lane.b32.xlu0 %v5937, 112
        %v5939 = vpop.permute.xlu0 %5938
        %v5942 = vsel %vm992, %v5838, %v5887
        %v5944 = vsel %vm996, %v5942, %v5891
        %v5946 = vsel %vm999, %v5944, %v5895
        %v5948 = vsel %vm1002, %v5946, %v5899
        %v5950 = vsel %vm1005, %v5948, %v5903
        %v5952 = vsel %vm1008, %v5950, %v5907
        %v5954 = vsel %vm1011, %v5952, %v5911
        %v5957 = vsel %vm992, %v5862, %v5915
        %v5959 = vsel %vm996, %v5957, %v5919
        %v5961 = vsel %vm999, %v5959, %v5923
        %v5963 = vsel %vm1002, %v5961, %v5927
        %v5965 = vsel %vm1005, %v5963, %v5931
        %v5967 = vsel %vm1008, %v5965, %v5935
        %v5969 = vsel %vm1011, %v5967, %v5939
        %v5970 = vld [vmem:[%s6] sm:$0x3]
        %v5972 = vsel %vm340, %v5970, 0
        %v5974 = vsel %vm347, %v5954, 0
        %v5976 = vsel %vm347, %v5969, 0
        %5978 = vmatprep.subr.bf16.mxu0 %v5976
        %5979 = vmatpush1.bf16.msra.mxu0 %v5974
        %5980 = vmatprep.subr.bf16.mxu0 0
        %5981 = vmatpush1.bf16.msra.mxu0 0
        %5982 = vmatprep.subr.bf16.mxu0 0
        %5983 = vmatpush1.bf16.msra.mxu0 0
        %5984 = vmatprep.subr.bf16.mxu0 0
        %5985 = vmatpush1.bf16.msra.mxu0 0
        %5986 = vmatprep.subr.bf16.mxu0 0
        %5987 = vmatpush1.bf16.msra.mxu0 0
        %5988 = vmatprep.subr.bf16.mxu0 0
        %5989 = vmatpush1.bf16.msra.mxu0 0
        %5990 = vmatprep.subr.bf16.mxu0 0
        %5991 = vmatpush1.bf16.msra.mxu0 0
        %5992 = vmatprep.subr.bf16.mxu0 0
        %5993 = vmatpush1.bf16.msra.mxu0 0
        %5994 = vmatprep.subr.bf16.mxu0 0
        %5995 = vmatpush1.bf16.msra.mxu0 0
        %5996 = vmatprep.subr.bf16.mxu0 0
        %5997 = vmatpush1.bf16.msra.mxu0 0
        %5998 = vmatprep.subr.bf16.mxu0 0
        %5999 = vmatpush1.bf16.msra.mxu0 0
        %6000 = vmatprep.subr.bf16.mxu0 0
        %6001 = vmatpush1.bf16.msra.mxu0 0
        %6002 = vmatprep.subr.bf16.mxu0 0
        %6003 = vmatpush1.bf16.msra.mxu0 0
        %6004 = vmatprep.subr.bf16.mxu0 0
        %6005 = vmatpush1.bf16.msra.mxu0 0
        %6006 = vmatprep.subr.bf16.mxu0 0
        %6007 = vmatpush1.bf16.msra.mxu0 0
        %6008 = vmatprep.subr.bf16.mxu0 0
        %6009 = vmatpush1.bf16.msra.mxu0 0
        %6010 = vmatprep.mubr.bf16.mxu0 0
        %6011 = vmatmul.mubr.bf16.gmra.mrb[0].mxu0 %v5972
        %v6012 = vpop.f32.mrb[0].mxu0
        %v6013 = vadd.f32 0.0, %v6012
        %v6014 = vpop.f32.mrb[0].mxu0
        %v6015 = vadd.f32 0.0, %v6014
        %v6016 = vpop.f32.mrb[0].mxu0
        %v6017 = vpop.f32.mrb[0].mxu0
        %6018 = vdwg.mxu0
        %6019 = vset.pattern.permute.xlu0 4
        %6020 = vperm.xlu0 %6019, %v630
        %v6021 = vpop.permute.xlu0 %6020
        %v6023 = vmul.f32 %v6013, %v6021
        %v6024 = vmul.f32 %v6015, %v6021
        %6025 = vset.pattern.permute.xlu0 5
        %6026 = vperm.xlu0 %6025, %v630
        %v6027 = vpop.permute.xlu0 %6026
        %v6029 = vadd.f32 %v6023, %v6027
        %v6030 = vadd.f32 %v6024, %v6027
        %v6031 = vadd.f32 %v5698, %v6029
        %v6032 = vadd.f32 %v5699, %v6030
        %v6035 = vcombine.low %v6031, %v6032
        %6037 = vst [vmem:[%s313] sm:$0xff] %v6035
        %s6038 = sand.u32 %s208, 1
        %s6039 = scalar_lea.sflag [#allocation3], %s6038
        %s6040 = sand.u32 %s208, 1
        %s6041 = smul.addr %s6040, 8
        %s6042 = scalar_lea.vmem [#allocation2], %s6041
        // Predicated region
        $region53: #{tpu_custom_call.1} parent=51 // pred_check
          %p6043 = pneg %p218
        $region54: #{tpu_custom_call.1} parent=51 // pred_check_branch
          %6045 = sbr.rel (%p6043) target = $region56
        $region55: #{tpu_custom_call.1} parent=51 // pred_region
          %s6047 = ssub.s32 128, 128
          %6048 = vsyncadd %s6039, %s6047
          %s6049 = smul.addr %s22, 2
          %s6050 = smul.addr %s6049, 64
          %s6051 = scalar_lea.hbm %s8, %s6050
          %s6053 = sshll.u32 %s6042, 4
          %s6054 = int_to_ptr.vmem [resolvable:$true] %s6053
          %6056 = dma.vmem_to_hbm [thread:$0]  %s6054, 128, %s6051, %s6039
        $region56: #{tpu_custom_call.1} parent=51 // pred_fallthru
          _
      $region52: #{tpu_custom_call.1} parent=5 // pred_fallthru
        _
      %p6057 = scmp.le.s32.totalorder 2, %s17
      // Predicated region
      $region57: #{tpu_custom_call.1} parent=5 // pred_check
        %p6058 = pneg %p6057
      $region58: #{tpu_custom_call.1} parent=5 // pred_check_branch
        %6060 = sbr.rel (%p6058) target = $region60
      $region59: #{tpu_custom_call.1} parent=5 // pred_region
        %s6061 = ssub.s32 %s17, 2
        // Predicated region
        $region61: #{tpu_custom_call.1} parent=59 // pred_check
          %p6062 = pneg %p224
        $region62: #{tpu_custom_call.1} parent=59 // pred_check_branch
          %6064 = sbr.rel (%p6062) target = $region64
        $region63: #{tpu_custom_call.1} parent=59 // pred_region
          %s6065 = sand.u32 %s209, 1
          %s6066 = scalar_lea.sflag [#allocation3], %s6065
          %s6067 = sand.u32 %s209, 1
          %s6068 = smul.addr %s6067, 8
          %s6069 = scalar_lea.vmem [#allocation2], %s6068
          %6070 = dma.done %s6066, 128
        $region64: #{tpu_custom_call.1} parent=59 // pred_fallthru
          _
      $region60: #{tpu_custom_call.1} parent=5 // pred_fallthru
        _
    $region6: #{tpu_custom_call.1} parent=1 // loop_footer
      %s21 = sadd.s32 1, %s17
    $region7: #{tpu_custom_call.1} parent=1 // loop_footer_branch
      %16 = sbr.rel target = $region3
    $region8: #{tpu_custom_call.1} parent=1 // loop_exit
      _
    %6071 = vsyncpa [#allocation3], 1
    %s6072 = scalar_lea.sflag [#allocation3], 1
    %6073 = vsyncpa %s6072, 1

</llo_original>
